<compile_context>
chip_gen: v5e
topology: v5e:2x2
jax: 0.10.0
libtpu: 0.0.40
codegen_flags: <defaults>
</compile_context>

<pallas_src>
import jax
import jax.numpy as jnp
import numpy as np
from jax.experimental import pallas as pl
from jax.experimental.pallas import tpu as pltpu  # noqa: F401  (TPU backend)

# ----------------------------- problem sizes ------------------------------
T = 8           # sequence length ("lens")
B = 4           # batch size after view(lens, -1, source_dim)
D = 16          # source_dim (opt.hg_dim)
H = 32          # hidden_dim (small stand-in for default 128)
TAG = 74        # tagset_size
TAG_PAD = 128   # lane-dense padding of tagset dim
EPS = 1e-5
NEG_SLOPE = 0.2
NUM_LAYERS = 3


# ------------------------------ fused kernel ------------------------------
def fused_lstm_kernel(x_ref, wih0_ref, wih1_ref, wih2_ref, whh_ref, b_ref,
                      w1_ref, hvec_ref, w2_ref, tvec_ref,
                      lstm_flat_ref, test_ref, train_ref):
    # Weights resident in VMEM; load once.
    wih = [wih0_ref[...], wih1_ref[...], wih2_ref[...]]      # (D,4H),(H,4H),(H,4H)
    whh = [whh_ref[l] for l in range(NUM_LAYERS)]            # (H,4H) each
    bias = [b_ref[l] for l in range(NUM_LAYERS)]             # (1,4H) each

    h = [jnp.zeros((B, H), jnp.float32) for _ in range(NUM_LAYERS)]
    c = [jnp.zeros((B, H), jnp.float32) for _ in range(NUM_LAYERS)]
    acc = jnp.zeros((B, H), jnp.float32)
    rows = []

    # Fully unrolled time loop (T and NUM_LAYERS are tiny, static).
    for t in range(T):
        inp = x_ref[t]                                       # (B, D)
        for l in range(NUM_LAYERS):
            gates = (jnp.dot(inp, wih[l], preferred_element_type=jnp.float32)
                     + jnp.dot(h[l], whh[l], preferred_element_type=jnp.float32)
                     + bias[l])                              # (B, 4H)
            # Whole-vreg transcendentals (EUP has slack), then static slices.
            sig = jax.nn.sigmoid(gates)
            tnh = jnp.tanh(gates)
            i_g = sig[:, 0 * H:1 * H]
            f_g = sig[:, 1 * H:2 * H]
            g_g = tnh[:, 2 * H:3 * H]
            o_g = sig[:, 3 * H:4 * H]
            c_new = f_g * c[l] + i_g * g_g
            h_new = o_g * jnp.tanh(c_new)
            h[l] = h_new
            c[l] = c_new
            inp = h_new                                      # feeds next layer
        acc = acc + inp
        # Build one lane-dense (1, B*H)=(1,128) row for this step.
        rows.append(jnp.concatenate([inp[bb:bb + 1, :] for bb in range(B)],
                                    axis=1))

    # Single unmasked (T, B*H) = (8,128) store.
    lstm_flat_ref[...] = jnp.concatenate(rows, axis=0).astype(lstm_flat_ref.dtype)

    # ---------------------------- fused head ------------------------------
    def bn(v, gamma, beta):
        mu = jnp.mean(v, axis=0, keepdims=True)
        var = jnp.mean((v - mu) * (v - mu), axis=0, keepdims=True)  # biased
        return gamma * (v - mu) * jax.lax.rsqrt(var + EPS) + beta

    hv = hvec_ref[...]          # (5, H):  g1, be1, b1, g2, be2
    tv = tvec_ref[...]          # (3, TAG_PAD): b2, g3, be3 (zero-padded)

    mean_feat = acc * (1.0 / T)                              # mean over time
    y = bn(mean_feat, hv[0:1, :], hv[1:2, :])                # BatchNorm1d(H)
    y = jnp.dot(y, w1_ref[...],
                preferred_element_type=jnp.float32) + hv[2:3, :]   # Linear(H,H)
    y = bn(y, hv[3:4, :], hv[4:5, :])                        # BatchNorm1d(H)
    test = jnp.where(y > 0, y, NEG_SLOPE * y)                # LeakyReLU(0.2)

    z = jnp.dot(test, w2_ref[...],
                preferred_element_type=jnp.float32) + tv[0:1, :]   # Linear(H,TAG_PAD)
    train = bn(z, tv[1:2, :], tv[2:3, :])                    # BatchNorm1d

    test_ref[...] = test.astype(test_ref.dtype)
    train_ref[...] = train.astype(train_ref.dtype)


def pack_head_params(p):
    """Pack the 11 tiny head vectors into two stacked arrays + padded W2."""
    hvec = jnp.concatenate([p["g1"], p["be1"], p["b1"], p["g2"], p["be2"]],
                           axis=0)                                      # (5, H)
    w2p = jnp.zeros((H, TAG_PAD), jnp.float32).at[:, :TAG].set(p["w2_t"])
    pad = lambda v: jnp.zeros((1, TAG_PAD), jnp.float32).at[:, :TAG].set(v)
    tvec = jnp.concatenate([pad(p["b2"]), pad(p["g3"]), pad(p["be3"])],
                           axis=0)                                      # (3, 128)
    return hvec, w2p, tvec


@jax.jit
def forward(x, params):
    hvec, w2p, tvec = pack_head_params(params)
    lstm_flat, test, train_pad = pl.pallas_call(
        fused_lstm_kernel,
        out_shape=(
            jax.ShapeDtypeStruct((T, B * H), jnp.float32),   # lane-dense lstm_out
            jax.ShapeDtypeStruct((B, H), jnp.float32),       # lstm_out_test
            jax.ShapeDtypeStruct((B, TAG_PAD), jnp.float32), # padded lstm_out_train
        ),
    )(x, params["wih_t"][0], params["wih_t"][1], params["wih_t"][2],
      params["whh_t"], params["b"], params["w1_t"], hvec, w2p, tvec)

    lstm_out = lstm_flat.reshape(T, B, H)    # free: HBM layout is identical
    train = train_pad[:, :TAG]
    return train, test, lstm_out


# --------------------------- parameter creation ---------------------------
def init_params(key):
    ks = list(jax.random.split(key, 20))
    u = lambda k, shape, bound: jax.random.uniform(
        k, shape, jnp.float32, minval=-bound, maxval=bound)

    bound_l = 1.0 / np.sqrt(H)
    # LSTM weights, pre-transposed so kernel computes x @ W^T as x @ W_t.
    wih_t = [
        u(ks[0], (D, 4 * H), bound_l),
        u(ks[1], (H, 4 * H), bound_l),
        u(ks[2], (H, 4 * H), bound_l),
    ]
    whh_t = jnp.stack([u(ks[3 + l], (H, 4 * H), bound_l) for l in range(3)])
    # combined bias b_ih + b_hh, shaped (3, 1, 4H) for broadcast
    b = jnp.stack([(u(ks[6 + l], (1, 4 * H), bound_l)
                    + u(ks[9 + l], (1, 4 * H), bound_l)) for l in range(3)])

    params = dict(wih_t=wih_t, whh_t=whh_t, b=b)
    # fc1: BN(H), Linear(H,H), BN(H); main: Linear(H,TAG), BN(TAG)
    params["g1"] = jnp.ones((1, H), jnp.float32)
    params["be1"] = jnp.zeros((1, H), jnp.float32)
    params["w1_t"] = u(ks[12], (H, H), 1.0 / np.sqrt(H))
    params["b1"] = u(ks[13], (1, H), 1.0 / np.sqrt(H))
    params["g2"] = jnp.ones((1, H), jnp.float32)
    params["be2"] = jnp.zeros((1, H), jnp.float32)
    params["w2_t"] = u(ks[14], (H, TAG), 1.0 / np.sqrt(H))
    params["b2"] = u(ks[15], (1, TAG), 1.0 / np.sqrt(H))
    params["g3"] = jnp.ones((1, TAG), jnp.float32)
    params["be3"] = jnp.zeros((1, TAG), jnp.float32)
    return params


# --------------------------- pure-JAX reference ---------------------------
def ref_forward(x, p):
    h = jnp.zeros((NUM_LAYERS, B, H), jnp.float32)
    c = jnp.zeros((NUM_LAYERS, B, H), jnp.float32)
    outs = []
    for t in range(T):
        inp = x[t]
        new_h, new_c = [], []
        for l in range(NUM_LAYERS):
            gates = inp @ p["wih_t"][l] + h[l] @ p["whh_t"][l] + p["b"][l]
            i_g = jax.nn.sigmoid(gates[:, :H])
            f_g = jax.nn.sigmoid(gates[:, H:2 * H])
            g_g = jnp.tanh(gates[:, 2 * H:3 * H])
            o_g = jax.nn.sigmoid(gates[:, 3 * H:])
            cn = f_g * c[l] + i_g * g_g
            hn = o_g * jnp.tanh(cn)
            new_h.append(hn)
            new_c.append(cn)
            inp = hn
        h = jnp.stack(new_h)
        c = jnp.stack(new_c)
        outs.append(inp)
    lstm_out = jnp.stack(outs)
    mean_feat = jnp.mean(lstm_out, axis=0)

    def bn(v, g, be):
        mu = jnp.mean(v, 0, keepdims=True)
        var = jnp.mean((v - mu) ** 2, 0, keepdims=True)
        return g * (v - mu) / jnp.sqrt(var + EPS) + be

    y = bn(mean_feat, p["g1"], p["be1"]) @ p["w1_t"] + p["b1"]
    y = bn(y, p["g2"], p["be2"])
    test = jnp.where(y > 0, y, NEG_SLOPE * y)
    train = bn(test @ p["w2_t"] + p["b2"], p["g3"], p["be3"])
    return train, test, lstm_out


# --------------------------------- driver ---------------------------------
if __name__ == "__main__":
    key = jax.random.PRNGKey(0)
    k_x, k_p = jax.random.split(key)
    # "batch" arriving as (T, B*D) then view(lens, -1, source_dim)
    x = jax.random.normal(k_x, (T, B, D), jnp.float32)
    params = init_params(k_p)

    train_out, test_out, lstm_out = forward(x, params)
    jax.block_until_ready((train_out, test_out, lstm_out))

    # sanity check against pure-JAX reference
    r_train, r_test, r_lstm = ref_forward(x, params)
    np.testing.assert_allclose(np.asarray(lstm_out), np.asarray(r_lstm),
                               rtol=2e-3, atol=2e-3)
    np.testing.assert_allclose(np.asarray(test_out), np.asarray(r_test),
                               rtol=2e-3, atol=2e-3)
    np.testing.assert_allclose(np.asarray(train_out), np.asarray(r_train),
                               rtol=2e-3, atol=2e-3)

    assert train_out.shape == (B, TAG)
    assert test_out.shape == (B, H)
    assert lstm_out.shape == (T, B, H)
    print("KERNEL_OK")
</pallas_src>

<mosaic_0001>
module attributes {stable_mosaic.version = 11 : i64} {
  func.func @fused_lstm_kernel(%arg0: memref<8x4x16xf32, #tpu.memory_space<vmem>>, %arg1: memref<16x128xf32, #tpu.memory_space<vmem>>, %arg2: memref<32x128xf32, #tpu.memory_space<vmem>>, %arg3: memref<32x128xf32, #tpu.memory_space<vmem>>, %arg4: memref<3x32x128xf32, #tpu.memory_space<vmem>>, %arg5: memref<3x1x128xf32, #tpu.memory_space<vmem>>, %arg6: memref<32x32xf32, #tpu.memory_space<vmem>>, %arg7: memref<5x32xf32, #tpu.memory_space<vmem>>, %arg8: memref<32x128xf32, #tpu.memory_space<vmem>>, %arg9: memref<3x128xf32, #tpu.memory_space<vmem>>, %arg10: memref<8x128xf32, #tpu.memory_space<vmem>>, %arg11: memref<4x32xf32, #tpu.memory_space<vmem>>, %arg12: memref<4x128xf32, #tpu.memory_space<vmem>>) attributes {dimension_semantics = [], scalar_prefetch = 0 : i64, scratch_operands = 0 : i64, tpu.core_type = #tpu.core_type<tc>} {
    %c0 = arith.constant 0 : index
    %c0_0 = arith.constant 0 : index
    %0 = vector.load %arg1[%c0, %c0_0] : memref<16x128xf32, #tpu.memory_space<vmem>>, vector<16x128xf32>
    %c0_1 = arith.constant 0 : index
    %c0_2 = arith.constant 0 : index
    %1 = vector.load %arg2[%c0_1, %c0_2] : memref<32x128xf32, #tpu.memory_space<vmem>>, vector<32x128xf32>
    %c0_3 = arith.constant 0 : index
    %c0_4 = arith.constant 0 : index
    %2 = vector.load %arg3[%c0_3, %c0_4] : memref<32x128xf32, #tpu.memory_space<vmem>>, vector<32x128xf32>
    %c0_5 = arith.constant 0 : index
    %c0_6 = arith.constant 0 : index
    %c0_7 = arith.constant 0 : index
    %3 = vector.load %arg4[%c0_5, %c0_6, %c0_7] : memref<3x32x128xf32, #tpu.memory_space<vmem>>, vector<1x32x128xf32>
    %4 = vector.shape_cast %3 : vector<1x32x128xf32> to vector<32x128xf32>
    %c1 = arith.constant 1 : index
    %c0_8 = arith.constant 0 : index
    %c0_9 = arith.constant 0 : index
    %5 = vector.load %arg4[%c1, %c0_8, %c0_9] : memref<3x32x128xf32, #tpu.memory_space<vmem>>, vector<1x32x128xf32>
    %6 = vector.shape_cast %5 : vector<1x32x128xf32> to vector<32x128xf32>
    %c2 = arith.constant 2 : index
    %c0_10 = arith.constant 0 : index
    %c0_11 = arith.constant 0 : index
    %7 = vector.load %arg4[%c2, %c0_10, %c0_11] : memref<3x32x128xf32, #tpu.memory_space<vmem>>, vector<1x32x128xf32>
    %8 = vector.shape_cast %7 : vector<1x32x128xf32> to vector<32x128xf32>
    %c0_12 = arith.constant 0 : index
    %c0_13 = arith.constant 0 : index
    %c0_14 = arith.constant 0 : index
    %9 = vector.load %arg5[%c0_12, %c0_13, %c0_14] : memref<3x1x128xf32, #tpu.memory_space<vmem>>, vector<1x1x128xf32>
    %10 = vector.shape_cast %9 : vector<1x1x128xf32> to vector<1x128xf32>
    %c1_15 = arith.constant 1 : index
    %c0_16 = arith.constant 0 : index
    %c0_17 = arith.constant 0 : index
    %11 = vector.load %arg5[%c1_15, %c0_16, %c0_17] : memref<3x1x128xf32, #tpu.memory_space<vmem>>, vector<1x1x128xf32>
    %12 = vector.shape_cast %11 : vector<1x1x128xf32> to vector<1x128xf32>
    %c2_18 = arith.constant 2 : index
    %c0_19 = arith.constant 0 : index
    %c0_20 = arith.constant 0 : index
    %13 = vector.load %arg5[%c2_18, %c0_19, %c0_20] : memref<3x1x128xf32, #tpu.memory_space<vmem>>, vector<1x1x128xf32>
    %14 = vector.shape_cast %13 : vector<1x1x128xf32> to vector<1x128xf32>
    %cst = arith.constant 0.000000e+00 : f32
    %15 = vector.broadcast %cst : f32 to vector<4x32xf32>
    %cst_21 = arith.constant 0.000000e+00 : f32
    %16 = vector.broadcast %cst_21 : f32 to vector<4x32xf32>
    %cst_22 = arith.constant 0.000000e+00 : f32
    %17 = vector.broadcast %cst_22 : f32 to vector<4x32xf32>
    %cst_23 = arith.constant 0.000000e+00 : f32
    %18 = vector.broadcast %cst_23 : f32 to vector<4x32xf32>
    %cst_24 = arith.constant 0.000000e+00 : f32
    %19 = vector.broadcast %cst_24 : f32 to vector<4x32xf32>
    %cst_25 = arith.constant 0.000000e+00 : f32
    %20 = vector.broadcast %cst_25 : f32 to vector<4x32xf32>
    %cst_26 = arith.constant 0.000000e+00 : f32
    %21 = vector.broadcast %cst_26 : f32 to vector<4x32xf32>
    %c0_27 = arith.constant 0 : index
    %c0_28 = arith.constant 0 : index
    %c0_29 = arith.constant 0 : index
    %22 = vector.load %arg0[%c0_27, %c0_28, %c0_29] : memref<8x4x16xf32, #tpu.memory_space<vmem>>, vector<1x4x16xf32>
    %23 = vector.shape_cast %22 : vector<1x4x16xf32> to vector<4x16xf32>
    %cst_30 = arith.constant dense<0.000000e+00> : vector<4x128xf32>
    %24 = tpu.matmul %23, %0, %cst_30 {dimension_numbers = #tpu.dot_dimension_numbers<[1], [0], [0], [1], [0, 0, 1, 1], [], []>} : vector<4x16xf32>, vector<16x128xf32>, vector<4x128xf32> -> vector<4x128xf32>
    %cst_31 = arith.constant dense<0.000000e+00> : vector<4x128xf32>
    %25 = tpu.matmul %15, %4, %cst_31 {dimension_numbers = #tpu.dot_dimension_numbers<[1], [0], [0], [1], [0, 0, 1, 1], [], []>} : vector<4x32xf32>, vector<32x128xf32>, vector<4x128xf32> -> vector<4x128xf32>
    %26 = arith.addf %24, %25 : vector<4x128xf32>
    %27 = vector.broadcast %10 : vector<1x128xf32> to vector<4x128xf32>
    %28 = arith.addf %26, %27 : vector<4x128xf32>
    %29 = arith.negf %28 : vector<4x128xf32>
    %30 = math.exp %29 : vector<4x128xf32>
    %cst_32 = arith.constant 1.000000e+00 : f32
    %31 = vector.broadcast %cst_32 : f32 to vector<4x128xf32>
    %32 = arith.addf %31, %30 : vector<4x128xf32>
    %33 = arith.divf %31, %32 : vector<4x128xf32>
    %34 = math.tanh %28 : vector<4x128xf32>
    %35 = vector.extract_strided_slice %33 {offsets = [0, 0], sizes = [4, 32], strides = [1, 1]} : vector<4x128xf32> to vector<4x32xf32>
    %36 = vector.extract_strided_slice %33 {offsets = [0, 32], sizes = [4, 32], strides = [1, 1]} : vector<4x128xf32> to vector<4x32xf32>
    %37 = vector.extract_strided_slice %34 {offsets = [0, 64], sizes = [4, 32], strides = [1, 1]} : vector<4x128xf32> to vector<4x32xf32>
    %38 = vector.extract_strided_slice %33 {offsets = [0, 96], sizes = [4, 32], strides = [1, 1]} : vector<4x128xf32> to vector<4x32xf32>
    %39 = arith.mulf %36, %18 : vector<4x32xf32>
    %40 = arith.mulf %35, %37 : vector<4x32xf32>
    %41 = arith.addf %39, %40 : vector<4x32xf32>
    %42 = math.tanh %41 : vector<4x32xf32>
    %43 = arith.mulf %38, %42 : vector<4x32xf32>
    %cst_33 = arith.constant dense<0.000000e+00> : vector<4x128xf32>
    %44 = tpu.matmul %43, %1, %cst_33 {dimension_numbers = #tpu.dot_dimension_numbers<[1], [0], [0], [1], [0, 0, 1, 1], [], []>} : vector<4x32xf32>, vector<32x128xf32>, vector<4x128xf32> -> vector<4x128xf32>
    %cst_34 = arith.constant dense<0.000000e+00> : vector<4x128xf32>
    %45 = tpu.matmul %16, %6, %cst_34 {dimension_numbers = #tpu.dot_dimension_numbers<[1], [0], [0], [1], [0, 0, 1, 1], [], []>} : vector<4x32xf32>, vector<32x128xf32>, vector<4x128xf32> -> vector<4x128xf32>
    %46 = arith.addf %44, %45 : vector<4x128xf32>
    %47 = vector.broadcast %12 : vector<1x128xf32> to vector<4x128xf32>
    %48 = arith.addf %46, %47 : vector<4x128xf32>
    %49 = arith.negf %48 : vector<4x128xf32>
    %50 = math.exp %49 : vector<4x128xf32>
    %cst_35 = arith.constant 1.000000e+00 : f32
    %51 = vector.broadcast %cst_35 : f32 to vector<4x128xf32>
    %52 = arith.addf %51, %50 : vector<4x128xf32>
    %53 = arith.divf %51, %52 : vector<4x128xf32>
    %54 = math.tanh %48 : vector<4x128xf32>
    %55 = vector.extract_strided_slice %53 {offsets = [0, 0], sizes = [4, 32], strides = [1, 1]} : vector<4x128xf32> to vector<4x32xf32>
    %56 = vector.extract_strided_slice %53 {offsets = [0, 32], sizes = [4, 32], strides = [1, 1]} : vector<4x128xf32> to vector<4x32xf32>
    %57 = vector.extract_strided_slice %54 {offsets = [0, 64], sizes = [4, 32], strides = [1, 1]} : vector<4x128xf32> to vector<4x32xf32>
    %58 = vector.extract_strided_slice %53 {offsets = [0, 96], sizes = [4, 32], strides = [1, 1]} : vector<4x128xf32> to vector<4x32xf32>
    %59 = arith.mulf %56, %19 : vector<4x32xf32>
    %60 = arith.mulf %55, %57 : vector<4x32xf32>
    %61 = arith.addf %59, %60 : vector<4x32xf32>
    %62 = math.tanh %61 : vector<4x32xf32>
    %63 = arith.mulf %58, %62 : vector<4x32xf32>
    %cst_36 = arith.constant dense<0.000000e+00> : vector<4x128xf32>
    %64 = tpu.matmul %63, %2, %cst_36 {dimension_numbers = #tpu.dot_dimension_numbers<[1], [0], [0], [1], [0, 0, 1, 1], [], []>} : vector<4x32xf32>, vector<32x128xf32>, vector<4x128xf32> -> vector<4x128xf32>
    %cst_37 = arith.constant dense<0.000000e+00> : vector<4x128xf32>
    %65 = tpu.matmul %17, %8, %cst_37 {dimension_numbers = #tpu.dot_dimension_numbers<[1], [0], [0], [1], [0, 0, 1, 1], [], []>} : vector<4x32xf32>, vector<32x128xf32>, vector<4x128xf32> -> vector<4x128xf32>
    %66 = arith.addf %64, %65 : vector<4x128xf32>
    %67 = vector.broadcast %14 : vector<1x128xf32> to vector<4x128xf32>
    %68 = arith.addf %66, %67 : vector<4x128xf32>
    %69 = arith.negf %68 : vector<4x128xf32>
    %70 = math.exp %69 : vector<4x128xf32>
    %cst_38 = arith.constant 1.000000e+00 : f32
    %71 = vector.broadcast %cst_38 : f32 to vector<4x128xf32>
    %72 = arith.addf %71, %70 : vector<4x128xf32>
    %73 = arith.divf %71, %72 : vector<4x128xf32>
    %74 = math.tanh %68 : vector<4x128xf32>
    %75 = vector.extract_strided_slice %73 {offsets = [0, 0], sizes = [4, 32], strides = [1, 1]} : vector<4x128xf32> to vector<4x32xf32>
    %76 = vector.extract_strided_slice %73 {offsets = [0, 32], sizes = [4, 32], strides = [1, 1]} : vector<4x128xf32> to vector<4x32xf32>
    %77 = vector.extract_strided_slice %74 {offsets = [0, 64], sizes = [4, 32], strides = [1, 1]} : vector<4x128xf32> to vector<4x32xf32>
    %78 = vector.extract_strided_slice %73 {offsets = [0, 96], sizes = [4, 32], strides = [1, 1]} : vector<4x128xf32> to vector<4x32xf32>
    %79 = arith.mulf %76, %20 : vector<4x32xf32>
    %80 = arith.mulf %75, %77 : vector<4x32xf32>
    %81 = arith.addf %79, %80 : vector<4x32xf32>
    %82 = math.tanh %81 : vector<4x32xf32>
    %83 = arith.mulf %78, %82 : vector<4x32xf32>
    %84 = arith.addf %21, %83 : vector<4x32xf32>
    %85 = vector.extract_strided_slice %83 {offsets = [0, 0], sizes = [1, 32], strides = [1, 1]} : vector<4x32xf32> to vector<1x32xf32>
    %86 = vector.extract_strided_slice %83 {offsets = [1, 0], sizes = [1, 32], strides = [1, 1]} : vector<4x32xf32> to vector<1x32xf32>
    %87 = vector.extract_strided_slice %83 {offsets = [2, 0], sizes = [1, 32], strides = [1, 1]} : vector<4x32xf32> to vector<1x32xf32>
    %88 = vector.extract_strided_slice %83 {offsets = [3, 0], sizes = [1, 32], strides = [1, 1]} : vector<4x32xf32> to vector<1x32xf32>
    %89 = tpu.concatenate %85, %86, %87, %88 in 1 : vector<1x32xf32>, vector<1x32xf32>, vector<1x32xf32>, vector<1x32xf32> -> vector<1x128xf32>
    %c1_39 = arith.constant 1 : index
    %c0_40 = arith.constant 0 : index
    %c0_41 = arith.constant 0 : index
    %90 = vector.load %arg0[%c1_39, %c0_40, %c0_41] : memref<8x4x16xf32, #tpu.memory_space<vmem>>, vector<1x4x16xf32>
    %91 = vector.shape_cast %90 : vector<1x4x16xf32> to vector<4x16xf32>
    %cst_42 = arith.constant dense<0.000000e+00> : vector<4x128xf32>
    %92 = tpu.matmul %91, %0, %cst_42 {dimension_numbers = #tpu.dot_dimension_numbers<[1], [0], [0], [1], [0, 0, 1, 1], [], []>} : vector<4x16xf32>, vector<16x128xf32>, vector<4x128xf32> -> vector<4x128xf32>
    %cst_43 = arith.constant dense<0.000000e+00> : vector<4x128xf32>
    %93 = tpu.matmul %43, %4, %cst_43 {dimension_numbers = #tpu.dot_dimension_numbers<[1], [0], [0], [1], [0, 0, 1, 1], [], []>} : vector<4x32xf32>, vector<32x128xf32>, vector<4x128xf32> -> vector<4x128xf32>
    %94 = arith.addf %92, %93 : vector<4x128xf32>
    %95 = vector.broadcast %10 : vector<1x128xf32> to vector<4x128xf32>
    %96 = arith.addf %94, %95 : vector<4x128xf32>
    %97 = arith.negf %96 : vector<4x128xf32>
    %98 = math.exp %97 : vector<4x128xf32>
    %cst_44 = arith.constant 1.000000e+00 : f32
    %99 = vector.broadcast %cst_44 : f32 to vector<4x128xf32>
    %100 = arith.addf %99, %98 : vector<4x128xf32>
    %101 = arith.divf %99, %100 : vector<4x128xf32>
    %102 = math.tanh %96 : vector<4x128xf32>
    %103 = vector.extract_strided_slice %101 {offsets = [0, 0], sizes = [4, 32], strides = [1, 1]} : vector<4x128xf32> to vector<4x32xf32>
    %104 = vector.extract_strided_slice %101 {offsets = [0, 32], sizes = [4, 32], strides = [1, 1]} : vector<4x128xf32> to vector<4x32xf32>
    %105 = vector.extract_strided_slice %102 {offsets = [0, 64], sizes = [4, 32], strides = [1, 1]} : vector<4x128xf32> to vector<4x32xf32>
    %106 = vector.extract_strided_slice %101 {offsets = [0, 96], sizes = [4, 32], strides = [1, 1]} : vector<4x128xf32> to vector<4x32xf32>
    %107 = arith.mulf %104, %41 : vector<4x32xf32>
    %108 = arith.mulf %103, %105 : vector<4x32xf32>
    %109 = arith.addf %107, %108 : vector<4x32xf32>
    %110 = math.tanh %109 : vector<4x32xf32>
    %111 = arith.mulf %106, %110 : vector<4x32xf32>
    %cst_45 = arith.constant dense<0.000000e+00> : vector<4x128xf32>
    %112 = tpu.matmul %111, %1, %cst_45 {dimension_numbers = #tpu.dot_dimension_numbers<[1], [0], [0], [1], [0, 0, 1, 1], [], []>} : vector<4x32xf32>, vector<32x128xf32>, vector<4x128xf32> -> vector<4x128xf32>
    %cst_46 = arith.constant dense<0.000000e+00> : vector<4x128xf32>
    %113 = tpu.matmul %63, %6, %cst_46 {dimension_numbers = #tpu.dot_dimension_numbers<[1], [0], [0], [1], [0, 0, 1, 1], [], []>} : vector<4x32xf32>, vector<32x128xf32>, vector<4x128xf32> -> vector<4x128xf32>
    %114 = arith.addf %112, %113 : vector<4x128xf32>
    %115 = vector.broadcast %12 : vector<1x128xf32> to vector<4x128xf32>
    %116 = arith.addf %114, %115 : vector<4x128xf32>
    %117 = arith.negf %116 : vector<4x128xf32>
    %118 = math.exp %117 : vector<4x128xf32>
    %cst_47 = arith.constant 1.000000e+00 : f32
    %119 = vector.broadcast %cst_47 : f32 to vector<4x128xf32>
    %120 = arith.addf %119, %118 : vector<4x128xf32>
    %121 = arith.divf %119, %120 : vector<4x128xf32>
    %122 = math.tanh %116 : vector<4x128xf32>
    %123 = vector.extract_strided_slice %121 {offsets = [0, 0], sizes = [4, 32], strides = [1, 1]} : vector<4x128xf32> to vector<4x32xf32>
    %124 = vector.extract_strided_slice %121 {offsets = [0, 32], sizes = [4, 32], strides = [1, 1]} : vector<4x128xf32> to vector<4x32xf32>
    %125 = vector.extract_strided_slice %122 {offsets = [0, 64], sizes = [4, 32], strides = [1, 1]} : vector<4x128xf32> to vector<4x32xf32>
    %126 = vector.extract_strided_slice %121 {offsets = [0, 96], sizes = [4, 32], strides = [1, 1]} : vector<4x128xf32> to vector<4x32xf32>
    %127 = arith.mulf %124, %61 : vector<4x32xf32>
    %128 = arith.mulf %123, %125 : vector<4x32xf32>
    %129 = arith.addf %127, %128 : vector<4x32xf32>
    %130 = math.tanh %129 : vector<4x32xf32>
    %131 = arith.mulf %126, %130 : vector<4x32xf32>
    %cst_48 = arith.constant dense<0.000000e+00> : vector<4x128xf32>
    %132 = tpu.matmul %131, %2, %cst_48 {dimension_numbers = #tpu.dot_dimension_numbers<[1], [0], [0], [1], [0, 0, 1, 1], [], []>} : vector<4x32xf32>, vector<32x128xf32>, vector<4x128xf32> -> vector<4x128xf32>
    %cst_49 = arith.constant dense<0.000000e+00> : vector<4x128xf32>
    %133 = tpu.matmul %83, %8, %cst_49 {dimension_numbers = #tpu.dot_dimension_numbers<[1], [0], [0], [1], [0, 0, 1, 1], [], []>} : vector<4x32xf32>, vector<32x128xf32>, vector<4x128xf32> -> vector<4x128xf32>
    %134 = arith.addf %132, %133 : vector<4x128xf32>
    %135 = vector.broadcast %14 : vector<1x128xf32> to vector<4x128xf32>
    %136 = arith.addf %134, %135 : vector<4x128xf32>
    %137 = arith.negf %136 : vector<4x128xf32>
    %138 = math.exp %137 : vector<4x128xf32>
    %cst_50 = arith.constant 1.000000e+00 : f32
    %139 = vector.broadcast %cst_50 : f32 to vector<4x128xf32>
    %140 = arith.addf %139, %138 : vector<4x128xf32>
    %141 = arith.divf %139, %140 : vector<4x128xf32>
    %142 = math.tanh %136 : vector<4x128xf32>
    %143 = vector.extract_strided_slice %141 {offsets = [0, 0], sizes = [4, 32], strides = [1, 1]} : vector<4x128xf32> to vector<4x32xf32>
    %144 = vector.extract_strided_slice %141 {offsets = [0, 32], sizes = [4, 32], strides = [1, 1]} : vector<4x128xf32> to vector<4x32xf32>
    %145 = vector.extract_strided_slice %142 {offsets = [0, 64], sizes = [4, 32], strides = [1, 1]} : vector<4x128xf32> to vector<4x32xf32>
    %146 = vector.extract_strided_slice %141 {offsets = [0, 96], sizes = [4, 32], strides = [1, 1]} : vector<4x128xf32> to vector<4x32xf32>
    %147 = arith.mulf %144, %81 : vector<4x32xf32>
    %148 = arith.mulf %143, %145 : vector<4x32xf32>
    %149 = arith.addf %147, %148 : vector<4x32xf32>
    %150 = math.tanh %149 : vector<4x32xf32>
    %151 = arith.mulf %146, %150 : vector<4x32xf32>
    %152 = arith.addf %84, %151 : vector<4x32xf32>
    %153 = vector.extract_strided_slice %151 {offsets = [0, 0], sizes = [1, 32], strides = [1, 1]} : vector<4x32xf32> to vector<1x32xf32>
    %154 = vector.extract_strided_slice %151 {offsets = [1, 0], sizes = [1, 32], strides = [1, 1]} : vector<4x32xf32> to vector<1x32xf32>
    %155 = vector.extract_strided_slice %151 {offsets = [2, 0], sizes = [1, 32], strides = [1, 1]} : vector<4x32xf32> to vector<1x32xf32>
    %156 = vector.extract_strided_slice %151 {offsets = [3, 0], sizes = [1, 32], strides = [1, 1]} : vector<4x32xf32> to vector<1x32xf32>
    %157 = tpu.concatenate %153, %154, %155, %156 in 1 : vector<1x32xf32>, vector<1x32xf32>, vector<1x32xf32>, vector<1x32xf32> -> vector<1x128xf32>
    %c2_51 = arith.constant 2 : index
    %c0_52 = arith.constant 0 : index
    %c0_53 = arith.constant 0 : index
    %158 = vector.load %arg0[%c2_51, %c0_52, %c0_53] : memref<8x4x16xf32, #tpu.memory_space<vmem>>, vector<1x4x16xf32>
    %159 = vector.shape_cast %158 : vector<1x4x16xf32> to vector<4x16xf32>
    %cst_54 = arith.constant dense<0.000000e+00> : vector<4x128xf32>
    %160 = tpu.matmul %159, %0, %cst_54 {dimension_numbers = #tpu.dot_dimension_numbers<[1], [0], [0], [1], [0, 0, 1, 1], [], []>} : vector<4x16xf32>, vector<16x128xf32>, vector<4x128xf32> -> vector<4x128xf32>
    %cst_55 = arith.constant dense<0.000000e+00> : vector<4x128xf32>
    %161 = tpu.matmul %111, %4, %cst_55 {dimension_numbers = #tpu.dot_dimension_numbers<[1], [0], [0], [1], [0, 0, 1, 1], [], []>} : vector<4x32xf32>, vector<32x128xf32>, vector<4x128xf32> -> vector<4x128xf32>
    %162 = arith.addf %160, %161 : vector<4x128xf32>
    %163 = vector.broadcast %10 : vector<1x128xf32> to vector<4x128xf32>
    %164 = arith.addf %162, %163 : vector<4x128xf32>
    %165 = arith.negf %164 : vector<4x128xf32>
    %166 = math.exp %165 : vector<4x128xf32>
    %cst_56 = arith.constant 1.000000e+00 : f32
    %167 = vector.broadcast %cst_56 : f32 to vector<4x128xf32>
    %168 = arith.addf %167, %166 : vector<4x128xf32>
    %169 = arith.divf %167, %168 : vector<4x128xf32>
    %170 = math.tanh %164 : vector<4x128xf32>
    %171 = vector.extract_strided_slice %169 {offsets = [0, 0], sizes = [4, 32], strides = [1, 1]} : vector<4x128xf32> to vector<4x32xf32>
    %172 = vector.extract_strided_slice %169 {offsets = [0, 32], sizes = [4, 32], strides = [1, 1]} : vector<4x128xf32> to vector<4x32xf32>
    %173 = vector.extract_strided_slice %170 {offsets = [0, 64], sizes = [4, 32], strides = [1, 1]} : vector<4x128xf32> to vector<4x32xf32>
    %174 = vector.extract_strided_slice %169 {offsets = [0, 96], sizes = [4, 32], strides = [1, 1]} : vector<4x128xf32> to vector<4x32xf32>
    %175 = arith.mulf %172, %109 : vector<4x32xf32>
    %176 = arith.mulf %171, %173 : vector<4x32xf32>
    %177 = arith.addf %175, %176 : vector<4x32xf32>
    %178 = math.tanh %177 : vector<4x32xf32>
    %179 = arith.mulf %174, %178 : vector<4x32xf32>
    %cst_57 = arith.constant dense<0.000000e+00> : vector<4x128xf32>
    %180 = tpu.matmul %179, %1, %cst_57 {dimension_numbers = #tpu.dot_dimension_numbers<[1], [0], [0], [1], [0, 0, 1, 1], [], []>} : vector<4x32xf32>, vector<32x128xf32>, vector<4x128xf32> -> vector<4x128xf32>
    %cst_58 = arith.constant dense<0.000000e+00> : vector<4x128xf32>
    %181 = tpu.matmul %131, %6, %cst_58 {dimension_numbers = #tpu.dot_dimension_numbers<[1], [0], [0], [1], [0, 0, 1, 1], [], []>} : vector<4x32xf32>, vector<32x128xf32>, vector<4x128xf32> -> vector<4x128xf32>
    %182 = arith.addf %180, %181 : vector<4x128xf32>
    %183 = vector.broadcast %12 : vector<1x128xf32> to vector<4x128xf32>
    %184 = arith.addf %182, %183 : vector<4x128xf32>
    %185 = arith.negf %184 : vector<4x128xf32>
    %186 = math.exp %185 : vector<4x128xf32>
    %cst_59 = arith.constant 1.000000e+00 : f32
    %187 = vector.broadcast %cst_59 : f32 to vector<4x128xf32>
    %188 = arith.addf %187, %186 : vector<4x128xf32>
    %189 = arith.divf %187, %188 : vector<4x128xf32>
    %190 = math.tanh %184 : vector<4x128xf32>
    %191 = vector.extract_strided_slice %189 {offsets = [0, 0], sizes = [4, 32], strides = [1, 1]} : vector<4x128xf32> to vector<4x32xf32>
    %192 = vector.extract_strided_slice %189 {offsets = [0, 32], sizes = [4, 32], strides = [1, 1]} : vector<4x128xf32> to vector<4x32xf32>
    %193 = vector.extract_strided_slice %190 {offsets = [0, 64], sizes = [4, 32], strides = [1, 1]} : vector<4x128xf32> to vector<4x32xf32>
    %194 = vector.extract_strided_slice %189 {offsets = [0, 96], sizes = [4, 32], strides = [1, 1]} : vector<4x128xf32> to vector<4x32xf32>
    %195 = arith.mulf %192, %129 : vector<4x32xf32>
    %196 = arith.mulf %191, %193 : vector<4x32xf32>
    %197 = arith.addf %195, %196 : vector<4x32xf32>
    %198 = math.tanh %197 : vector<4x32xf32>
    %199 = arith.mulf %194, %198 : vector<4x32xf32>
    %cst_60 = arith.constant dense<0.000000e+00> : vector<4x128xf32>
    %200 = tpu.matmul %199, %2, %cst_60 {dimension_numbers = #tpu.dot_dimension_numbers<[1], [0], [0], [1], [0, 0, 1, 1], [], []>} : vector<4x32xf32>, vector<32x128xf32>, vector<4x128xf32> -> vector<4x128xf32>
    %cst_61 = arith.constant dense<0.000000e+00> : vector<4x128xf32>
    %201 = tpu.matmul %151, %8, %cst_61 {dimension_numbers = #tpu.dot_dimension_numbers<[1], [0], [0], [1], [0, 0, 1, 1], [], []>} : vector<4x32xf32>, vector<32x128xf32>, vector<4x128xf32> -> vector<4x128xf32>
    %202 = arith.addf %200, %201 : vector<4x128xf32>
    %203 = vector.broadcast %14 : vector<1x128xf32> to vector<4x128xf32>
    %204 = arith.addf %202, %203 : vector<4x128xf32>
    %205 = arith.negf %204 : vector<4x128xf32>
    %206 = math.exp %205 : vector<4x128xf32>
    %cst_62 = arith.constant 1.000000e+00 : f32
    %207 = vector.broadcast %cst_62 : f32 to vector<4x128xf32>
    %208 = arith.addf %207, %206 : vector<4x128xf32>
    %209 = arith.divf %207, %208 : vector<4x128xf32>
    %210 = math.tanh %204 : vector<4x128xf32>
    %211 = vector.extract_strided_slice %209 {offsets = [0, 0], sizes = [4, 32], strides = [1, 1]} : vector<4x128xf32> to vector<4x32xf32>
    %212 = vector.extract_strided_slice %209 {offsets = [0, 32], sizes = [4, 32], strides = [1, 1]} : vector<4x128xf32> to vector<4x32xf32>
    %213 = vector.extract_strided_slice %210 {offsets = [0, 64], sizes = [4, 32], strides = [1, 1]} : vector<4x128xf32> to vector<4x32xf32>
    %214 = vector.extract_strided_slice %209 {offsets = [0, 96], sizes = [4, 32], strides = [1, 1]} : vector<4x128xf32> to vector<4x32xf32>
    %215 = arith.mulf %212, %149 : vector<4x32xf32>
    %216 = arith.mulf %211, %213 : vector<4x32xf32>
    %217 = arith.addf %215, %216 : vector<4x32xf32>
    %218 = math.tanh %217 : vector<4x32xf32>
    %219 = arith.mulf %214, %218 : vector<4x32xf32>
    %220 = arith.addf %152, %219 : vector<4x32xf32>
    %221 = vector.extract_strided_slice %219 {offsets = [0, 0], sizes = [1, 32], strides = [1, 1]} : vector<4x32xf32> to vector<1x32xf32>
    %222 = vector.extract_strided_slice %219 {offsets = [1, 0], sizes = [1, 32], strides = [1, 1]} : vector<4x32xf32> to vector<1x32xf32>
    %223 = vector.extract_strided_slice %219 {offsets = [2, 0], sizes = [1, 32], strides = [1, 1]} : vector<4x32xf32> to vector<1x32xf32>
    %224 = vector.extract_strided_slice %219 {offsets = [3, 0], sizes = [1, 32], strides = [1, 1]} : vector<4x32xf32> to vector<1x32xf32>
    %225 = tpu.concatenate %221, %222, %223, %224 in 1 : vector<1x32xf32>, vector<1x32xf32>, vector<1x32xf32>, vector<1x32xf32> -> vector<1x128xf32>
    %c3 = arith.constant 3 : index
    %c0_63 = arith.constant 0 : index
    %c0_64 = arith.constant 0 : index
    %226 = vector.load %arg0[%c3, %c0_63, %c0_64] : memref<8x4x16xf32, #tpu.memory_space<vmem>>, vector<1x4x16xf32>
    %227 = vector.shape_cast %226 : vector<1x4x16xf32> to vector<4x16xf32>
    %cst_65 = arith.constant dense<0.000000e+00> : vector<4x128xf32>
    %228 = tpu.matmul %227, %0, %cst_65 {dimension_numbers = #tpu.dot_dimension_numbers<[1], [0], [0], [1], [0, 0, 1, 1], [], []>} : vector<4x16xf32>, vector<16x128xf32>, vector<4x128xf32> -> vector<4x128xf32>
    %cst_66 = arith.constant dense<0.000000e+00> : vector<4x128xf32>
    %229 = tpu.matmul %179, %4, %cst_66 {dimension_numbers = #tpu.dot_dimension_numbers<[1], [0], [0], [1], [0, 0, 1, 1], [], []>} : vector<4x32xf32>, vector<32x128xf32>, vector<4x128xf32> -> vector<4x128xf32>
    %230 = arith.addf %228, %229 : vector<4x128xf32>
    %231 = vector.broadcast %10 : vector<1x128xf32> to vector<4x128xf32>
    %232 = arith.addf %230, %231 : vector<4x128xf32>
    %233 = arith.negf %232 : vector<4x128xf32>
    %234 = math.exp %233 : vector<4x128xf32>
    %cst_67 = arith.constant 1.000000e+00 : f32
    %235 = vector.broadcast %cst_67 : f32 to vector<4x128xf32>
    %236 = arith.addf %235, %234 : vector<4x128xf32>
    %237 = arith.divf %235, %236 : vector<4x128xf32>
    %238 = math.tanh %232 : vector<4x128xf32>
    %239 = vector.extract_strided_slice %237 {offsets = [0, 0], sizes = [4, 32], strides = [1, 1]} : vector<4x128xf32> to vector<4x32xf32>
    %240 = vector.extract_strided_slice %237 {offsets = [0, 32], sizes = [4, 32], strides = [1, 1]} : vector<4x128xf32> to vector<4x32xf32>
    %241 = vector.extract_strided_slice %238 {offsets = [0, 64], sizes = [4, 32], strides = [1, 1]} : vector<4x128xf32> to vector<4x32xf32>
    %242 = vector.extract_strided_slice %237 {offsets = [0, 96], sizes = [4, 32], strides = [1, 1]} : vector<4x128xf32> to vector<4x32xf32>
    %243 = arith.mulf %240, %177 : vector<4x32xf32>
    %244 = arith.mulf %239, %241 : vector<4x32xf32>
    %245 = arith.addf %243, %244 : vector<4x32xf32>
    %246 = math.tanh %245 : vector<4x32xf32>
    %247 = arith.mulf %242, %246 : vector<4x32xf32>
    %cst_68 = arith.constant dense<0.000000e+00> : vector<4x128xf32>
    %248 = tpu.matmul %247, %1, %cst_68 {dimension_numbers = #tpu.dot_dimension_numbers<[1], [0], [0], [1], [0, 0, 1, 1], [], []>} : vector<4x32xf32>, vector<32x128xf32>, vector<4x128xf32> -> vector<4x128xf32>
    %cst_69 = arith.constant dense<0.000000e+00> : vector<4x128xf32>
    %249 = tpu.matmul %199, %6, %cst_69 {dimension_numbers = #tpu.dot_dimension_numbers<[1], [0], [0], [1], [0, 0, 1, 1], [], []>} : vector<4x32xf32>, vector<32x128xf32>, vector<4x128xf32> -> vector<4x128xf32>
    %250 = arith.addf %248, %249 : vector<4x128xf32>
    %251 = vector.broadcast %12 : vector<1x128xf32> to vector<4x128xf32>
    %252 = arith.addf %250, %251 : vector<4x128xf32>
    %253 = arith.negf %252 : vector<4x128xf32>
    %254 = math.exp %253 : vector<4x128xf32>
    %cst_70 = arith.constant 1.000000e+00 : f32
    %255 = vector.broadcast %cst_70 : f32 to vector<4x128xf32>
    %256 = arith.addf %255, %254 : vector<4x128xf32>
    %257 = arith.divf %255, %256 : vector<4x128xf32>
    %258 = math.tanh %252 : vector<4x128xf32>
    %259 = vector.extract_strided_slice %257 {offsets = [0, 0], sizes = [4, 32], strides = [1, 1]} : vector<4x128xf32> to vector<4x32xf32>
    %260 = vector.extract_strided_slice %257 {offsets = [0, 32], sizes = [4, 32], strides = [1, 1]} : vector<4x128xf32> to vector<4x32xf32>
    %261 = vector.extract_strided_slice %258 {offsets = [0, 64], sizes = [4, 32], strides = [1, 1]} : vector<4x128xf32> to vector<4x32xf32>
    %262 = vector.extract_strided_slice %257 {offsets = [0, 96], sizes = [4, 32], strides = [1, 1]} : vector<4x128xf32> to vector<4x32xf32>
    %263 = arith.mulf %260, %197 : vector<4x32xf32>
    %264 = arith.mulf %259, %261 : vector<4x32xf32>
    %265 = arith.addf %263, %264 : vector<4x32xf32>
    %266 = math.tanh %265 : vector<4x32xf32>
    %267 = arith.mulf %262, %266 : vector<4x32xf32>
    %cst_71 = arith.constant dense<0.000000e+00> : vector<4x128xf32>
    %268 = tpu.matmul %267, %2, %cst_71 {dimension_numbers = #tpu.dot_dimension_numbers<[1], [0], [0], [1], [0, 0, 1, 1], [], []>} : vector<4x32xf32>, vector<32x128xf32>, vector<4x128xf32> -> vector<4x128xf32>
    %cst_72 = arith.constant dense<0.000000e+00> : vector<4x128xf32>
    %269 = tpu.matmul %219, %8, %cst_72 {dimension_numbers = #tpu.dot_dimension_numbers<[1], [0], [0], [1], [0, 0, 1, 1], [], []>} : vector<4x32xf32>, vector<32x128xf32>, vector<4x128xf32> -> vector<4x128xf32>
    %270 = arith.addf %268, %269 : vector<4x128xf32>
    %271 = vector.broadcast %14 : vector<1x128xf32> to vector<4x128xf32>
    %272 = arith.addf %270, %271 : vector<4x128xf32>
    %273 = arith.negf %272 : vector<4x128xf32>
    %274 = math.exp %273 : vector<4x128xf32>
    %cst_73 = arith.constant 1.000000e+00 : f32
    %275 = vector.broadcast %cst_73 : f32 to vector<4x128xf32>
    %276 = arith.addf %275, %274 : vector<4x128xf32>
    %277 = arith.divf %275, %276 : vector<4x128xf32>
    %278 = math.tanh %272 : vector<4x128xf32>
    %279 = vector.extract_strided_slice %277 {offsets = [0, 0], sizes = [4, 32], strides = [1, 1]} : vector<4x128xf32> to vector<4x32xf32>
    %280 = vector.extract_strided_slice %277 {offsets = [0, 32], sizes = [4, 32], strides = [1, 1]} : vector<4x128xf32> to vector<4x32xf32>
    %281 = vector.extract_strided_slice %278 {offsets = [0, 64], sizes = [4, 32], strides = [1, 1]} : vector<4x128xf32> to vector<4x32xf32>
    %282 = vector.extract_strided_slice %277 {offsets = [0, 96], sizes = [4, 32], strides = [1, 1]} : vector<4x128xf32> to vector<4x32xf32>
    %283 = arith.mulf %280, %217 : vector<4x32xf32>
    %284 = arith.mulf %279, %281 : vector<4x32xf32>
    %285 = arith.addf %283, %284 : vector<4x32xf32>
    %286 = math.tanh %285 : vector<4x32xf32>
    %287 = arith.mulf %282, %286 : vector<4x32xf32>
    %288 = arith.addf %220, %287 : vector<4x32xf32>
    %289 = vector.extract_strided_slice %287 {offsets = [0, 0], sizes = [1, 32], strides = [1, 1]} : vector<4x32xf32> to vector<1x32xf32>
    %290 = vector.extract_strided_slice %287 {offsets = [1, 0], sizes = [1, 32], strides = [1, 1]} : vector<4x32xf32> to vector<1x32xf32>
    %291 = vector.extract_strided_slice %287 {offsets = [2, 0], sizes = [1, 32], strides = [1, 1]} : vector<4x32xf32> to vector<1x32xf32>
    %292 = vector.extract_strided_slice %287 {offsets = [3, 0], sizes = [1, 32], strides = [1, 1]} : vector<4x32xf32> to vector<1x32xf32>
    %293 = tpu.concatenate %289, %290, %291, %292 in 1 : vector<1x32xf32>, vector<1x32xf32>, vector<1x32xf32>, vector<1x32xf32> -> vector<1x128xf32>
    %c4 = arith.constant 4 : index
    %c0_74 = arith.constant 0 : index
    %c0_75 = arith.constant 0 : index
    %294 = vector.load %arg0[%c4, %c0_74, %c0_75] : memref<8x4x16xf32, #tpu.memory_space<vmem>>, vector<1x4x16xf32>
    %295 = vector.shape_cast %294 : vector<1x4x16xf32> to vector<4x16xf32>
    %cst_76 = arith.constant dense<0.000000e+00> : vector<4x128xf32>
    %296 = tpu.matmul %295, %0, %cst_76 {dimension_numbers = #tpu.dot_dimension_numbers<[1], [0], [0], [1], [0, 0, 1, 1], [], []>} : vector<4x16xf32>, vector<16x128xf32>, vector<4x128xf32> -> vector<4x128xf32>
    %cst_77 = arith.constant dense<0.000000e+00> : vector<4x128xf32>
    %297 = tpu.matmul %247, %4, %cst_77 {dimension_numbers = #tpu.dot_dimension_numbers<[1], [0], [0], [1], [0, 0, 1, 1], [], []>} : vector<4x32xf32>, vector<32x128xf32>, vector<4x128xf32> -> vector<4x128xf32>
    %298 = arith.addf %296, %297 : vector<4x128xf32>
    %299 = vector.broadcast %10 : vector<1x128xf32> to vector<4x128xf32>
    %300 = arith.addf %298, %299 : vector<4x128xf32>
    %301 = arith.negf %300 : vector<4x128xf32>
    %302 = math.exp %301 : vector<4x128xf32>
    %cst_78 = arith.constant 1.000000e+00 : f32
    %303 = vector.broadcast %cst_78 : f32 to vector<4x128xf32>
    %304 = arith.addf %303, %302 : vector<4x128xf32>
    %305 = arith.divf %303, %304 : vector<4x128xf32>
    %306 = math.tanh %300 : vector<4x128xf32>
    %307 = vector.extract_strided_slice %305 {offsets = [0, 0], sizes = [4, 32], strides = [1, 1]} : vector<4x128xf32> to vector<4x32xf32>
    %308 = vector.extract_strided_slice %305 {offsets = [0, 32], sizes = [4, 32], strides = [1, 1]} : vector<4x128xf32> to vector<4x32xf32>
    %309 = vector.extract_strided_slice %306 {offsets = [0, 64], sizes = [4, 32], strides = [1, 1]} : vector<4x128xf32> to vector<4x32xf32>
    %310 = vector.extract_strided_slice %305 {offsets = [0, 96], sizes = [4, 32], strides = [1, 1]} : vector<4x128xf32> to vector<4x32xf32>
    %311 = arith.mulf %308, %245 : vector<4x32xf32>
    %312 = arith.mulf %307, %309 : vector<4x32xf32>
    %313 = arith.addf %311, %312 : vector<4x32xf32>
    %314 = math.tanh %313 : vector<4x32xf32>
    %315 = arith.mulf %310, %314 : vector<4x32xf32>
    %cst_79 = arith.constant dense<0.000000e+00> : vector<4x128xf32>
    %316 = tpu.matmul %315, %1, %cst_79 {dimension_numbers = #tpu.dot_dimension_numbers<[1], [0], [0], [1], [0, 0, 1, 1], [], []>} : vector<4x32xf32>, vector<32x128xf32>, vector<4x128xf32> -> vector<4x128xf32>
    %cst_80 = arith.constant dense<0.000000e+00> : vector<4x128xf32>
    %317 = tpu.matmul %267, %6, %cst_80 {dimension_numbers = #tpu.dot_dimension_numbers<[1], [0], [0], [1], [0, 0, 1, 1], [], []>} : vector<4x32xf32>, vector<32x128xf32>, vector<4x128xf32> -> vector<4x128xf32>
    %318 = arith.addf %316, %317 : vector<4x128xf32>
    %319 = vector.broadcast %12 : vector<1x128xf32> to vector<4x128xf32>
    %320 = arith.addf %318, %319 : vector<4x128xf32>
    %321 = arith.negf %320 : vector<4x128xf32>
    %322 = math.exp %321 : vector<4x128xf32>
    %cst_81 = arith.constant 1.000000e+00 : f32
    %323 = vector.broadcast %cst_81 : f32 to vector<4x128xf32>
    %324 = arith.addf %323, %322 : vector<4x128xf32>
    %325 = arith.divf %323, %324 : vector<4x128xf32>
    %326 = math.tanh %320 : vector<4x128xf32>
    %327 = vector.extract_strided_slice %325 {offsets = [0, 0], sizes = [4, 32], strides = [1, 1]} : vector<4x128xf32> to vector<4x32xf32>
    %328 = vector.extract_strided_slice %325 {offsets = [0, 32], sizes = [4, 32], strides = [1, 1]} : vector<4x128xf32> to vector<4x32xf32>
    %329 = vector.extract_strided_slice %326 {offsets = [0, 64], sizes = [4, 32], strides = [1, 1]} : vector<4x128xf32> to vector<4x32xf32>
    %330 = vector.extract_strided_slice %325 {offsets = [0, 96], sizes = [4, 32], strides = [1, 1]} : vector<4x128xf32> to vector<4x32xf32>
    %331 = arith.mulf %328, %265 : vector<4x32xf32>
    %332 = arith.mulf %327, %329 : vector<4x32xf32>
    %333 = arith.addf %331, %332 : vector<4x32xf32>
    %334 = math.tanh %333 : vector<4x32xf32>
    %335 = arith.mulf %330, %334 : vector<4x32xf32>
    %cst_82 = arith.constant dense<0.000000e+00> : vector<4x128xf32>
    %336 = tpu.matmul %335, %2, %cst_82 {dimension_numbers = #tpu.dot_dimension_numbers<[1], [0], [0], [1], [0, 0, 1, 1], [], []>} : vector<4x32xf32>, vector<32x128xf32>, vector<4x128xf32> -> vector<4x128xf32>
    %cst_83 = arith.constant dense<0.000000e+00> : vector<4x128xf32>
    %337 = tpu.matmul %287, %8, %cst_83 {dimension_numbers = #tpu.dot_dimension_numbers<[1], [0], [0], [1], [0, 0, 1, 1], [], []>} : vector<4x32xf32>, vector<32x128xf32>, vector<4x128xf32> -> vector<4x128xf32>
    %338 = arith.addf %336, %337 : vector<4x128xf32>
    %339 = vector.broadcast %14 : vector<1x128xf32> to vector<4x128xf32>
    %340 = arith.addf %338, %339 : vector<4x128xf32>
    %341 = arith.negf %340 : vector<4x128xf32>
    %342 = math.exp %341 : vector<4x128xf32>
    %cst_84 = arith.constant 1.000000e+00 : f32
    %343 = vector.broadcast %cst_84 : f32 to vector<4x128xf32>
    %344 = arith.addf %343, %342 : vector<4x128xf32>
    %345 = arith.divf %343, %344 : vector<4x128xf32>
    %346 = math.tanh %340 : vector<4x128xf32>
    %347 = vector.extract_strided_slice %345 {offsets = [0, 0], sizes = [4, 32], strides = [1, 1]} : vector<4x128xf32> to vector<4x32xf32>
    %348 = vector.extract_strided_slice %345 {offsets = [0, 32], sizes = [4, 32], strides = [1, 1]} : vector<4x128xf32> to vector<4x32xf32>
    %349 = vector.extract_strided_slice %346 {offsets = [0, 64], sizes = [4, 32], strides = [1, 1]} : vector<4x128xf32> to vector<4x32xf32>
    %350 = vector.extract_strided_slice %345 {offsets = [0, 96], sizes = [4, 32], strides = [1, 1]} : vector<4x128xf32> to vector<4x32xf32>
    %351 = arith.mulf %348, %285 : vector<4x32xf32>
    %352 = arith.mulf %347, %349 : vector<4x32xf32>
    %353 = arith.addf %351, %352 : vector<4x32xf32>
    %354 = math.tanh %353 : vector<4x32xf32>
    %355 = arith.mulf %350, %354 : vector<4x32xf32>
    %356 = arith.addf %288, %355 : vector<4x32xf32>
    %357 = vector.extract_strided_slice %355 {offsets = [0, 0], sizes = [1, 32], strides = [1, 1]} : vector<4x32xf32> to vector<1x32xf32>
    %358 = vector.extract_strided_slice %355 {offsets = [1, 0], sizes = [1, 32], strides = [1, 1]} : vector<4x32xf32> to vector<1x32xf32>
    %359 = vector.extract_strided_slice %355 {offsets = [2, 0], sizes = [1, 32], strides = [1, 1]} : vector<4x32xf32> to vector<1x32xf32>
    %360 = vector.extract_strided_slice %355 {offsets = [3, 0], sizes = [1, 32], strides = [1, 1]} : vector<4x32xf32> to vector<1x32xf32>
    %361 = tpu.concatenate %357, %358, %359, %360 in 1 : vector<1x32xf32>, vector<1x32xf32>, vector<1x32xf32>, vector<1x32xf32> -> vector<1x128xf32>
    %c5 = arith.constant 5 : index
    %c0_85 = arith.constant 0 : index
    %c0_86 = arith.constant 0 : index
    %362 = vector.load %arg0[%c5, %c0_85, %c0_86] : memref<8x4x16xf32, #tpu.memory_space<vmem>>, vector<1x4x16xf32>
    %363 = vector.shape_cast %362 : vector<1x4x16xf32> to vector<4x16xf32>
    %cst_87 = arith.constant dense<0.000000e+00> : vector<4x128xf32>
    %364 = tpu.matmul %363, %0, %cst_87 {dimension_numbers = #tpu.dot_dimension_numbers<[1], [0], [0], [1], [0, 0, 1, 1], [], []>} : vector<4x16xf32>, vector<16x128xf32>, vector<4x128xf32> -> vector<4x128xf32>
    %cst_88 = arith.constant dense<0.000000e+00> : vector<4x128xf32>
    %365 = tpu.matmul %315, %4, %cst_88 {dimension_numbers = #tpu.dot_dimension_numbers<[1], [0], [0], [1], [0, 0, 1, 1], [], []>} : vector<4x32xf32>, vector<32x128xf32>, vector<4x128xf32> -> vector<4x128xf32>
    %366 = arith.addf %364, %365 : vector<4x128xf32>
    %367 = vector.broadcast %10 : vector<1x128xf32> to vector<4x128xf32>
    %368 = arith.addf %366, %367 : vector<4x128xf32>
    %369 = arith.negf %368 : vector<4x128xf32>
    %370 = math.exp %369 : vector<4x128xf32>
    %cst_89 = arith.constant 1.000000e+00 : f32
    %371 = vector.broadcast %cst_89 : f32 to vector<4x128xf32>
    %372 = arith.addf %371, %370 : vector<4x128xf32>
    %373 = arith.divf %371, %372 : vector<4x128xf32>
    %374 = math.tanh %368 : vector<4x128xf32>
    %375 = vector.extract_strided_slice %373 {offsets = [0, 0], sizes = [4, 32], strides = [1, 1]} : vector<4x128xf32> to vector<4x32xf32>
    %376 = vector.extract_strided_slice %373 {offsets = [0, 32], sizes = [4, 32], strides = [1, 1]} : vector<4x128xf32> to vector<4x32xf32>
    %377 = vector.extract_strided_slice %374 {offsets = [0, 64], sizes = [4, 32], strides = [1, 1]} : vector<4x128xf32> to vector<4x32xf32>
    %378 = vector.extract_strided_slice %373 {offsets = [0, 96], sizes = [4, 32], strides = [1, 1]} : vector<4x128xf32> to vector<4x32xf32>
    %379 = arith.mulf %376, %313 : vector<4x32xf32>
    %380 = arith.mulf %375, %377 : vector<4x32xf32>
    %381 = arith.addf %379, %380 : vector<4x32xf32>
    %382 = math.tanh %381 : vector<4x32xf32>
    %383 = arith.mulf %378, %382 : vector<4x32xf32>
    %cst_90 = arith.constant dense<0.000000e+00> : vector<4x128xf32>
    %384 = tpu.matmul %383, %1, %cst_90 {dimension_numbers = #tpu.dot_dimension_numbers<[1], [0], [0], [1], [0, 0, 1, 1], [], []>} : vector<4x32xf32>, vector<32x128xf32>, vector<4x128xf32> -> vector<4x128xf32>
    %cst_91 = arith.constant dense<0.000000e+00> : vector<4x128xf32>
    %385 = tpu.matmul %335, %6, %cst_91 {dimension_numbers = #tpu.dot_dimension_numbers<[1], [0], [0], [1], [0, 0, 1, 1], [], []>} : vector<4x32xf32>, vector<32x128xf32>, vector<4x128xf32> -> vector<4x128xf32>
    %386 = arith.addf %384, %385 : vector<4x128xf32>
    %387 = vector.broadcast %12 : vector<1x128xf32> to vector<4x128xf32>
    %388 = arith.addf %386, %387 : vector<4x128xf32>
    %389 = arith.negf %388 : vector<4x128xf32>
    %390 = math.exp %389 : vector<4x128xf32>
    %cst_92 = arith.constant 1.000000e+00 : f32
    %391 = vector.broadcast %cst_92 : f32 to vector<4x128xf32>
    %392 = arith.addf %391, %390 : vector<4x128xf32>
    %393 = arith.divf %391, %392 : vector<4x128xf32>
    %394 = math.tanh %388 : vector<4x128xf32>
    %395 = vector.extract_strided_slice %393 {offsets = [0, 0], sizes = [4, 32], strides = [1, 1]} : vector<4x128xf32> to vector<4x32xf32>
    %396 = vector.extract_strided_slice %393 {offsets = [0, 32], sizes = [4, 32], strides = [1, 1]} : vector<4x128xf32> to vector<4x32xf32>
    %397 = vector.extract_strided_slice %394 {offsets = [0, 64], sizes = [4, 32], strides = [1, 1]} : vector<4x128xf32> to vector<4x32xf32>
    %398 = vector.extract_strided_slice %393 {offsets = [0, 96], sizes = [4, 32], strides = [1, 1]} : vector<4x128xf32> to vector<4x32xf32>
    %399 = arith.mulf %396, %333 : vector<4x32xf32>
    %400 = arith.mulf %395, %397 : vector<4x32xf32>
    %401 = arith.addf %399, %400 : vector<4x32xf32>
    %402 = math.tanh %401 : vector<4x32xf32>
    %403 = arith.mulf %398, %402 : vector<4x32xf32>
    %cst_93 = arith.constant dense<0.000000e+00> : vector<4x128xf32>
    %404 = tpu.matmul %403, %2, %cst_93 {dimension_numbers = #tpu.dot_dimension_numbers<[1], [0], [0], [1], [0, 0, 1, 1], [], []>} : vector<4x32xf32>, vector<32x128xf32>, vector<4x128xf32> -> vector<4x128xf32>
    %cst_94 = arith.constant dense<0.000000e+00> : vector<4x128xf32>
    %405 = tpu.matmul %355, %8, %cst_94 {dimension_numbers = #tpu.dot_dimension_numbers<[1], [0], [0], [1], [0, 0, 1, 1], [], []>} : vector<4x32xf32>, vector<32x128xf32>, vector<4x128xf32> -> vector<4x128xf32>
    %406 = arith.addf %404, %405 : vector<4x128xf32>
    %407 = vector.broadcast %14 : vector<1x128xf32> to vector<4x128xf32>
    %408 = arith.addf %406, %407 : vector<4x128xf32>
    %409 = arith.negf %408 : vector<4x128xf32>
    %410 = math.exp %409 : vector<4x128xf32>
    %cst_95 = arith.constant 1.000000e+00 : f32
    %411 = vector.broadcast %cst_95 : f32 to vector<4x128xf32>
    %412 = arith.addf %411, %410 : vector<4x128xf32>
    %413 = arith.divf %411, %412 : vector<4x128xf32>
    %414 = math.tanh %408 : vector<4x128xf32>
    %415 = vector.extract_strided_slice %413 {offsets = [0, 0], sizes = [4, 32], strides = [1, 1]} : vector<4x128xf32> to vector<4x32xf32>
    %416 = vector.extract_strided_slice %413 {offsets = [0, 32], sizes = [4, 32], strides = [1, 1]} : vector<4x128xf32> to vector<4x32xf32>
    %417 = vector.extract_strided_slice %414 {offsets = [0, 64], sizes = [4, 32], strides = [1, 1]} : vector<4x128xf32> to vector<4x32xf32>
    %418 = vector.extract_strided_slice %413 {offsets = [0, 96], sizes = [4, 32], strides = [1, 1]} : vector<4x128xf32> to vector<4x32xf32>
    %419 = arith.mulf %416, %353 : vector<4x32xf32>
    %420 = arith.mulf %415, %417 : vector<4x32xf32>
    %421 = arith.addf %419, %420 : vector<4x32xf32>
    %422 = math.tanh %421 : vector<4x32xf32>
    %423 = arith.mulf %418, %422 : vector<4x32xf32>
    %424 = arith.addf %356, %423 : vector<4x32xf32>
    %425 = vector.extract_strided_slice %423 {offsets = [0, 0], sizes = [1, 32], strides = [1, 1]} : vector<4x32xf32> to vector<1x32xf32>
    %426 = vector.extract_strided_slice %423 {offsets = [1, 0], sizes = [1, 32], strides = [1, 1]} : vector<4x32xf32> to vector<1x32xf32>
    %427 = vector.extract_strided_slice %423 {offsets = [2, 0], sizes = [1, 32], strides = [1, 1]} : vector<4x32xf32> to vector<1x32xf32>
    %428 = vector.extract_strided_slice %423 {offsets = [3, 0], sizes = [1, 32], strides = [1, 1]} : vector<4x32xf32> to vector<1x32xf32>
    %429 = tpu.concatenate %425, %426, %427, %428 in 1 : vector<1x32xf32>, vector<1x32xf32>, vector<1x32xf32>, vector<1x32xf32> -> vector<1x128xf32>
    %c6 = arith.constant 6 : index
    %c0_96 = arith.constant 0 : index
    %c0_97 = arith.constant 0 : index
    %430 = vector.load %arg0[%c6, %c0_96, %c0_97] : memref<8x4x16xf32, #tpu.memory_space<vmem>>, vector<1x4x16xf32>
    %431 = vector.shape_cast %430 : vector<1x4x16xf32> to vector<4x16xf32>
    %cst_98 = arith.constant dense<0.000000e+00> : vector<4x128xf32>
    %432 = tpu.matmul %431, %0, %cst_98 {dimension_numbers = #tpu.dot_dimension_numbers<[1], [0], [0], [1], [0, 0, 1, 1], [], []>} : vector<4x16xf32>, vector<16x128xf32>, vector<4x128xf32> -> vector<4x128xf32>
    %cst_99 = arith.constant dense<0.000000e+00> : vector<4x128xf32>
    %433 = tpu.matmul %383, %4, %cst_99 {dimension_numbers = #tpu.dot_dimension_numbers<[1], [0], [0], [1], [0, 0, 1, 1], [], []>} : vector<4x32xf32>, vector<32x128xf32>, vector<4x128xf32> -> vector<4x128xf32>
    %434 = arith.addf %432, %433 : vector<4x128xf32>
    %435 = vector.broadcast %10 : vector<1x128xf32> to vector<4x128xf32>
    %436 = arith.addf %434, %435 : vector<4x128xf32>
    %437 = arith.negf %436 : vector<4x128xf32>
    %438 = math.exp %437 : vector<4x128xf32>
    %cst_100 = arith.constant 1.000000e+00 : f32
    %439 = vector.broadcast %cst_100 : f32 to vector<4x128xf32>
    %440 = arith.addf %439, %438 : vector<4x128xf32>
    %441 = arith.divf %439, %440 : vector<4x128xf32>
    %442 = math.tanh %436 : vector<4x128xf32>
    %443 = vector.extract_strided_slice %441 {offsets = [0, 0], sizes = [4, 32], strides = [1, 1]} : vector<4x128xf32> to vector<4x32xf32>
    %444 = vector.extract_strided_slice %441 {offsets = [0, 32], sizes = [4, 32], strides = [1, 1]} : vector<4x128xf32> to vector<4x32xf32>
    %445 = vector.extract_strided_slice %442 {offsets = [0, 64], sizes = [4, 32], strides = [1, 1]} : vector<4x128xf32> to vector<4x32xf32>
    %446 = vector.extract_strided_slice %441 {offsets = [0, 96], sizes = [4, 32], strides = [1, 1]} : vector<4x128xf32> to vector<4x32xf32>
    %447 = arith.mulf %444, %381 : vector<4x32xf32>
    %448 = arith.mulf %443, %445 : vector<4x32xf32>
    %449 = arith.addf %447, %448 : vector<4x32xf32>
    %450 = math.tanh %449 : vector<4x32xf32>
    %451 = arith.mulf %446, %450 : vector<4x32xf32>
    %cst_101 = arith.constant dense<0.000000e+00> : vector<4x128xf32>
    %452 = tpu.matmul %451, %1, %cst_101 {dimension_numbers = #tpu.dot_dimension_numbers<[1], [0], [0], [1], [0, 0, 1, 1], [], []>} : vector<4x32xf32>, vector<32x128xf32>, vector<4x128xf32> -> vector<4x128xf32>
    %cst_102 = arith.constant dense<0.000000e+00> : vector<4x128xf32>
    %453 = tpu.matmul %403, %6, %cst_102 {dimension_numbers = #tpu.dot_dimension_numbers<[1], [0], [0], [1], [0, 0, 1, 1], [], []>} : vector<4x32xf32>, vector<32x128xf32>, vector<4x128xf32> -> vector<4x128xf32>
    %454 = arith.addf %452, %453 : vector<4x128xf32>
    %455 = vector.broadcast %12 : vector<1x128xf32> to vector<4x128xf32>
    %456 = arith.addf %454, %455 : vector<4x128xf32>
    %457 = arith.negf %456 : vector<4x128xf32>
    %458 = math.exp %457 : vector<4x128xf32>
    %cst_103 = arith.constant 1.000000e+00 : f32
    %459 = vector.broadcast %cst_103 : f32 to vector<4x128xf32>
    %460 = arith.addf %459, %458 : vector<4x128xf32>
    %461 = arith.divf %459, %460 : vector<4x128xf32>
    %462 = math.tanh %456 : vector<4x128xf32>
    %463 = vector.extract_strided_slice %461 {offsets = [0, 0], sizes = [4, 32], strides = [1, 1]} : vector<4x128xf32> to vector<4x32xf32>
    %464 = vector.extract_strided_slice %461 {offsets = [0, 32], sizes = [4, 32], strides = [1, 1]} : vector<4x128xf32> to vector<4x32xf32>
    %465 = vector.extract_strided_slice %462 {offsets = [0, 64], sizes = [4, 32], strides = [1, 1]} : vector<4x128xf32> to vector<4x32xf32>
    %466 = vector.extract_strided_slice %461 {offsets = [0, 96], sizes = [4, 32], strides = [1, 1]} : vector<4x128xf32> to vector<4x32xf32>
    %467 = arith.mulf %464, %401 : vector<4x32xf32>
    %468 = arith.mulf %463, %465 : vector<4x32xf32>
    %469 = arith.addf %467, %468 : vector<4x32xf32>
    %470 = math.tanh %469 : vector<4x32xf32>
    %471 = arith.mulf %466, %470 : vector<4x32xf32>
    %cst_104 = arith.constant dense<0.000000e+00> : vector<4x128xf32>
    %472 = tpu.matmul %471, %2, %cst_104 {dimension_numbers = #tpu.dot_dimension_numbers<[1], [0], [0], [1], [0, 0, 1, 1], [], []>} : vector<4x32xf32>, vector<32x128xf32>, vector<4x128xf32> -> vector<4x128xf32>
    %cst_105 = arith.constant dense<0.000000e+00> : vector<4x128xf32>
    %473 = tpu.matmul %423, %8, %cst_105 {dimension_numbers = #tpu.dot_dimension_numbers<[1], [0], [0], [1], [0, 0, 1, 1], [], []>} : vector<4x32xf32>, vector<32x128xf32>, vector<4x128xf32> -> vector<4x128xf32>
    %474 = arith.addf %472, %473 : vector<4x128xf32>
    %475 = vector.broadcast %14 : vector<1x128xf32> to vector<4x128xf32>
    %476 = arith.addf %474, %475 : vector<4x128xf32>
    %477 = arith.negf %476 : vector<4x128xf32>
    %478 = math.exp %477 : vector<4x128xf32>
    %cst_106 = arith.constant 1.000000e+00 : f32
    %479 = vector.broadcast %cst_106 : f32 to vector<4x128xf32>
    %480 = arith.addf %479, %478 : vector<4x128xf32>
    %481 = arith.divf %479, %480 : vector<4x128xf32>
    %482 = math.tanh %476 : vector<4x128xf32>
    %483 = vector.extract_strided_slice %481 {offsets = [0, 0], sizes = [4, 32], strides = [1, 1]} : vector<4x128xf32> to vector<4x32xf32>
    %484 = vector.extract_strided_slice %481 {offsets = [0, 32], sizes = [4, 32], strides = [1, 1]} : vector<4x128xf32> to vector<4x32xf32>
    %485 = vector.extract_strided_slice %482 {offsets = [0, 64], sizes = [4, 32], strides = [1, 1]} : vector<4x128xf32> to vector<4x32xf32>
    %486 = vector.extract_strided_slice %481 {offsets = [0, 96], sizes = [4, 32], strides = [1, 1]} : vector<4x128xf32> to vector<4x32xf32>
    %487 = arith.mulf %484, %421 : vector<4x32xf32>
    %488 = arith.mulf %483, %485 : vector<4x32xf32>
    %489 = arith.addf %487, %488 : vector<4x32xf32>
    %490 = math.tanh %489 : vector<4x32xf32>
    %491 = arith.mulf %486, %490 : vector<4x32xf32>
    %492 = arith.addf %424, %491 : vector<4x32xf32>
    %493 = vector.extract_strided_slice %491 {offsets = [0, 0], sizes = [1, 32], strides = [1, 1]} : vector<4x32xf32> to vector<1x32xf32>
    %494 = vector.extract_strided_slice %491 {offsets = [1, 0], sizes = [1, 32], strides = [1, 1]} : vector<4x32xf32> to vector<1x32xf32>
    %495 = vector.extract_strided_slice %491 {offsets = [2, 0], sizes = [1, 32], strides = [1, 1]} : vector<4x32xf32> to vector<1x32xf32>
    %496 = vector.extract_strided_slice %491 {offsets = [3, 0], sizes = [1, 32], strides = [1, 1]} : vector<4x32xf32> to vector<1x32xf32>
    %497 = tpu.concatenate %493, %494, %495, %496 in 1 : vector<1x32xf32>, vector<1x32xf32>, vector<1x32xf32>, vector<1x32xf32> -> vector<1x128xf32>
    %c7 = arith.constant 7 : index
    %c0_107 = arith.constant 0 : index
    %c0_108 = arith.constant 0 : index
    %498 = vector.load %arg0[%c7, %c0_107, %c0_108] : memref<8x4x16xf32, #tpu.memory_space<vmem>>, vector<1x4x16xf32>
    %499 = vector.shape_cast %498 : vector<1x4x16xf32> to vector<4x16xf32>
    %cst_109 = arith.constant dense<0.000000e+00> : vector<4x128xf32>
    %500 = tpu.matmul %499, %0, %cst_109 {dimension_numbers = #tpu.dot_dimension_numbers<[1], [0], [0], [1], [0, 0, 1, 1], [], []>} : vector<4x16xf32>, vector<16x128xf32>, vector<4x128xf32> -> vector<4x128xf32>
    %cst_110 = arith.constant dense<0.000000e+00> : vector<4x128xf32>
    %501 = tpu.matmul %451, %4, %cst_110 {dimension_numbers = #tpu.dot_dimension_numbers<[1], [0], [0], [1], [0, 0, 1, 1], [], []>} : vector<4x32xf32>, vector<32x128xf32>, vector<4x128xf32> -> vector<4x128xf32>
    %502 = arith.addf %500, %501 : vector<4x128xf32>
    %503 = vector.broadcast %10 : vector<1x128xf32> to vector<4x128xf32>
    %504 = arith.addf %502, %503 : vector<4x128xf32>
    %505 = arith.negf %504 : vector<4x128xf32>
    %506 = math.exp %505 : vector<4x128xf32>
    %cst_111 = arith.constant 1.000000e+00 : f32
    %507 = vector.broadcast %cst_111 : f32 to vector<4x128xf32>
    %508 = arith.addf %507, %506 : vector<4x128xf32>
    %509 = arith.divf %507, %508 : vector<4x128xf32>
    %510 = math.tanh %504 : vector<4x128xf32>
    %511 = vector.extract_strided_slice %509 {offsets = [0, 0], sizes = [4, 32], strides = [1, 1]} : vector<4x128xf32> to vector<4x32xf32>
    %512 = vector.extract_strided_slice %509 {offsets = [0, 32], sizes = [4, 32], strides = [1, 1]} : vector<4x128xf32> to vector<4x32xf32>
    %513 = vector.extract_strided_slice %510 {offsets = [0, 64], sizes = [4, 32], strides = [1, 1]} : vector<4x128xf32> to vector<4x32xf32>
    %514 = vector.extract_strided_slice %509 {offsets = [0, 96], sizes = [4, 32], strides = [1, 1]} : vector<4x128xf32> to vector<4x32xf32>
    %515 = arith.mulf %512, %449 : vector<4x32xf32>
    %516 = arith.mulf %511, %513 : vector<4x32xf32>
    %517 = arith.addf %515, %516 : vector<4x32xf32>
    %518 = math.tanh %517 : vector<4x32xf32>
    %519 = arith.mulf %514, %518 : vector<4x32xf32>
    %cst_112 = arith.constant dense<0.000000e+00> : vector<4x128xf32>
    %520 = tpu.matmul %519, %1, %cst_112 {dimension_numbers = #tpu.dot_dimension_numbers<[1], [0], [0], [1], [0, 0, 1, 1], [], []>} : vector<4x32xf32>, vector<32x128xf32>, vector<4x128xf32> -> vector<4x128xf32>
    %cst_113 = arith.constant dense<0.000000e+00> : vector<4x128xf32>
    %521 = tpu.matmul %471, %6, %cst_113 {dimension_numbers = #tpu.dot_dimension_numbers<[1], [0], [0], [1], [0, 0, 1, 1], [], []>} : vector<4x32xf32>, vector<32x128xf32>, vector<4x128xf32> -> vector<4x128xf32>
    %522 = arith.addf %520, %521 : vector<4x128xf32>
    %523 = vector.broadcast %12 : vector<1x128xf32> to vector<4x128xf32>
    %524 = arith.addf %522, %523 : vector<4x128xf32>
    %525 = arith.negf %524 : vector<4x128xf32>
    %526 = math.exp %525 : vector<4x128xf32>
    %cst_114 = arith.constant 1.000000e+00 : f32
    %527 = vector.broadcast %cst_114 : f32 to vector<4x128xf32>
    %528 = arith.addf %527, %526 : vector<4x128xf32>
    %529 = arith.divf %527, %528 : vector<4x128xf32>
    %530 = math.tanh %524 : vector<4x128xf32>
    %531 = vector.extract_strided_slice %529 {offsets = [0, 0], sizes = [4, 32], strides = [1, 1]} : vector<4x128xf32> to vector<4x32xf32>
    %532 = vector.extract_strided_slice %529 {offsets = [0, 32], sizes = [4, 32], strides = [1, 1]} : vector<4x128xf32> to vector<4x32xf32>
    %533 = vector.extract_strided_slice %530 {offsets = [0, 64], sizes = [4, 32], strides = [1, 1]} : vector<4x128xf32> to vector<4x32xf32>
    %534 = vector.extract_strided_slice %529 {offsets = [0, 96], sizes = [4, 32], strides = [1, 1]} : vector<4x128xf32> to vector<4x32xf32>
    %535 = arith.mulf %532, %469 : vector<4x32xf32>
    %536 = arith.mulf %531, %533 : vector<4x32xf32>
    %537 = arith.addf %535, %536 : vector<4x32xf32>
    %538 = math.tanh %537 : vector<4x32xf32>
    %539 = arith.mulf %534, %538 : vector<4x32xf32>
    %cst_115 = arith.constant dense<0.000000e+00> : vector<4x128xf32>
    %540 = tpu.matmul %539, %2, %cst_115 {dimension_numbers = #tpu.dot_dimension_numbers<[1], [0], [0], [1], [0, 0, 1, 1], [], []>} : vector<4x32xf32>, vector<32x128xf32>, vector<4x128xf32> -> vector<4x128xf32>
    %cst_116 = arith.constant dense<0.000000e+00> : vector<4x128xf32>
    %541 = tpu.matmul %491, %8, %cst_116 {dimension_numbers = #tpu.dot_dimension_numbers<[1], [0], [0], [1], [0, 0, 1, 1], [], []>} : vector<4x32xf32>, vector<32x128xf32>, vector<4x128xf32> -> vector<4x128xf32>
    %542 = arith.addf %540, %541 : vector<4x128xf32>
    %543 = vector.broadcast %14 : vector<1x128xf32> to vector<4x128xf32>
    %544 = arith.addf %542, %543 : vector<4x128xf32>
    %545 = arith.negf %544 : vector<4x128xf32>
    %546 = math.exp %545 : vector<4x128xf32>
    %cst_117 = arith.constant 1.000000e+00 : f32
    %547 = vector.broadcast %cst_117 : f32 to vector<4x128xf32>
    %548 = arith.addf %547, %546 : vector<4x128xf32>
    %549 = arith.divf %547, %548 : vector<4x128xf32>
    %550 = math.tanh %544 : vector<4x128xf32>
    %551 = vector.extract_strided_slice %549 {offsets = [0, 0], sizes = [4, 32], strides = [1, 1]} : vector<4x128xf32> to vector<4x32xf32>
    %552 = vector.extract_strided_slice %549 {offsets = [0, 32], sizes = [4, 32], strides = [1, 1]} : vector<4x128xf32> to vector<4x32xf32>
    %553 = vector.extract_strided_slice %550 {offsets = [0, 64], sizes = [4, 32], strides = [1, 1]} : vector<4x128xf32> to vector<4x32xf32>
    %554 = vector.extract_strided_slice %549 {offsets = [0, 96], sizes = [4, 32], strides = [1, 1]} : vector<4x128xf32> to vector<4x32xf32>
    %555 = arith.mulf %552, %489 : vector<4x32xf32>
    %556 = arith.mulf %551, %553 : vector<4x32xf32>
    %557 = arith.addf %555, %556 : vector<4x32xf32>
    %558 = math.tanh %557 : vector<4x32xf32>
    %559 = arith.mulf %554, %558 : vector<4x32xf32>
    %560 = arith.addf %492, %559 : vector<4x32xf32>
    %561 = vector.extract_strided_slice %559 {offsets = [0, 0], sizes = [1, 32], strides = [1, 1]} : vector<4x32xf32> to vector<1x32xf32>
    %562 = vector.extract_strided_slice %559 {offsets = [1, 0], sizes = [1, 32], strides = [1, 1]} : vector<4x32xf32> to vector<1x32xf32>
    %563 = vector.extract_strided_slice %559 {offsets = [2, 0], sizes = [1, 32], strides = [1, 1]} : vector<4x32xf32> to vector<1x32xf32>
    %564 = vector.extract_strided_slice %559 {offsets = [3, 0], sizes = [1, 32], strides = [1, 1]} : vector<4x32xf32> to vector<1x32xf32>
    %565 = tpu.concatenate %561, %562, %563, %564 in 1 : vector<1x32xf32>, vector<1x32xf32>, vector<1x32xf32>, vector<1x32xf32> -> vector<1x128xf32>
    %566 = tpu.concatenate %89, %157, %225, %293, %361, %429, %497, %565 in 0 : vector<1x128xf32>, vector<1x128xf32>, vector<1x128xf32>, vector<1x128xf32>, vector<1x128xf32>, vector<1x128xf32>, vector<1x128xf32>, vector<1x128xf32> -> vector<8x128xf32>
    %c0_118 = arith.constant 0 : index
    %c0_119 = arith.constant 0 : index
    %567 = vector.load %arg10[%c0_118, %c0_119] : memref<8x128xf32, #tpu.memory_space<vmem>>, vector<8x128xf32>
    tpu.vector_store %arg10[%c0_118, %c0_119], %566 {strides = array<i32>} : memref<8x128xf32, #tpu.memory_space<vmem>>, vector<8x128xf32>,
    %c0_120 = arith.constant 0 : index
    %c0_121 = arith.constant 0 : index
    %568 = vector.load %arg7[%c0_120, %c0_121] : memref<5x32xf32, #tpu.memory_space<vmem>>, vector<5x32xf32>
    %c0_122 = arith.constant 0 : index
    %c0_123 = arith.constant 0 : index
    %569 = vector.load %arg9[%c0_122, %c0_123] : memref<3x128xf32, #tpu.memory_space<vmem>>, vector<3x128xf32>
    %cst_124 = arith.constant 1.250000e-01 : f32
    %570 = vector.broadcast %cst_124 : f32 to vector<4x32xf32>
    %571 = arith.mulf %560, %570 : vector<4x32xf32>
    %572 = vector.extract_strided_slice %568 {offsets = [0, 0], sizes = [1, 32], strides = [1, 1]} : vector<5x32xf32> to vector<1x32xf32>
    %573 = vector.extract_strided_slice %568 {offsets = [1, 0], sizes = [1, 32], strides = [1, 1]} : vector<5x32xf32> to vector<1x32xf32>
    %cst_125 = arith.constant dense<0.000000e+00> : vector<32xf32>
    %574 = vector.multi_reduction <add>, %571, %cst_125 [0] : vector<4x32xf32> to vector<32xf32>
    %575 = vector.shape_cast %574 : vector<32xf32> to vector<1x32xf32>
    %cst_126 = arith.constant 4.000000e+00 : f32
    %576 = vector.broadcast %cst_126 : f32 to vector<1x32xf32>
    %577 = arith.divf %575, %576 : vector<1x32xf32>
    %578 = vector.broadcast %577 : vector<1x32xf32> to vector<4x32xf32>
    %579 = arith.subf %571, %578 : vector<4x32xf32>
    %580 = vector.broadcast %577 : vector<1x32xf32> to vector<4x32xf32>
    %581 = arith.subf %571, %580 : vector<4x32xf32>
    %582 = arith.mulf %579, %581 : vector<4x32xf32>
    %cst_127 = arith.constant dense<0.000000e+00> : vector<32xf32>
    %583 = vector.multi_reduction <add>, %582, %cst_127 [0] : vector<4x32xf32> to vector<32xf32>
    %584 = vector.shape_cast %583 : vector<32xf32> to vector<1x32xf32>
    %cst_128 = arith.constant 4.000000e+00 : f32
    %585 = vector.broadcast %cst_128 : f32 to vector<1x32xf32>
    %586 = arith.divf %584, %585 : vector<1x32xf32>
    %587 = vector.broadcast %577 : vector<1x32xf32> to vector<4x32xf32>
    %588 = arith.subf %571, %587 : vector<4x32xf32>
    %589 = vector.broadcast %572 : vector<1x32xf32> to vector<4x32xf32>
    %590 = arith.mulf %589, %588 : vector<4x32xf32>
    %cst_129 = arith.constant 9.99999974E-6 : f32
    %591 = vector.broadcast %cst_129 : f32 to vector<1x32xf32>
    %592 = arith.addf %586, %591 : vector<1x32xf32>
    %593 = math.rsqrt %592 : vector<1x32xf32>
    %594 = vector.broadcast %593 : vector<1x32xf32> to vector<4x32xf32>
    %595 = arith.mulf %590, %594 : vector<4x32xf32>
    %596 = vector.broadcast %573 : vector<1x32xf32> to vector<4x32xf32>
    %597 = arith.addf %595, %596 : vector<4x32xf32>
    %c0_130 = arith.constant 0 : index
    %c0_131 = arith.constant 0 : index
    %598 = vector.load %arg6[%c0_130, %c0_131] : memref<32x32xf32, #tpu.memory_space<vmem>>, vector<32x32xf32>
    %cst_132 = arith.constant dense<0.000000e+00> : vector<4x32xf32>
    %599 = tpu.matmul %597, %598, %cst_132 {dimension_numbers = #tpu.dot_dimension_numbers<[1], [0], [0], [1], [0, 0, 1, 1], [], []>} : vector<4x32xf32>, vector<32x32xf32>, vector<4x32xf32> -> vector<4x32xf32>
    %600 = vector.extract_strided_slice %568 {offsets = [2, 0], sizes = [1, 32], strides = [1, 1]} : vector<5x32xf32> to vector<1x32xf32>
    %601 = vector.broadcast %600 : vector<1x32xf32> to vector<4x32xf32>
    %602 = arith.addf %599, %601 : vector<4x32xf32>
    %603 = vector.extract_strided_slice %568 {offsets = [3, 0], sizes = [1, 32], strides = [1, 1]} : vector<5x32xf32> to vector<1x32xf32>
    %604 = vector.extract_strided_slice %568 {offsets = [4, 0], sizes = [1, 32], strides = [1, 1]} : vector<5x32xf32> to vector<1x32xf32>
    %cst_133 = arith.constant dense<0.000000e+00> : vector<32xf32>
    %605 = vector.multi_reduction <add>, %602, %cst_133 [0] : vector<4x32xf32> to vector<32xf32>
    %606 = vector.shape_cast %605 : vector<32xf32> to vector<1x32xf32>
    %cst_134 = arith.constant 4.000000e+00 : f32
    %607 = vector.broadcast %cst_134 : f32 to vector<1x32xf32>
    %608 = arith.divf %606, %607 : vector<1x32xf32>
    %609 = vector.broadcast %608 : vector<1x32xf32> to vector<4x32xf32>
    %610 = arith.subf %602, %609 : vector<4x32xf32>
    %611 = vector.broadcast %608 : vector<1x32xf32> to vector<4x32xf32>
    %612 = arith.subf %602, %611 : vector<4x32xf32>
    %613 = arith.mulf %610, %612 : vector<4x32xf32>
    %cst_135 = arith.constant dense<0.000000e+00> : vector<32xf32>
    %614 = vector.multi_reduction <add>, %613, %cst_135 [0] : vector<4x32xf32> to vector<32xf32>
    %615 = vector.shape_cast %614 : vector<32xf32> to vector<1x32xf32>
    %cst_136 = arith.constant 4.000000e+00 : f32
    %616 = vector.broadcast %cst_136 : f32 to vector<1x32xf32>
    %617 = arith.divf %615, %616 : vector<1x32xf32>
    %618 = vector.broadcast %608 : vector<1x32xf32> to vector<4x32xf32>
    %619 = arith.subf %602, %618 : vector<4x32xf32>
    %620 = vector.broadcast %603 : vector<1x32xf32> to vector<4x32xf32>
    %621 = arith.mulf %620, %619 : vector<4x32xf32>
    %cst_137 = arith.constant 9.99999974E-6 : f32
    %622 = vector.broadcast %cst_137 : f32 to vector<1x32xf32>
    %623 = arith.addf %617, %622 : vector<1x32xf32>
    %624 = math.rsqrt %623 : vector<1x32xf32>
    %625 = vector.broadcast %624 : vector<1x32xf32> to vector<4x32xf32>
    %626 = arith.mulf %621, %625 : vector<4x32xf32>
    %627 = vector.broadcast %604 : vector<1x32xf32> to vector<4x32xf32>
    %628 = arith.addf %626, %627 : vector<4x32xf32>
    %cst_138 = arith.constant 0.000000e+00 : f32
    %629 = vector.broadcast %cst_138 : f32 to vector<4x32xf32>
    %630 = arith.cmpf ogt, %628, %629 : vector<4x32xf32>
    %cst_139 = arith.constant 2.000000e-01 : f32
    %631 = vector.broadcast %cst_139 : f32 to vector<4x32xf32>
    %632 = arith.mulf %631, %628 : vector<4x32xf32>
    %633 = arith.select %630, %628, %632 : vector<4x32xi1>, vector<4x32xf32>
    %c0_140 = arith.constant 0 : index
    %c0_141 = arith.constant 0 : index
    %634 = vector.load %arg8[%c0_140, %c0_141] : memref<32x128xf32, #tpu.memory_space<vmem>>, vector<32x128xf32>
    %cst_142 = arith.constant dense<0.000000e+00> : vector<4x128xf32>
    %635 = tpu.matmul %633, %634, %cst_142 {dimension_numbers = #tpu.dot_dimension_numbers<[1], [0], [0], [1], [0, 0, 1, 1], [], []>} : vector<4x32xf32>, vector<32x128xf32>, vector<4x128xf32> -> vector<4x128xf32>
    %636 = vector.extract_strided_slice %569 {offsets = [0, 0], sizes = [1, 128], strides = [1, 1]} : vector<3x128xf32> to vector<1x128xf32>
    %637 = vector.broadcast %636 : vector<1x128xf32> to vector<4x128xf32>
    %638 = arith.addf %635, %637 : vector<4x128xf32>
    %639 = vector.extract_strided_slice %569 {offsets = [1, 0], sizes = [1, 128], strides = [1, 1]} : vector<3x128xf32> to vector<1x128xf32>
    %640 = vector.extract_strided_slice %569 {offsets = [2, 0], sizes = [1, 128], strides = [1, 1]} : vector<3x128xf32> to vector<1x128xf32>
    %cst_143 = arith.constant dense<0.000000e+00> : vector<128xf32>
    %641 = vector.multi_reduction <add>, %638, %cst_143 [0] : vector<4x128xf32> to vector<128xf32>
    %642 = vector.shape_cast %641 : vector<128xf32> to vector<1x128xf32>
    %cst_144 = arith.constant 4.000000e+00 : f32
    %643 = vector.broadcast %cst_144 : f32 to vector<1x128xf32>
    %644 = arith.divf %642, %643 : vector<1x128xf32>
    %645 = vector.broadcast %644 : vector<1x128xf32> to vector<4x128xf32>
    %646 = arith.subf %638, %645 : vector<4x128xf32>
    %647 = vector.broadcast %644 : vector<1x128xf32> to vector<4x128xf32>
    %648 = arith.subf %638, %647 : vector<4x128xf32>
    %649 = arith.mulf %646, %648 : vector<4x128xf32>
    %cst_145 = arith.constant dense<0.000000e+00> : vector<128xf32>
    %650 = vector.multi_reduction <add>, %649, %cst_145 [0] : vector<4x128xf32> to vector<128xf32>
    %651 = vector.shape_cast %650 : vector<128xf32> to vector<1x128xf32>
    %cst_146 = arith.constant 4.000000e+00 : f32
    %652 = vector.broadcast %cst_146 : f32 to vector<1x128xf32>
    %653 = arith.divf %651, %652 : vector<1x128xf32>
    %654 = vector.broadcast %644 : vector<1x128xf32> to vector<4x128xf32>
    %655 = arith.subf %638, %654 : vector<4x128xf32>
    %656 = vector.broadcast %639 : vector<1x128xf32> to vector<4x128xf32>
    %657 = arith.mulf %656, %655 : vector<4x128xf32>
    %cst_147 = arith.constant 9.99999974E-6 : f32
    %658 = vector.broadcast %cst_147 : f32 to vector<1x128xf32>
    %659 = arith.addf %653, %658 : vector<1x128xf32>
    %660 = math.rsqrt %659 : vector<1x128xf32>
    %661 = vector.broadcast %660 : vector<1x128xf32> to vector<4x128xf32>
    %662 = arith.mulf %657, %661 : vector<4x128xf32>
    %663 = vector.broadcast %640 : vector<1x128xf32> to vector<4x128xf32>
    %664 = arith.addf %662, %663 : vector<4x128xf32>
    %c0_148 = arith.constant 0 : index
    %c0_149 = arith.constant 0 : index
    %665 = vector.load %arg11[%c0_148, %c0_149] : memref<4x32xf32, #tpu.memory_space<vmem>>, vector<4x32xf32>
    tpu.vector_store %arg11[%c0_148, %c0_149], %633 {strides = array<i32>} : memref<4x32xf32, #tpu.memory_space<vmem>>, vector<4x32xf32>,
    %c0_150 = arith.constant 0 : index
    %c0_151 = arith.constant 0 : index
    %666 = vector.load %arg12[%c0_150, %c0_151] : memref<4x128xf32, #tpu.memory_space<vmem>>, vector<4x128xf32>
    tpu.vector_store %arg12[%c0_150, %c0_151], %664 {strides = array<i32>} : memref<4x128xf32, #tpu.memory_space<vmem>>, vector<4x128xf32>,
    return
  }
}

</mosaic_0001>

<llo_original>
// kernel: forward.1
$region0: #{forward.1}
  #allocation0 [shape = 'u32[]', space=smem, size = 0x4, offset = 0x4, fixed_abs, tag = 'smem constant byte address 0x4 - core index']
  #allocation1 [shape = 'u32[72,128]{1,0:T(1,128)}', space=vmem, size = 0x9000, scoped, tag = 'internal scratch']
  %s0 = inlined_call_operand.vmem [shape: f32[8,4,16], index: 0, kind: input, shape index: {}]
  %s1 = inlined_call_operand.vmem [shape: f32[16,128], index: 1, kind: input, shape index: {}]
  %s2 = inlined_call_operand.hbm [shape: f32[32,128], index: 2, kind: input, shape index: {}]
  %s3 = inlined_call_operand.hbm [shape: f32[32,128], index: 3, kind: input, shape index: {}]
  %s4 = inlined_call_operand.vmem [shape: f32[3,32,128], index: 4, kind: input, shape index: {}]
  %s5 = inlined_call_operand.vmem [shape: f32[3,1,128], index: 5, kind: input, shape index: {}]
  %s6 = inlined_call_operand.hbm [shape: f32[32,32], index: 6, kind: input, shape index: {}]
  %s7 = inlined_call_operand.vmem [shape: f32[5,32], index: 7, kind: input, shape index: {}]
  %s8 = inlined_call_operand.vmem [shape: f32[32,128], index: 8, kind: input, shape index: {}]
  %s9 = inlined_call_operand.vmem [shape: f32[3,128], index: 9, kind: input, shape index: {}]
  %s10 = inlined_call_operand.vmem [shape: f32[8,128], index: 10, kind: output, shape index: {0}]
  %s11 = inlined_call_operand.hbm [shape: f32[4,32], index: 11, kind: output, shape index: {1}]
  %s12 = inlined_call_operand.hbm [shape: f32[4,128], index: 12, kind: output, shape index: {2}]
  %13 = xla_tuple %s10, %s11, %s12
  %s14 = sld [smem:[#allocation0]]
  $region78: #{forward.1} parent=0
    _
  %s16 = ssub.s32 1, %s14
  %s17 = scalar_select 0, %s16, %s14
  $region1: #{forward.1} parent=0
    #allocation2 [shape = 'u8[16384]{0}', space=vmem, size = 0x4000, scoped, tag = 'input window, operand 2, single buffered']
    #allocation3 [shape = 's32[1]{0}', space=sflag, size = 0x4, scoped, tag = 'scoped memory for forward.1']
    #allocation4 [shape = 's32[1]{0}', space=sflag, size = 0x4, scoped, tag = 'scoped memory for forward.1']
    #allocation5 [shape = 'u8[16384]{0}', space=vmem, size = 0x4000, scoped, tag = 'input window, operand 3, single buffered']
    #allocation6 [shape = 's32[1]{0}', space=sflag, size = 0x4, scoped, tag = 'scoped memory for forward.1']
    #allocation7 [shape = 'u8[16384]{0}', space=vmem, size = 0x4000, scoped, tag = 'input window, operand 6, single buffered']
    #allocation8 [shape = 'u8[2048]{0}', space=vmem, size = 0x800, scoped, tag = 'output window, operand 1, single buffered']
    #allocation9 [shape = 'u8[2048]{0}', space=vmem, size = 0x800, scoped, tag = 'output window, operand 2, single buffered']
    #allocation10 [shape = 's32[1]{0}', space=sflag, size = 0x4, scoped, tag = 'scoped memory for forward.1']
    %18 = vsyncpa [#allocation3], 0
    %19 = vsyncpa [#allocation6], 0
    %20 = vsyncpa [#allocation4], 0
    %21 = vsyncpa [#allocation10], 0
    // Predicated region
    $region2: #{forward.1} parent=1 // pred_check
      _
    $region3: #{forward.1} parent=1 // pred_check_branch
      %23 = sbr.rel (0) target = $region5
    $region4: #{forward.1} parent=1 // pred_region
      _
    $region5: #{forward.1} parent=1 // pred_fallthru
      _
    // Predicated region
    $region6: #{forward.1} parent=1 // pred_check
      _
    $region7: #{forward.1} parent=1 // pred_check_branch
      %25 = sbr.rel (0) target = $region9
    $region8: #{forward.1} parent=1 // pred_region
      _
    $region9: #{forward.1} parent=1 // pred_fallthru
      _
    // Predicated region
    $region10: #{forward.1} parent=1 // pred_check
      _
    $region11: #{forward.1} parent=1 // pred_check_branch
      %27 = sbr.rel (0) target = $region13
    $region12: #{forward.1} parent=1 // pred_region
      %29 = vsyncadd [#allocation3], 0
      %s30 = sshll.u32 %s2, 4
      %s31 = int_to_ptr.hbm [resolvable:$true] %s30
      %s32 = sshll.u32 [#allocation2], 4
      %s33 = int_to_ptr.vmem [resolvable:$true] %s32
      %38 = dma.hbm_to_vmem [thread:$0]  %s31, 512, %s33, [#allocation3], 128, 128, 8
    $region13: #{forward.1} parent=1 // pred_fallthru
      _
    // Predicated region
    $region14: #{forward.1} parent=1 // pred_check
      _
    $region15: #{forward.1} parent=1 // pred_check_branch
      %40 = sbr.rel (0) target = $region17
    $region16: #{forward.1} parent=1 // pred_region
      %42 = vsyncadd [#allocation6], 0
      %s43 = sshll.u32 %s3, 4
      %s44 = int_to_ptr.hbm [resolvable:$true] %s43
      %s45 = sshll.u32 [#allocation5], 4
      %s46 = int_to_ptr.vmem [resolvable:$true] %s45
      %51 = dma.hbm_to_vmem [thread:$0]  %s44, 512, %s46, [#allocation6], 128, 128, 8
    $region17: #{forward.1} parent=1 // pred_fallthru
      _
    // Predicated region
    $region18: #{forward.1} parent=1 // pred_check
      _
    $region19: #{forward.1} parent=1 // pred_check_branch
      %53 = sbr.rel (0) target = $region21
    $region20: #{forward.1} parent=1 // pred_region
      _
    $region21: #{forward.1} parent=1 // pred_fallthru
      _
    // Predicated region
    $region22: #{forward.1} parent=1 // pred_check
      _
    $region23: #{forward.1} parent=1 // pred_check_branch
      %55 = sbr.rel (0) target = $region25
    $region24: #{forward.1} parent=1 // pred_region
      _
    $region25: #{forward.1} parent=1 // pred_fallthru
      _
    // Predicated region
    $region26: #{forward.1} parent=1 // pred_check
      _
    $region27: #{forward.1} parent=1 // pred_check_branch
      %57 = sbr.rel (0) target = $region29
    $region28: #{forward.1} parent=1 // pred_region
      %59 = vsyncadd [#allocation6], 0
      %s60 = sshll.u32 %s6, 4
      %s61 = int_to_ptr.hbm [resolvable:$true] %s60
      %s62 = sshll.u32 [#allocation7], 4
      %s63 = int_to_ptr.vmem [resolvable:$true] %s62
      %68 = dma.hbm_to_vmem [thread:$0]  %s61, 512, %s63, [#allocation6], 128, 128, 8
    $region29: #{forward.1} parent=1 // pred_fallthru
      _
    // Predicated region
    $region30: #{forward.1} parent=1 // pred_check
      _
    $region31: #{forward.1} parent=1 // pred_check_branch
      %70 = sbr.rel (0) target = $region33
    $region32: #{forward.1} parent=1 // pred_region
      _
    $region33: #{forward.1} parent=1 // pred_fallthru
      _
    // Predicated region
    $region34: #{forward.1} parent=1 // pred_check
      _
    $region35: #{forward.1} parent=1 // pred_check_branch
      %72 = sbr.rel (0) target = $region37
    $region36: #{forward.1} parent=1 // pred_region
      _
    $region37: #{forward.1} parent=1 // pred_fallthru
      _
    // Predicated region
    $region38: #{forward.1} parent=1 // pred_check
      _
    $region39: #{forward.1} parent=1 // pred_check_branch
      %74 = sbr.rel (0) target = $region41
    $region40: #{forward.1} parent=1 // pred_region
      _
    $region41: #{forward.1} parent=1 // pred_fallthru
      _
    // Predicated region
    $region42: #{forward.1} parent=1 // pred_check
      _
    $region43: #{forward.1} parent=1 // pred_check_branch
      %76 = sbr.rel (0) target = $region45
    $region44: #{forward.1} parent=1 // pred_region
      %78 = dma.done [#allocation3], 512
    $region45: #{forward.1} parent=1 // pred_fallthru
      _
    // Predicated region
    $region46: #{forward.1} parent=1 // pred_check
      _
    $region47: #{forward.1} parent=1 // pred_check_branch
      %80 = sbr.rel (0) target = $region49
    $region48: #{forward.1} parent=1 // pred_region
      %82 = dma.done [#allocation6], 512
    $region49: #{forward.1} parent=1 // pred_fallthru
      _
    // Predicated region
    $region50: #{forward.1} parent=1 // pred_check
      _
    $region51: #{forward.1} parent=1 // pred_check_branch
      %84 = sbr.rel (0) target = $region53
    $region52: #{forward.1} parent=1 // pred_region
      %86 = dma.done [#allocation6], 512
    $region53: #{forward.1} parent=1 // pred_fallthru
      _
    %v87 = vld [vmem:[%s1] sm:$0xff]
    %v88 = vld [vmem:[%s1 + $0x8] sm:$0xff]
    %v89 = vld [vmem:[#allocation2] sm:$0xff]
    %v90 = vld [vmem:[#allocation2 + $0x8] sm:$0xff]
    %v91 = vld [vmem:[#allocation2 + $0x10] sm:$0xff]
    %v92 = vld [vmem:[#allocation2 + $0x18] sm:$0xff]
    %v93 = vld [vmem:[#allocation5] sm:$0xff]
    %v94 = vld [vmem:[#allocation5 + $0x8] sm:$0xff]
    %v95 = vld [vmem:[#allocation5 + $0x10] sm:$0xff]
    %v96 = vld [vmem:[#allocation5 + $0x18] sm:$0xff]
    %v97 = vld [vmem:[%s4] sm:$0xff]
    %v98 = vld [vmem:[%s4 + $0x8] sm:$0xff]
    %v99 = vld [vmem:[%s4 + $0x10] sm:$0xff]
    %v100 = vld [vmem:[%s4 + $0x18] sm:$0xff]
    %s101 = scalar_lea.vmem %s4, 32
    %v102 = vld [vmem:[%s101] sm:$0xff]
    %v103 = vld [vmem:[%s101 + $0x8] sm:$0xff]
    %v104 = vld [vmem:[%s101 + $0x10] sm:$0xff]
    %v105 = vld [vmem:[%s101 + $0x18] sm:$0xff]
    %s106 = scalar_lea.vmem %s4, 64
    %v107 = vld [vmem:[%s106] sm:$0xff]
    %v108 = vld [vmem:[%s106 + $0x8] sm:$0xff]
    %v109 = vld [vmem:[%s106 + $0x10] sm:$0xff]
    %v110 = vld [vmem:[%s106 + $0x18] sm:$0xff]
    %v111 = vld [vmem:[%s5] sm:$0x1]
    %s112 = scalar_lea.vmem %s5, 1
    %v113 = vld [vmem:[%s112] sm:$0x1]
    %s114 = scalar_lea.vmem %s5, 2
    %v115 = vld [vmem:[%s114] sm:$0x1]
    %v116 = vld [vmem:[%s0] sm:$0xf]
    %vm117 = vcmask 261120
    %v119 = vsel %vm117, 0.0, 0
    %121 = vmatpush.msra.mxu0 0.0
    %122 = vmatpush.msra.mxu0 0.0
    %123 = vmatpush.msra.mxu0 0.0
    %124 = vmatpush.msra.mxu0 0.0
    %125 = vmatpush.msra.mxu0 0.0
    %126 = vmatpush.msra.mxu0 0.0
    %127 = vmatpush.msra.mxu0 0.0
    %128 = vmatpush.msra.mxu0 0.0
    %129 = vmatpush.msra.mxu0 0.0
    %130 = vmatpush.msra.mxu0 0.0
    %131 = vmatpush.msra.mxu0 0.0
    %132 = vmatpush.msra.mxu0 0.0
    %133 = vmatpush.msra.mxu0 %v100
    %134 = vmatpush.msra.mxu0 %v99
    %135 = vmatpush.msra.mxu0 %v98
    %136 = vmatpush.msra.mxu0 %v97
    %137 = vmatmul.f32.gmra.mxu0 %v119
    %v138 = vpop.f32.mrf.mxu0
    %v139 = vadd.f32 0.0, %v138
    %140 = vdwg.mxu0
    %vm141 = vcmask 130048
    %v143 = vsel %vm141, %v116, 0
    %145 = vmatpush.msra.mxu0 0.0
    %146 = vmatpush.msra.mxu0 0.0
    %147 = vmatpush.msra.mxu0 0.0
    %148 = vmatpush.msra.mxu0 0.0
    %149 = vmatpush.msra.mxu0 0.0
    %150 = vmatpush.msra.mxu0 0.0
    %151 = vmatpush.msra.mxu0 0.0
    %152 = vmatpush.msra.mxu0 0.0
    %153 = vmatpush.msra.mxu0 0.0
    %154 = vmatpush.msra.mxu0 0.0
    %155 = vmatpush.msra.mxu0 0.0
    %156 = vmatpush.msra.mxu0 0.0
    %157 = vmatpush.msra.mxu0 0.0
    %158 = vmatpush.msra.mxu0 0.0
    %159 = vmatpush.msra.mxu0 %v88
    %160 = vmatpush.msra.mxu0 %v87
    %161 = vmatmul.f32.gmra.mxu0 %v143
    %v162 = vpop.f32.mrf.mxu0
    %v163 = vadd.f32 %v139, %v162
    %164 = vdwg.mxu0
    %v166 = vperm.slane %v111, 0
    %v168 = vadd.f32 %v163, %v166
    %v169 = vxor.u32 %v168, 2147483648
    %v170 = vmul.f32 %v169, 1.442695
    %v171 = vpow.pop %v170
    %v172 = vadd.f32 %v171, 1.0
    %v173 = vrcp.pop %v172
    %v174 = vmul.f32 %v172, %v173
    %v175 = vsub.f32 1.0, %v174
    %v176 = vmul.f32 %v173, %v175
    %v177 = vadd.f32 %v173, %v176
    %vm178 = vweird.f32 %v172
    %vm179 = vweird.f32 %v173
    %vm180 = vmor %vm178, %vm179
    %v181 = vsel %vm180, %v173, %v177
    %v182 = vand.u32 2147483647, %v172
    %vm183 = vcmp.eq.f32.partialorder %v182, 8.507059e+37
    %v184 = vand.u32 %v172, 2147483648
    %v185 = vor.u32 1.1754944e-38, %v184
    %v186 = vsel %vm183, %v185, %v181
    %v187 = vmul.f32 1.0, %v186
    %v188 = vtanh.pop %v168
    %v189 = vmul.f32 %v187, 0.0
    %191 = vrot.lane.b32.xlu0 %v188, 64
    %v192 = vpop.permute.xlu0 %191
    %v194 = vmul.f32 %v187, %v192
    %196 = vrot.lane.b32.xlu0 %v194, 32
    %v197 = vpop.permute.xlu0 %196
    %v199 = vadd.f32 %v189, %v197
    %v200 = vtanh.pop %v199
    %202 = vrot.lane.b32.xlu0 %v200, 64
    %v203 = vpop.permute.xlu0 %202
    %v205 = vmul.f32 %v187, %v203
    %206 = vmatpush.msra.mxu0 0.0
    %207 = vmatpush.msra.mxu0 0.0
    %208 = vmatpush.msra.mxu0 0.0
    %209 = vmatpush.msra.mxu0 0.0
    %210 = vmatpush.msra.mxu0 0.0
    %211 = vmatpush.msra.mxu0 0.0
    %212 = vmatpush.msra.mxu0 0.0
    %213 = vmatpush.msra.mxu0 0.0
    %214 = vmatpush.msra.mxu0 0.0
    %215 = vmatpush.msra.mxu0 0.0
    %216 = vmatpush.msra.mxu0 0.0
    %217 = vmatpush.msra.mxu0 0.0
    %218 = vmatpush.msra.mxu0 %v105
    %219 = vmatpush.msra.mxu0 %v104
    %220 = vmatpush.msra.mxu0 %v103
    %221 = vmatpush.msra.mxu0 %v102
    %222 = vmatmul.f32.gmra.mxu0 %v119
    %v223 = vpop.f32.mrf.mxu0
    %v224 = vadd.f32 0.0, %v223
    %225 = vdwg.mxu0
    %227 = vrot.lane.b32.xlu0 %v205, 32
    %v228 = vpop.permute.xlu0 %227
    %v229 = vsel %vm117, %v228, 0
    %231 = vmatpush.msra.mxu0 0.0
    %232 = vmatpush.msra.mxu0 0.0
    %233 = vmatpush.msra.mxu0 0.0
    %234 = vmatpush.msra.mxu0 0.0
    %235 = vmatpush.msra.mxu0 0.0
    %236 = vmatpush.msra.mxu0 0.0
    %237 = vmatpush.msra.mxu0 0.0
    %238 = vmatpush.msra.mxu0 0.0
    %239 = vmatpush.msra.mxu0 0.0
    %240 = vmatpush.msra.mxu0 0.0
    %241 = vmatpush.msra.mxu0 0.0
    %242 = vmatpush.msra.mxu0 0.0
    %243 = vmatpush.msra.mxu0 %v92
    %244 = vmatpush.msra.mxu0 %v91
    %245 = vmatpush.msra.mxu0 %v90
    %246 = vmatpush.msra.mxu0 %v89
    %247 = vmatmul.f32.gmra.mxu0 %v229
    %v248 = vpop.f32.mrf.mxu0
    %v249 = vadd.f32 %v224, %v248
    %250 = vdwg.mxu0
    %v252 = vperm.slane %v113, 0
    %v254 = vadd.f32 %v249, %v252
    %v255 = vxor.u32 %v254, 2147483648
    %v256 = vmul.f32 %v255, 1.442695
    %v257 = vpow.pop %v256
    %v258 = vadd.f32 %v257, 1.0
    %v259 = vrcp.pop %v258
    %v260 = vmul.f32 %v258, %v259
    %v261 = vsub.f32 1.0, %v260
    %v262 = vmul.f32 %v259, %v261
    %v263 = vadd.f32 %v259, %v262
    %vm264 = vweird.f32 %v258
    %vm265 = vweird.f32 %v259
    %vm266 = vmor %vm264, %vm265
    %v267 = vsel %vm266, %v259, %v263
    %v268 = vand.u32 2147483647, %v258
    %vm269 = vcmp.eq.f32.partialorder %v268, 8.507059e+37
    %v270 = vand.u32 %v258, 2147483648
    %v271 = vor.u32 1.1754944e-38, %v270
    %v272 = vsel %vm269, %v271, %v267
    %v273 = vmul.f32 1.0, %v272
    %v274 = vtanh.pop %v254
    %v275 = vmul.f32 %v273, 0.0
    %277 = vrot.lane.b32.xlu0 %v274, 64
    %v278 = vpop.permute.xlu0 %277
    %v280 = vmul.f32 %v273, %v278
    %282 = vrot.lane.b32.xlu0 %v280, 32
    %v283 = vpop.permute.xlu0 %282
    %v285 = vadd.f32 %v275, %v283
    %v286 = vtanh.pop %v285
    %288 = vrot.lane.b32.xlu0 %v286, 64
    %v289 = vpop.permute.xlu0 %288
    %v291 = vmul.f32 %v273, %v289
    %292 = vmatpush.msra.mxu0 0.0
    %293 = vmatpush.msra.mxu0 0.0
    %294 = vmatpush.msra.mxu0 0.0
    %295 = vmatpush.msra.mxu0 0.0
    %296 = vmatpush.msra.mxu0 0.0
    %297 = vmatpush.msra.mxu0 0.0
    %298 = vmatpush.msra.mxu0 0.0
    %299 = vmatpush.msra.mxu0 0.0
    %300 = vmatpush.msra.mxu0 0.0
    %301 = vmatpush.msra.mxu0 0.0
    %302 = vmatpush.msra.mxu0 0.0
    %303 = vmatpush.msra.mxu0 0.0
    %304 = vmatpush.msra.mxu0 %v110
    %305 = vmatpush.msra.mxu0 %v109
    %306 = vmatpush.msra.mxu0 %v108
    %307 = vmatpush.msra.mxu0 %v107
    %308 = vmatmul.f32.gmra.mxu0 %v119
    %v309 = vpop.f32.mrf.mxu0
    %v310 = vadd.f32 0.0, %v309
    %311 = vdwg.mxu0
    %313 = vrot.lane.b32.xlu0 %v291, 32
    %v314 = vpop.permute.xlu0 %313
    %v315 = vsel %vm117, %v314, 0
    %317 = vmatpush.msra.mxu0 0.0
    %318 = vmatpush.msra.mxu0 0.0
    %319 = vmatpush.msra.mxu0 0.0
    %320 = vmatpush.msra.mxu0 0.0
    %321 = vmatpush.msra.mxu0 0.0
    %322 = vmatpush.msra.mxu0 0.0
    %323 = vmatpush.msra.mxu0 0.0
    %324 = vmatpush.msra.mxu0 0.0
    %325 = vmatpush.msra.mxu0 0.0
    %326 = vmatpush.msra.mxu0 0.0
    %327 = vmatpush.msra.mxu0 0.0
    %328 = vmatpush.msra.mxu0 0.0
    %329 = vmatpush.msra.mxu0 %v96
    %330 = vmatpush.msra.mxu0 %v95
    %331 = vmatpush.msra.mxu0 %v94
    %332 = vmatpush.msra.mxu0 %v93
    %333 = vmatmul.f32.gmra.mxu0 %v315
    %v334 = vpop.f32.mrf.mxu0
    %v335 = vadd.f32 %v310, %v334
    %336 = vdwg.mxu0
    %v338 = vperm.slane %v115, 0
    %v340 = vadd.f32 %v335, %v338
    %v341 = vxor.u32 %v340, 2147483648
    %v342 = vmul.f32 %v341, 1.442695
    %v343 = vpow.pop %v342
    %v344 = vadd.f32 %v343, 1.0
    %v345 = vrcp.pop %v344
    %v346 = vmul.f32 %v344, %v345
    %v347 = vsub.f32 1.0, %v346
    %v348 = vmul.f32 %v345, %v347
    %v349 = vadd.f32 %v345, %v348
    %vm350 = vweird.f32 %v344
    %vm351 = vweird.f32 %v345
    %vm352 = vmor %vm350, %vm351
    %v353 = vsel %vm352, %v345, %v349
    %v354 = vand.u32 2147483647, %v344
    %vm355 = vcmp.eq.f32.partialorder %v354, 8.507059e+37
    %v356 = vand.u32 %v344, 2147483648
    %v357 = vor.u32 1.1754944e-38, %v356
    %v358 = vsel %vm355, %v357, %v353
    %v359 = vmul.f32 1.0, %v358
    %v360 = vtanh.pop %v340
    %v361 = vmul.f32 %v359, 0.0
    %363 = vrot.lane.b32.xlu0 %v360, 64
    %v364 = vpop.permute.xlu0 %363
    %v366 = vmul.f32 %v359, %v364
    %368 = vrot.lane.b32.xlu0 %v366, 32
    %v369 = vpop.permute.xlu0 %368
    %v371 = vadd.f32 %v361, %v369
    %v372 = vtanh.pop %v371
    %374 = vrot.lane.b32.xlu0 %v372, 64
    %v375 = vpop.permute.xlu0 %374
    %v377 = vmul.f32 %v359, %v375
    %v378 = vadd.f32 %v377, 0.0
    %380 = vrot.lane.b32.xlu0 %v377, 32
    %v381 = vpop.permute.xlu0 %380
    %v383 = vrot.slane %v377, 1
    %384 = vrot.lane.b32.xlu0 %v383, 64
    %v385 = vpop.permute.xlu0 %384
    %v387 = vrot.slane %v377, 2
    %388 = vrot.lane.b32.xlu0 %v387, 96
    %v389 = vpop.permute.xlu0 %388
    %v391 = vrot.slane %v377, 3
    %v393 = vsel %vm117, %v381, %v385
    %vm394 = vcmask 523264
    %v395 = vsel %vm394, %v393, %v389
    %vm396 = vcmask 785408
    %v397 = vsel %vm396, %v395, %v391
    %s398 = scalar_lea.vmem %s0, 4
    %v399 = vld [vmem:[%s398] sm:$0xf]
    %400 = vmatpush.msra.mxu0 0.0
    %401 = vmatpush.msra.mxu0 0.0
    %402 = vmatpush.msra.mxu0 0.0
    %403 = vmatpush.msra.mxu0 0.0
    %404 = vmatpush.msra.mxu0 0.0
    %405 = vmatpush.msra.mxu0 0.0
    %406 = vmatpush.msra.mxu0 0.0
    %407 = vmatpush.msra.mxu0 0.0
    %408 = vmatpush.msra.mxu0 0.0
    %409 = vmatpush.msra.mxu0 0.0
    %410 = vmatpush.msra.mxu0 0.0
    %411 = vmatpush.msra.mxu0 0.0
    %412 = vmatpush.msra.mxu0 %v100
    %413 = vmatpush.msra.mxu0 %v99
    %414 = vmatpush.msra.mxu0 %v98
    %415 = vmatpush.msra.mxu0 %v97
    %416 = vmatmul.f32.gmra.mxu0 %v229
    %v417 = vpop.f32.mrf.mxu0
    %v418 = vadd.f32 0.0, %v417
    %419 = vdwg.mxu0
    %v421 = vsel %vm141, %v399, 0
    %423 = vmatpush.msra.mxu0 0.0
    %424 = vmatpush.msra.mxu0 0.0
    %425 = vmatpush.msra.mxu0 0.0
    %426 = vmatpush.msra.mxu0 0.0
    %427 = vmatpush.msra.mxu0 0.0
    %428 = vmatpush.msra.mxu0 0.0
    %429 = vmatpush.msra.mxu0 0.0
    %430 = vmatpush.msra.mxu0 0.0
    %431 = vmatpush.msra.mxu0 0.0
    %432 = vmatpush.msra.mxu0 0.0
    %433 = vmatpush.msra.mxu0 0.0
    %434 = vmatpush.msra.mxu0 0.0
    %435 = vmatpush.msra.mxu0 0.0
    %436 = vmatpush.msra.mxu0 0.0
    %437 = vmatpush.msra.mxu0 %v88
    %438 = vmatpush.msra.mxu0 %v87
    %439 = vmatmul.f32.gmra.mxu0 %v421
    %v440 = vpop.f32.mrf.mxu0
    %v441 = vadd.f32 %v418, %v440
    %442 = vdwg.mxu0
    %v443 = vadd.f32 %v441, %v166
    %v444 = vxor.u32 %v443, 2147483648
    %v445 = vmul.f32 %v444, 1.442695
    %v446 = vpow.pop %v445
    %v447 = vadd.f32 %v446, 1.0
    %v448 = vrcp.pop %v447
    %v449 = vmul.f32 %v447, %v448
    %v450 = vsub.f32 1.0, %v449
    %v451 = vmul.f32 %v448, %v450
    %v452 = vadd.f32 %v448, %v451
    %vm453 = vweird.f32 %v447
    %vm454 = vweird.f32 %v448
    %vm455 = vmor %vm453, %vm454
    %v456 = vsel %vm455, %v448, %v452
    %v457 = vand.u32 2147483647, %v447
    %vm458 = vcmp.eq.f32.partialorder %v457, 8.507059e+37
    %v459 = vand.u32 %v447, 2147483648
    %v460 = vor.u32 1.1754944e-38, %v459
    %v461 = vsel %vm458, %v460, %v456
    %v462 = vmul.f32 1.0, %v461
    %v463 = vtanh.pop %v443
    %v464 = vmul.f32 %v462, %v199
    %466 = vrot.lane.b32.xlu0 %v463, 64
    %v467 = vpop.permute.xlu0 %466
    %v469 = vmul.f32 %v462, %v467
    %471 = vrot.lane.b32.xlu0 %v469, 32
    %v472 = vpop.permute.xlu0 %471
    %v474 = vadd.f32 %v464, %v472
    %v475 = vtanh.pop %v474
    %477 = vrot.lane.b32.xlu0 %v475, 64
    %v478 = vpop.permute.xlu0 %477
    %v480 = vmul.f32 %v462, %v478
    %481 = vmatpush.msra.mxu0 0.0
    %482 = vmatpush.msra.mxu0 0.0
    %483 = vmatpush.msra.mxu0 0.0
    %484 = vmatpush.msra.mxu0 0.0
    %485 = vmatpush.msra.mxu0 0.0
    %486 = vmatpush.msra.mxu0 0.0
    %487 = vmatpush.msra.mxu0 0.0
    %488 = vmatpush.msra.mxu0 0.0
    %489 = vmatpush.msra.mxu0 0.0
    %490 = vmatpush.msra.mxu0 0.0
    %491 = vmatpush.msra.mxu0 0.0
    %492 = vmatpush.msra.mxu0 0.0
    %493 = vmatpush.msra.mxu0 %v105
    %494 = vmatpush.msra.mxu0 %v104
    %495 = vmatpush.msra.mxu0 %v103
    %496 = vmatpush.msra.mxu0 %v102
    %497 = vmatmul.f32.gmra.mxu0 %v315
    %v498 = vpop.f32.mrf.mxu0
    %v499 = vadd.f32 0.0, %v498
    %500 = vdwg.mxu0
    %502 = vrot.lane.b32.xlu0 %v480, 32
    %v503 = vpop.permute.xlu0 %502
    %v504 = vsel %vm117, %v503, 0
    %506 = vmatpush.msra.mxu0 0.0
    %507 = vmatpush.msra.mxu0 0.0
    %508 = vmatpush.msra.mxu0 0.0
    %509 = vmatpush.msra.mxu0 0.0
    %510 = vmatpush.msra.mxu0 0.0
    %511 = vmatpush.msra.mxu0 0.0
    %512 = vmatpush.msra.mxu0 0.0
    %513 = vmatpush.msra.mxu0 0.0
    %514 = vmatpush.msra.mxu0 0.0
    %515 = vmatpush.msra.mxu0 0.0
    %516 = vmatpush.msra.mxu0 0.0
    %517 = vmatpush.msra.mxu0 0.0
    %518 = vmatpush.msra.mxu0 %v92
    %519 = vmatpush.msra.mxu0 %v91
    %520 = vmatpush.msra.mxu0 %v90
    %521 = vmatpush.msra.mxu0 %v89
    %522 = vmatmul.f32.gmra.mxu0 %v504
    %v523 = vpop.f32.mrf.mxu0
    %v524 = vadd.f32 %v499, %v523
    %525 = vdwg.mxu0
    %v526 = vadd.f32 %v524, %v252
    %v527 = vxor.u32 %v526, 2147483648
    %v528 = vmul.f32 %v527, 1.442695
    %v529 = vpow.pop %v528
    %v530 = vadd.f32 %v529, 1.0
    %v531 = vrcp.pop %v530
    %v532 = vmul.f32 %v530, %v531
    %v533 = vsub.f32 1.0, %v532
    %v534 = vmul.f32 %v531, %v533
    %v535 = vadd.f32 %v531, %v534
    %vm536 = vweird.f32 %v530
    %vm537 = vweird.f32 %v531
    %vm538 = vmor %vm536, %vm537
    %v539 = vsel %vm538, %v531, %v535
    %v540 = vand.u32 2147483647, %v530
    %vm541 = vcmp.eq.f32.partialorder %v540, 8.507059e+37
    %v542 = vand.u32 %v530, 2147483648
    %v543 = vor.u32 1.1754944e-38, %v542
    %v544 = vsel %vm541, %v543, %v539
    %v545 = vmul.f32 1.0, %v544
    %v546 = vtanh.pop %v526
    %v547 = vmul.f32 %v545, %v285
    %549 = vrot.lane.b32.xlu0 %v546, 64
    %v550 = vpop.permute.xlu0 %549
    %v552 = vmul.f32 %v545, %v550
    %554 = vrot.lane.b32.xlu0 %v552, 32
    %v555 = vpop.permute.xlu0 %554
    %v557 = vadd.f32 %v547, %v555
    %v558 = vtanh.pop %v557
    %560 = vrot.lane.b32.xlu0 %v558, 64
    %v561 = vpop.permute.xlu0 %560
    %v563 = vmul.f32 %v545, %v561
    %v564 = vsel %vm117, %v381, 0
    %566 = vmatpush.msra.mxu0 0.0
    %567 = vmatpush.msra.mxu0 0.0
    %568 = vmatpush.msra.mxu0 0.0
    %569 = vmatpush.msra.mxu0 0.0
    %570 = vmatpush.msra.mxu0 0.0
    %571 = vmatpush.msra.mxu0 0.0
    %572 = vmatpush.msra.mxu0 0.0
    %573 = vmatpush.msra.mxu0 0.0
    %574 = vmatpush.msra.mxu0 0.0
    %575 = vmatpush.msra.mxu0 0.0
    %576 = vmatpush.msra.mxu0 0.0
    %577 = vmatpush.msra.mxu0 0.0
    %578 = vmatpush.msra.mxu0 %v110
    %579 = vmatpush.msra.mxu0 %v109
    %580 = vmatpush.msra.mxu0 %v108
    %581 = vmatpush.msra.mxu0 %v107
    %582 = vmatmul.f32.gmra.mxu0 %v564
    %v583 = vpop.f32.mrf.mxu0
    %v584 = vadd.f32 0.0, %v583
    %585 = vdwg.mxu0
    %587 = vrot.lane.b32.xlu0 %v563, 32
    %v588 = vpop.permute.xlu0 %587
    %v589 = vsel %vm117, %v588, 0
    %591 = vmatpush.msra.mxu0 0.0
    %592 = vmatpush.msra.mxu0 0.0
    %593 = vmatpush.msra.mxu0 0.0
    %594 = vmatpush.msra.mxu0 0.0
    %595 = vmatpush.msra.mxu0 0.0
    %596 = vmatpush.msra.mxu0 0.0
    %597 = vmatpush.msra.mxu0 0.0
    %598 = vmatpush.msra.mxu0 0.0
    %599 = vmatpush.msra.mxu0 0.0
    %600 = vmatpush.msra.mxu0 0.0
    %601 = vmatpush.msra.mxu0 0.0
    %602 = vmatpush.msra.mxu0 0.0
    %603 = vmatpush.msra.mxu0 %v96
    %604 = vmatpush.msra.mxu0 %v95
    %605 = vmatpush.msra.mxu0 %v94
    %606 = vmatpush.msra.mxu0 %v93
    %607 = vmatmul.f32.gmra.mxu0 %v589
    %v608 = vpop.f32.mrf.mxu0
    %v609 = vadd.f32 %v584, %v608
    %610 = vdwg.mxu0
    %v611 = vadd.f32 %v609, %v338
    %v612 = vxor.u32 %v611, 2147483648
    %v613 = vmul.f32 %v612, 1.442695
    %v614 = vpow.pop %v613
    %v615 = vadd.f32 %v614, 1.0
    %v616 = vrcp.pop %v615
    %v617 = vmul.f32 %v615, %v616
    %v618 = vsub.f32 1.0, %v617
    %v619 = vmul.f32 %v616, %v618
    %v620 = vadd.f32 %v616, %v619
    %vm621 = vweird.f32 %v615
    %vm622 = vweird.f32 %v616
    %vm623 = vmor %vm621, %vm622
    %v624 = vsel %vm623, %v616, %v620
    %v625 = vand.u32 2147483647, %v615
    %vm626 = vcmp.eq.f32.partialorder %v625, 8.507059e+37
    %v627 = vand.u32 %v615, 2147483648
    %v628 = vor.u32 1.1754944e-38, %v627
    %v629 = vsel %vm626, %v628, %v624
    %v630 = vmul.f32 1.0, %v629
    %v631 = vtanh.pop %v611
    %v632 = vmul.f32 %v630, %v371
    %634 = vrot.lane.b32.xlu0 %v631, 64
    %v635 = vpop.permute.xlu0 %634
    %v637 = vmul.f32 %v630, %v635
    %639 = vrot.lane.b32.xlu0 %v637, 32
    %v640 = vpop.permute.xlu0 %639
    %v642 = vadd.f32 %v632, %v640
    %v643 = vtanh.pop %v642
    %645 = vrot.lane.b32.xlu0 %v643, 64
    %v646 = vpop.permute.xlu0 %645
    %v648 = vmul.f32 %v630, %v646
    %v649 = vadd.f32 %v378, %v648
    %651 = vrot.lane.b32.xlu0 %v648, 32
    %v652 = vpop.permute.xlu0 %651
    %v654 = vrot.slane %v648, 1
    %655 = vrot.lane.b32.xlu0 %v654, 64
    %v656 = vpop.permute.xlu0 %655
    %v658 = vrot.slane %v648, 2
    %659 = vrot.lane.b32.xlu0 %v658, 96
    %v660 = vpop.permute.xlu0 %659
    %v662 = vrot.slane %v648, 3
    %v664 = vsel %vm117, %v652, %v656
    %v665 = vsel %vm394, %v664, %v660
    %v666 = vsel %vm396, %v665, %v662
    %s667 = scalar_lea.vmem %s0, 8
    %v668 = vld [vmem:[%s667] sm:$0xf]
    %669 = vmatpush.msra.mxu0 0.0
    %670 = vmatpush.msra.mxu0 0.0
    %671 = vmatpush.msra.mxu0 0.0
    %672 = vmatpush.msra.mxu0 0.0
    %673 = vmatpush.msra.mxu0 0.0
    %674 = vmatpush.msra.mxu0 0.0
    %675 = vmatpush.msra.mxu0 0.0
    %676 = vmatpush.msra.mxu0 0.0
    %677 = vmatpush.msra.mxu0 0.0
    %678 = vmatpush.msra.mxu0 0.0
    %679 = vmatpush.msra.mxu0 0.0
    %680 = vmatpush.msra.mxu0 0.0
    %681 = vmatpush.msra.mxu0 %v100
    %682 = vmatpush.msra.mxu0 %v99
    %683 = vmatpush.msra.mxu0 %v98
    %684 = vmatpush.msra.mxu0 %v97
    %685 = vmatmul.f32.gmra.mxu0 %v504
    %v686 = vpop.f32.mrf.mxu0
    %v687 = vadd.f32 0.0, %v686
    %688 = vdwg.mxu0
    %v690 = vsel %vm141, %v668, 0
    %692 = vmatpush.msra.mxu0 0.0
    %693 = vmatpush.msra.mxu0 0.0
    %694 = vmatpush.msra.mxu0 0.0
    %695 = vmatpush.msra.mxu0 0.0
    %696 = vmatpush.msra.mxu0 0.0
    %697 = vmatpush.msra.mxu0 0.0
    %698 = vmatpush.msra.mxu0 0.0
    %699 = vmatpush.msra.mxu0 0.0
    %700 = vmatpush.msra.mxu0 0.0
    %701 = vmatpush.msra.mxu0 0.0
    %702 = vmatpush.msra.mxu0 0.0
    %703 = vmatpush.msra.mxu0 0.0
    %704 = vmatpush.msra.mxu0 0.0
    %705 = vmatpush.msra.mxu0 0.0
    %706 = vmatpush.msra.mxu0 %v88
    %707 = vmatpush.msra.mxu0 %v87
    %708 = vmatmul.f32.gmra.mxu0 %v690
    %v709 = vpop.f32.mrf.mxu0
    %v710 = vadd.f32 %v687, %v709
    %711 = vdwg.mxu0
    %v712 = vadd.f32 %v710, %v166
    %v713 = vxor.u32 %v712, 2147483648
    %v714 = vmul.f32 %v713, 1.442695
    %v715 = vpow.pop %v714
    %v716 = vadd.f32 %v715, 1.0
    %v717 = vrcp.pop %v716
    %v718 = vmul.f32 %v716, %v717
    %v719 = vsub.f32 1.0, %v718
    %v720 = vmul.f32 %v717, %v719
    %v721 = vadd.f32 %v717, %v720
    %vm722 = vweird.f32 %v716
    %vm723 = vweird.f32 %v717
    %vm724 = vmor %vm722, %vm723
    %v725 = vsel %vm724, %v717, %v721
    %v726 = vand.u32 2147483647, %v716
    %vm727 = vcmp.eq.f32.partialorder %v726, 8.507059e+37
    %v728 = vand.u32 %v716, 2147483648
    %v729 = vor.u32 1.1754944e-38, %v728
    %v730 = vsel %vm727, %v729, %v725
    %v731 = vmul.f32 1.0, %v730
    %v732 = vtanh.pop %v712
    %v733 = vmul.f32 %v731, %v474
    %735 = vrot.lane.b32.xlu0 %v732, 64
    %v736 = vpop.permute.xlu0 %735
    %v738 = vmul.f32 %v731, %v736
    %740 = vrot.lane.b32.xlu0 %v738, 32
    %v741 = vpop.permute.xlu0 %740
    %v743 = vadd.f32 %v733, %v741
    %v744 = vtanh.pop %v743
    %746 = vrot.lane.b32.xlu0 %v744, 64
    %v747 = vpop.permute.xlu0 %746
    %v749 = vmul.f32 %v731, %v747
    %750 = vmatpush.msra.mxu0 0.0
    %751 = vmatpush.msra.mxu0 0.0
    %752 = vmatpush.msra.mxu0 0.0
    %753 = vmatpush.msra.mxu0 0.0
    %754 = vmatpush.msra.mxu0 0.0
    %755 = vmatpush.msra.mxu0 0.0
    %756 = vmatpush.msra.mxu0 0.0
    %757 = vmatpush.msra.mxu0 0.0
    %758 = vmatpush.msra.mxu0 0.0
    %759 = vmatpush.msra.mxu0 0.0
    %760 = vmatpush.msra.mxu0 0.0
    %761 = vmatpush.msra.mxu0 0.0
    %762 = vmatpush.msra.mxu0 %v105
    %763 = vmatpush.msra.mxu0 %v104
    %764 = vmatpush.msra.mxu0 %v103
    %765 = vmatpush.msra.mxu0 %v102
    %766 = vmatmul.f32.gmra.mxu0 %v589
    %v767 = vpop.f32.mrf.mxu0
    %v768 = vadd.f32 0.0, %v767
    %769 = vdwg.mxu0
    %771 = vrot.lane.b32.xlu0 %v749, 32
    %v772 = vpop.permute.xlu0 %771
    %v773 = vsel %vm117, %v772, 0
    %775 = vmatpush.msra.mxu0 0.0
    %776 = vmatpush.msra.mxu0 0.0
    %777 = vmatpush.msra.mxu0 0.0
    %778 = vmatpush.msra.mxu0 0.0
    %779 = vmatpush.msra.mxu0 0.0
    %780 = vmatpush.msra.mxu0 0.0
    %781 = vmatpush.msra.mxu0 0.0
    %782 = vmatpush.msra.mxu0 0.0
    %783 = vmatpush.msra.mxu0 0.0
    %784 = vmatpush.msra.mxu0 0.0
    %785 = vmatpush.msra.mxu0 0.0
    %786 = vmatpush.msra.mxu0 0.0
    %787 = vmatpush.msra.mxu0 %v92
    %788 = vmatpush.msra.mxu0 %v91
    %789 = vmatpush.msra.mxu0 %v90
    %790 = vmatpush.msra.mxu0 %v89
    %791 = vmatmul.f32.gmra.mxu0 %v773
    %v792 = vpop.f32.mrf.mxu0
    %v793 = vadd.f32 %v768, %v792
    %794 = vdwg.mxu0
    %v795 = vadd.f32 %v793, %v252
    %v796 = vxor.u32 %v795, 2147483648
    %v797 = vmul.f32 %v796, 1.442695
    %v798 = vpow.pop %v797
    %v799 = vadd.f32 %v798, 1.0
    %v800 = vrcp.pop %v799
    %v801 = vmul.f32 %v799, %v800
    %v802 = vsub.f32 1.0, %v801
    %v803 = vmul.f32 %v800, %v802
    %v804 = vadd.f32 %v800, %v803
    %vm805 = vweird.f32 %v799
    %vm806 = vweird.f32 %v800
    %vm807 = vmor %vm805, %vm806
    %v808 = vsel %vm807, %v800, %v804
    %v809 = vand.u32 2147483647, %v799
    %vm810 = vcmp.eq.f32.partialorder %v809, 8.507059e+37
    %v811 = vand.u32 %v799, 2147483648
    %v812 = vor.u32 1.1754944e-38, %v811
    %v813 = vsel %vm810, %v812, %v808
    %v814 = vmul.f32 1.0, %v813
    %v815 = vtanh.pop %v795
    %v816 = vmul.f32 %v814, %v557
    %818 = vrot.lane.b32.xlu0 %v815, 64
    %v819 = vpop.permute.xlu0 %818
    %v821 = vmul.f32 %v814, %v819
    %823 = vrot.lane.b32.xlu0 %v821, 32
    %v824 = vpop.permute.xlu0 %823
    %v826 = vadd.f32 %v816, %v824
    %v827 = vtanh.pop %v826
    %829 = vrot.lane.b32.xlu0 %v827, 64
    %v830 = vpop.permute.xlu0 %829
    %v832 = vmul.f32 %v814, %v830
    %v833 = vsel %vm117, %v652, 0
    %835 = vmatpush.msra.mxu0 0.0
    %836 = vmatpush.msra.mxu0 0.0
    %837 = vmatpush.msra.mxu0 0.0
    %838 = vmatpush.msra.mxu0 0.0
    %839 = vmatpush.msra.mxu0 0.0
    %840 = vmatpush.msra.mxu0 0.0
    %841 = vmatpush.msra.mxu0 0.0
    %842 = vmatpush.msra.mxu0 0.0
    %843 = vmatpush.msra.mxu0 0.0
    %844 = vmatpush.msra.mxu0 0.0
    %845 = vmatpush.msra.mxu0 0.0
    %846 = vmatpush.msra.mxu0 0.0
    %847 = vmatpush.msra.mxu0 %v110
    %848 = vmatpush.msra.mxu0 %v109
    %849 = vmatpush.msra.mxu0 %v108
    %850 = vmatpush.msra.mxu0 %v107
    %851 = vmatmul.f32.gmra.mxu0 %v833
    %v852 = vpop.f32.mrf.mxu0
    %v853 = vadd.f32 0.0, %v852
    %854 = vdwg.mxu0
    %856 = vrot.lane.b32.xlu0 %v832, 32
    %v857 = vpop.permute.xlu0 %856
    %v858 = vsel %vm117, %v857, 0
    %860 = vmatpush.msra.mxu0 0.0
    %861 = vmatpush.msra.mxu0 0.0
    %862 = vmatpush.msra.mxu0 0.0
    %863 = vmatpush.msra.mxu0 0.0
    %864 = vmatpush.msra.mxu0 0.0
    %865 = vmatpush.msra.mxu0 0.0
    %866 = vmatpush.msra.mxu0 0.0
    %867 = vmatpush.msra.mxu0 0.0
    %868 = vmatpush.msra.mxu0 0.0
    %869 = vmatpush.msra.mxu0 0.0
    %870 = vmatpush.msra.mxu0 0.0
    %871 = vmatpush.msra.mxu0 0.0
    %872 = vmatpush.msra.mxu0 %v96
    %873 = vmatpush.msra.mxu0 %v95
    %874 = vmatpush.msra.mxu0 %v94
    %875 = vmatpush.msra.mxu0 %v93
    %876 = vmatmul.f32.gmra.mxu0 %v858
    %v877 = vpop.f32.mrf.mxu0
    %v878 = vadd.f32 %v853, %v877
    %879 = vdwg.mxu0
    %v880 = vadd.f32 %v878, %v338
    %v881 = vxor.u32 %v880, 2147483648
    %v882 = vmul.f32 %v881, 1.442695
    %v883 = vpow.pop %v882
    %v884 = vadd.f32 %v883, 1.0
    %v885 = vrcp.pop %v884
    %v886 = vmul.f32 %v884, %v885
    %v887 = vsub.f32 1.0, %v886
    %v888 = vmul.f32 %v885, %v887
    %v889 = vadd.f32 %v885, %v888
    %vm890 = vweird.f32 %v884
    %vm891 = vweird.f32 %v885
    %vm892 = vmor %vm890, %vm891
    %v893 = vsel %vm892, %v885, %v889
    %v894 = vand.u32 2147483647, %v884
    %vm895 = vcmp.eq.f32.partialorder %v894, 8.507059e+37
    %v896 = vand.u32 %v884, 2147483648
    %v897 = vor.u32 1.1754944e-38, %v896
    %v898 = vsel %vm895, %v897, %v893
    %v899 = vmul.f32 1.0, %v898
    %v900 = vtanh.pop %v880
    %v901 = vmul.f32 %v899, %v642
    %903 = vrot.lane.b32.xlu0 %v900, 64
    %v904 = vpop.permute.xlu0 %903
    %v906 = vmul.f32 %v899, %v904
    %908 = vrot.lane.b32.xlu0 %v906, 32
    %v909 = vpop.permute.xlu0 %908
    %v911 = vadd.f32 %v901, %v909
    %v912 = vtanh.pop %v911
    %914 = vrot.lane.b32.xlu0 %v912, 64
    %v915 = vpop.permute.xlu0 %914
    %v917 = vmul.f32 %v899, %v915
    %v918 = vadd.f32 %v649, %v917
    %920 = vrot.lane.b32.xlu0 %v917, 32
    %v921 = vpop.permute.xlu0 %920
    %v923 = vrot.slane %v917, 1
    %924 = vrot.lane.b32.xlu0 %v923, 64
    %v925 = vpop.permute.xlu0 %924
    %v927 = vrot.slane %v917, 2
    %928 = vrot.lane.b32.xlu0 %v927, 96
    %v929 = vpop.permute.xlu0 %928
    %v931 = vrot.slane %v917, 3
    %v933 = vsel %vm117, %v921, %v925
    %v934 = vsel %vm394, %v933, %v929
    %v935 = vsel %vm396, %v934, %v931
    %s936 = scalar_lea.vmem %s0, 12
    %v937 = vld [vmem:[%s936] sm:$0xf]
    %938 = vmatpush.msra.mxu0 0.0
    %939 = vmatpush.msra.mxu0 0.0
    %940 = vmatpush.msra.mxu0 0.0
    %941 = vmatpush.msra.mxu0 0.0
    %942 = vmatpush.msra.mxu0 0.0
    %943 = vmatpush.msra.mxu0 0.0
    %944 = vmatpush.msra.mxu0 0.0
    %945 = vmatpush.msra.mxu0 0.0
    %946 = vmatpush.msra.mxu0 0.0
    %947 = vmatpush.msra.mxu0 0.0
    %948 = vmatpush.msra.mxu0 0.0
    %949 = vmatpush.msra.mxu0 0.0
    %950 = vmatpush.msra.mxu0 %v100
    %951 = vmatpush.msra.mxu0 %v99
    %952 = vmatpush.msra.mxu0 %v98
    %953 = vmatpush.msra.mxu0 %v97
    %954 = vmatmul.f32.gmra.mxu0 %v773
    %v955 = vpop.f32.mrf.mxu0
    %v956 = vadd.f32 0.0, %v955
    %957 = vdwg.mxu0
    %v959 = vsel %vm141, %v937, 0
    %961 = vmatpush.msra.mxu0 0.0
    %962 = vmatpush.msra.mxu0 0.0
    %963 = vmatpush.msra.mxu0 0.0
    %964 = vmatpush.msra.mxu0 0.0
    %965 = vmatpush.msra.mxu0 0.0
    %966 = vmatpush.msra.mxu0 0.0
    %967 = vmatpush.msra.mxu0 0.0
    %968 = vmatpush.msra.mxu0 0.0
    %969 = vmatpush.msra.mxu0 0.0
    %970 = vmatpush.msra.mxu0 0.0
    %971 = vmatpush.msra.mxu0 0.0
    %972 = vmatpush.msra.mxu0 0.0
    %973 = vmatpush.msra.mxu0 0.0
    %974 = vmatpush.msra.mxu0 0.0
    %975 = vmatpush.msra.mxu0 %v88
    %976 = vmatpush.msra.mxu0 %v87
    %977 = vmatmul.f32.gmra.mxu0 %v959
    %v978 = vpop.f32.mrf.mxu0
    %v979 = vadd.f32 %v956, %v978
    %980 = vdwg.mxu0
    %v981 = vadd.f32 %v979, %v166
    %v982 = vxor.u32 %v981, 2147483648
    %v983 = vmul.f32 %v982, 1.442695
    %v984 = vpow.pop %v983
    %v985 = vadd.f32 %v984, 1.0
    %v986 = vrcp.pop %v985
    %v987 = vmul.f32 %v985, %v986
    %v988 = vsub.f32 1.0, %v987
    %v989 = vmul.f32 %v986, %v988
    %v990 = vadd.f32 %v986, %v989
    %vm991 = vweird.f32 %v985
    %vm992 = vweird.f32 %v986
    %vm993 = vmor %vm991, %vm992
    %v994 = vsel %vm993, %v986, %v990
    %v995 = vand.u32 2147483647, %v985
    %vm996 = vcmp.eq.f32.partialorder %v995, 8.507059e+37
    %v997 = vand.u32 %v985, 2147483648
    %v998 = vor.u32 1.1754944e-38, %v997
    %v999 = vsel %vm996, %v998, %v994
    %v1000 = vmul.f32 1.0, %v999
    %v1001 = vtanh.pop %v981
    %v1002 = vmul.f32 %v1000, %v743
    %1004 = vrot.lane.b32.xlu0 %v1001, 64
    %v1005 = vpop.permute.xlu0 %1004
    %v1007 = vmul.f32 %v1000, %v1005
    %1009 = vrot.lane.b32.xlu0 %v1007, 32
    %v1010 = vpop.permute.xlu0 %1009
    %v1012 = vadd.f32 %v1002, %v1010
    %v1013 = vtanh.pop %v1012
    %1015 = vrot.lane.b32.xlu0 %v1013, 64
    %v1016 = vpop.permute.xlu0 %1015
    %v1018 = vmul.f32 %v1000, %v1016
    %1019 = vmatpush.msra.mxu0 0.0
    %1020 = vmatpush.msra.mxu0 0.0
    %1021 = vmatpush.msra.mxu0 0.0
    %1022 = vmatpush.msra.mxu0 0.0
    %1023 = vmatpush.msra.mxu0 0.0
    %1024 = vmatpush.msra.mxu0 0.0
    %1025 = vmatpush.msra.mxu0 0.0
    %1026 = vmatpush.msra.mxu0 0.0
    %1027 = vmatpush.msra.mxu0 0.0
    %1028 = vmatpush.msra.mxu0 0.0
    %1029 = vmatpush.msra.mxu0 0.0
    %1030 = vmatpush.msra.mxu0 0.0
    %1031 = vmatpush.msra.mxu0 %v105
    %1032 = vmatpush.msra.mxu0 %v104
    %1033 = vmatpush.msra.mxu0 %v103
    %1034 = vmatpush.msra.mxu0 %v102
    %1035 = vmatmul.f32.gmra.mxu0 %v858
    %v1036 = vpop.f32.mrf.mxu0
    %v1037 = vadd.f32 0.0, %v1036
    %1038 = vdwg.mxu0
    %1040 = vrot.lane.b32.xlu0 %v1018, 32
    %v1041 = vpop.permute.xlu0 %1040
    %v1042 = vsel %vm117, %v1041, 0
    %1044 = vmatpush.msra.mxu0 0.0
    %1045 = vmatpush.msra.mxu0 0.0
    %1046 = vmatpush.msra.mxu0 0.0
    %1047 = vmatpush.msra.mxu0 0.0
    %1048 = vmatpush.msra.mxu0 0.0
    %1049 = vmatpush.msra.mxu0 0.0
    %1050 = vmatpush.msra.mxu0 0.0
    %1051 = vmatpush.msra.mxu0 0.0
    %1052 = vmatpush.msra.mxu0 0.0
    %1053 = vmatpush.msra.mxu0 0.0
    %1054 = vmatpush.msra.mxu0 0.0
    %1055 = vmatpush.msra.mxu0 0.0
    %1056 = vmatpush.msra.mxu0 %v92
    %1057 = vmatpush.msra.mxu0 %v91
    %1058 = vmatpush.msra.mxu0 %v90
    %1059 = vmatpush.msra.mxu0 %v89
    %1060 = vmatmul.f32.gmra.mxu0 %v1042
    %v1061 = vpop.f32.mrf.mxu0
    %v1062 = vadd.f32 %v1037, %v1061
    %1063 = vdwg.mxu0
    %v1064 = vadd.f32 %v1062, %v252
    %v1065 = vxor.u32 %v1064, 2147483648
    %v1066 = vmul.f32 %v1065, 1.442695
    %v1067 = vpow.pop %v1066
    %v1068 = vadd.f32 %v1067, 1.0
    %v1069 = vrcp.pop %v1068
    %v1070 = vmul.f32 %v1068, %v1069
    %v1071 = vsub.f32 1.0, %v1070
    %v1072 = vmul.f32 %v1069, %v1071
    %v1073 = vadd.f32 %v1069, %v1072
    %vm1074 = vweird.f32 %v1068
    %vm1075 = vweird.f32 %v1069
    %vm1076 = vmor %vm1074, %vm1075
    %v1077 = vsel %vm1076, %v1069, %v1073
    %v1078 = vand.u32 2147483647, %v1068
    %vm1079 = vcmp.eq.f32.partialorder %v1078, 8.507059e+37
    %v1080 = vand.u32 %v1068, 2147483648
    %v1081 = vor.u32 1.1754944e-38, %v1080
    %v1082 = vsel %vm1079, %v1081, %v1077
    %v1083 = vmul.f32 1.0, %v1082
    %v1084 = vtanh.pop %v1064
    %v1085 = vmul.f32 %v1083, %v826
    %1087 = vrot.lane.b32.xlu0 %v1084, 64
    %v1088 = vpop.permute.xlu0 %1087
    %v1090 = vmul.f32 %v1083, %v1088
    %1092 = vrot.lane.b32.xlu0 %v1090, 32
    %v1093 = vpop.permute.xlu0 %1092
    %v1095 = vadd.f32 %v1085, %v1093
    %v1096 = vtanh.pop %v1095
    %1098 = vrot.lane.b32.xlu0 %v1096, 64
    %v1099 = vpop.permute.xlu0 %1098
    %v1101 = vmul.f32 %v1083, %v1099
    %v1102 = vsel %vm117, %v921, 0
    %1104 = vmatpush.msra.mxu0 0.0
    %1105 = vmatpush.msra.mxu0 0.0
    %1106 = vmatpush.msra.mxu0 0.0
    %1107 = vmatpush.msra.mxu0 0.0
    %1108 = vmatpush.msra.mxu0 0.0
    %1109 = vmatpush.msra.mxu0 0.0
    %1110 = vmatpush.msra.mxu0 0.0
    %1111 = vmatpush.msra.mxu0 0.0
    %1112 = vmatpush.msra.mxu0 0.0
    %1113 = vmatpush.msra.mxu0 0.0
    %1114 = vmatpush.msra.mxu0 0.0
    %1115 = vmatpush.msra.mxu0 0.0
    %1116 = vmatpush.msra.mxu0 %v110
    %1117 = vmatpush.msra.mxu0 %v109
    %1118 = vmatpush.msra.mxu0 %v108
    %1119 = vmatpush.msra.mxu0 %v107
    %1120 = vmatmul.f32.gmra.mxu0 %v1102
    %v1121 = vpop.f32.mrf.mxu0
    %v1122 = vadd.f32 0.0, %v1121
    %1123 = vdwg.mxu0
    %1125 = vrot.lane.b32.xlu0 %v1101, 32
    %v1126 = vpop.permute.xlu0 %1125
    %v1127 = vsel %vm117, %v1126, 0
    %1129 = vmatpush.msra.mxu0 0.0
    %1130 = vmatpush.msra.mxu0 0.0
    %1131 = vmatpush.msra.mxu0 0.0
    %1132 = vmatpush.msra.mxu0 0.0
    %1133 = vmatpush.msra.mxu0 0.0
    %1134 = vmatpush.msra.mxu0 0.0
    %1135 = vmatpush.msra.mxu0 0.0
    %1136 = vmatpush.msra.mxu0 0.0
    %1137 = vmatpush.msra.mxu0 0.0
    %1138 = vmatpush.msra.mxu0 0.0
    %1139 = vmatpush.msra.mxu0 0.0
    %1140 = vmatpush.msra.mxu0 0.0
    %1141 = vmatpush.msra.mxu0 %v96
    %1142 = vmatpush.msra.mxu0 %v95
    %1143 = vmatpush.msra.mxu0 %v94
    %1144 = vmatpush.msra.mxu0 %v93
    %1145 = vmatmul.f32.gmra.mxu0 %v1127
    %v1146 = vpop.f32.mrf.mxu0
    %v1147 = vadd.f32 %v1122, %v1146
    %1148 = vdwg.mxu0
    %v1149 = vadd.f32 %v1147, %v338
    %v1150 = vxor.u32 %v1149, 2147483648
    %v1151 = vmul.f32 %v1150, 1.442695
    %v1152 = vpow.pop %v1151
    %v1153 = vadd.f32 %v1152, 1.0
    %v1154 = vrcp.pop %v1153
    %v1155 = vmul.f32 %v1153, %v1154
    %v1156 = vsub.f32 1.0, %v1155
    %v1157 = vmul.f32 %v1154, %v1156
    %v1158 = vadd.f32 %v1154, %v1157
    %vm1159 = vweird.f32 %v1153
    %vm1160 = vweird.f32 %v1154
    %vm1161 = vmor %vm1159, %vm1160
    %v1162 = vsel %vm1161, %v1154, %v1158
    %v1163 = vand.u32 2147483647, %v1153
    %vm1164 = vcmp.eq.f32.partialorder %v1163, 8.507059e+37
    %v1165 = vand.u32 %v1153, 2147483648
    %v1166 = vor.u32 1.1754944e-38, %v1165
    %v1167 = vsel %vm1164, %v1166, %v1162
    %v1168 = vmul.f32 1.0, %v1167
    %v1169 = vtanh.pop %v1149
    %v1170 = vmul.f32 %v1168, %v911
    %1172 = vrot.lane.b32.xlu0 %v1169, 64
    %v1173 = vpop.permute.xlu0 %1172
    %v1175 = vmul.f32 %v1168, %v1173
    %1177 = vrot.lane.b32.xlu0 %v1175, 32
    %v1178 = vpop.permute.xlu0 %1177
    %v1180 = vadd.f32 %v1170, %v1178
    %v1181 = vtanh.pop %v1180
    %1183 = vrot.lane.b32.xlu0 %v1181, 64
    %v1184 = vpop.permute.xlu0 %1183
    %v1186 = vmul.f32 %v1168, %v1184
    %v1187 = vadd.f32 %v918, %v1186
    %1189 = vrot.lane.b32.xlu0 %v1186, 32
    %v1190 = vpop.permute.xlu0 %1189
    %v1192 = vrot.slane %v1186, 1
    %1193 = vrot.lane.b32.xlu0 %v1192, 64
    %v1194 = vpop.permute.xlu0 %1193
    %v1196 = vrot.slane %v1186, 2
    %1197 = vrot.lane.b32.xlu0 %v1196, 96
    %v1198 = vpop.permute.xlu0 %1197
    %v1200 = vrot.slane %v1186, 3
    %v1202 = vsel %vm117, %v1190, %v1194
    %v1203 = vsel %vm394, %v1202, %v1198
    %v1204 = vsel %vm396, %v1203, %v1200
    %s1205 = scalar_lea.vmem %s0, 16
    %v1206 = vld [vmem:[%s1205] sm:$0xf]
    %1207 = vmatpush.msra.mxu0 0.0
    %1208 = vmatpush.msra.mxu0 0.0
    %1209 = vmatpush.msra.mxu0 0.0
    %1210 = vmatpush.msra.mxu0 0.0
    %1211 = vmatpush.msra.mxu0 0.0
    %1212 = vmatpush.msra.mxu0 0.0
    %1213 = vmatpush.msra.mxu0 0.0
    %1214 = vmatpush.msra.mxu0 0.0
    %1215 = vmatpush.msra.mxu0 0.0
    %1216 = vmatpush.msra.mxu0 0.0
    %1217 = vmatpush.msra.mxu0 0.0
    %1218 = vmatpush.msra.mxu0 0.0
    %1219 = vmatpush.msra.mxu0 %v100
    %1220 = vmatpush.msra.mxu0 %v99
    %1221 = vmatpush.msra.mxu0 %v98
    %1222 = vmatpush.msra.mxu0 %v97
    %1223 = vmatmul.f32.gmra.mxu0 %v1042
    %v1224 = vpop.f32.mrf.mxu0
    %v1225 = vadd.f32 0.0, %v1224
    %1226 = vdwg.mxu0
    %v1228 = vsel %vm141, %v1206, 0
    %1230 = vmatpush.msra.mxu0 0.0
    %1231 = vmatpush.msra.mxu0 0.0
    %1232 = vmatpush.msra.mxu0 0.0
    %1233 = vmatpush.msra.mxu0 0.0
    %1234 = vmatpush.msra.mxu0 0.0
    %1235 = vmatpush.msra.mxu0 0.0
    %1236 = vmatpush.msra.mxu0 0.0
    %1237 = vmatpush.msra.mxu0 0.0
    %1238 = vmatpush.msra.mxu0 0.0
    %1239 = vmatpush.msra.mxu0 0.0
    %1240 = vmatpush.msra.mxu0 0.0
    %1241 = vmatpush.msra.mxu0 0.0
    %1242 = vmatpush.msra.mxu0 0.0
    %1243 = vmatpush.msra.mxu0 0.0
    %1244 = vmatpush.msra.mxu0 %v88
    %1245 = vmatpush.msra.mxu0 %v87
    %1246 = vmatmul.f32.gmra.mxu0 %v1228
    %v1247 = vpop.f32.mrf.mxu0
    %v1248 = vadd.f32 %v1225, %v1247
    %1249 = vdwg.mxu0
    %v1250 = vadd.f32 %v1248, %v166
    %v1251 = vxor.u32 %v1250, 2147483648
    %v1252 = vmul.f32 %v1251, 1.442695
    %v1253 = vpow.pop %v1252
    %v1254 = vadd.f32 %v1253, 1.0
    %v1255 = vrcp.pop %v1254
    %v1256 = vmul.f32 %v1254, %v1255
    %v1257 = vsub.f32 1.0, %v1256
    %v1258 = vmul.f32 %v1255, %v1257
    %v1259 = vadd.f32 %v1255, %v1258
    %vm1260 = vweird.f32 %v1254
    %vm1261 = vweird.f32 %v1255
    %vm1262 = vmor %vm1260, %vm1261
    %v1263 = vsel %vm1262, %v1255, %v1259
    %v1264 = vand.u32 2147483647, %v1254
    %vm1265 = vcmp.eq.f32.partialorder %v1264, 8.507059e+37
    %v1266 = vand.u32 %v1254, 2147483648
    %v1267 = vor.u32 1.1754944e-38, %v1266
    %v1268 = vsel %vm1265, %v1267, %v1263
    %v1269 = vmul.f32 1.0, %v1268
    %v1270 = vtanh.pop %v1250
    %v1271 = vmul.f32 %v1269, %v1012
    %1273 = vrot.lane.b32.xlu0 %v1270, 64
    %v1274 = vpop.permute.xlu0 %1273
    %v1276 = vmul.f32 %v1269, %v1274
    %1278 = vrot.lane.b32.xlu0 %v1276, 32
    %v1279 = vpop.permute.xlu0 %1278
    %v1281 = vadd.f32 %v1271, %v1279
    %v1282 = vtanh.pop %v1281
    %1284 = vrot.lane.b32.xlu0 %v1282, 64
    %v1285 = vpop.permute.xlu0 %1284
    %v1287 = vmul.f32 %v1269, %v1285
    %1288 = vmatpush.msra.mxu0 0.0
    %1289 = vmatpush.msra.mxu0 0.0
    %1290 = vmatpush.msra.mxu0 0.0
    %1291 = vmatpush.msra.mxu0 0.0
    %1292 = vmatpush.msra.mxu0 0.0
    %1293 = vmatpush.msra.mxu0 0.0
    %1294 = vmatpush.msra.mxu0 0.0
    %1295 = vmatpush.msra.mxu0 0.0
    %1296 = vmatpush.msra.mxu0 0.0
    %1297 = vmatpush.msra.mxu0 0.0
    %1298 = vmatpush.msra.mxu0 0.0
    %1299 = vmatpush.msra.mxu0 0.0
    %1300 = vmatpush.msra.mxu0 %v105
    %1301 = vmatpush.msra.mxu0 %v104
    %1302 = vmatpush.msra.mxu0 %v103
    %1303 = vmatpush.msra.mxu0 %v102
    %1304 = vmatmul.f32.gmra.mxu0 %v1127
    %v1305 = vpop.f32.mrf.mxu0
    %v1306 = vadd.f32 0.0, %v1305
    %1307 = vdwg.mxu0
    %1309 = vrot.lane.b32.xlu0 %v1287, 32
    %v1310 = vpop.permute.xlu0 %1309
    %v1311 = vsel %vm117, %v1310, 0
    %1313 = vmatpush.msra.mxu0 0.0
    %1314 = vmatpush.msra.mxu0 0.0
    %1315 = vmatpush.msra.mxu0 0.0
    %1316 = vmatpush.msra.mxu0 0.0
    %1317 = vmatpush.msra.mxu0 0.0
    %1318 = vmatpush.msra.mxu0 0.0
    %1319 = vmatpush.msra.mxu0 0.0
    %1320 = vmatpush.msra.mxu0 0.0
    %1321 = vmatpush.msra.mxu0 0.0
    %1322 = vmatpush.msra.mxu0 0.0
    %1323 = vmatpush.msra.mxu0 0.0
    %1324 = vmatpush.msra.mxu0 0.0
    %1325 = vmatpush.msra.mxu0 %v92
    %1326 = vmatpush.msra.mxu0 %v91
    %1327 = vmatpush.msra.mxu0 %v90
    %1328 = vmatpush.msra.mxu0 %v89
    %1329 = vmatmul.f32.gmra.mxu0 %v1311
    %v1330 = vpop.f32.mrf.mxu0
    %v1331 = vadd.f32 %v1306, %v1330
    %1332 = vdwg.mxu0
    %v1333 = vadd.f32 %v1331, %v252
    %v1334 = vxor.u32 %v1333, 2147483648
    %v1335 = vmul.f32 %v1334, 1.442695
    %v1336 = vpow.pop %v1335
    %v1337 = vadd.f32 %v1336, 1.0
    %v1338 = vrcp.pop %v1337
    %v1339 = vmul.f32 %v1337, %v1338
    %v1340 = vsub.f32 1.0, %v1339
    %v1341 = vmul.f32 %v1338, %v1340
    %v1342 = vadd.f32 %v1338, %v1341
    %vm1343 = vweird.f32 %v1337
    %vm1344 = vweird.f32 %v1338
    %vm1345 = vmor %vm1343, %vm1344
    %v1346 = vsel %vm1345, %v1338, %v1342
    %v1347 = vand.u32 2147483647, %v1337
    %vm1348 = vcmp.eq.f32.partialorder %v1347, 8.507059e+37
    %v1349 = vand.u32 %v1337, 2147483648
    %v1350 = vor.u32 1.1754944e-38, %v1349
    %v1351 = vsel %vm1348, %v1350, %v1346
    %v1352 = vmul.f32 1.0, %v1351
    %v1353 = vtanh.pop %v1333
    %v1354 = vmul.f32 %v1352, %v1095
    %1356 = vrot.lane.b32.xlu0 %v1353, 64
    %v1357 = vpop.permute.xlu0 %1356
    %v1359 = vmul.f32 %v1352, %v1357
    %1361 = vrot.lane.b32.xlu0 %v1359, 32
    %v1362 = vpop.permute.xlu0 %1361
    %v1364 = vadd.f32 %v1354, %v1362
    %v1365 = vtanh.pop %v1364
    %1367 = vrot.lane.b32.xlu0 %v1365, 64
    %v1368 = vpop.permute.xlu0 %1367
    %v1370 = vmul.f32 %v1352, %v1368
    %v1371 = vsel %vm117, %v1190, 0
    %1373 = vmatpush.msra.mxu0 0.0
    %1374 = vmatpush.msra.mxu0 0.0
    %1375 = vmatpush.msra.mxu0 0.0
    %1376 = vmatpush.msra.mxu0 0.0
    %1377 = vmatpush.msra.mxu0 0.0
    %1378 = vmatpush.msra.mxu0 0.0
    %1379 = vmatpush.msra.mxu0 0.0
    %1380 = vmatpush.msra.mxu0 0.0
    %1381 = vmatpush.msra.mxu0 0.0
    %1382 = vmatpush.msra.mxu0 0.0
    %1383 = vmatpush.msra.mxu0 0.0
    %1384 = vmatpush.msra.mxu0 0.0
    %1385 = vmatpush.msra.mxu0 %v110
    %1386 = vmatpush.msra.mxu0 %v109
    %1387 = vmatpush.msra.mxu0 %v108
    %1388 = vmatpush.msra.mxu0 %v107
    %1389 = vmatmul.f32.gmra.mxu0 %v1371
    %v1390 = vpop.f32.mrf.mxu0
    %v1391 = vadd.f32 0.0, %v1390
    %1392 = vdwg.mxu0
    %1394 = vrot.lane.b32.xlu0 %v1370, 32
    %v1395 = vpop.permute.xlu0 %1394
    %v1396 = vsel %vm117, %v1395, 0
    %1398 = vmatpush.msra.mxu0 0.0
    %1399 = vmatpush.msra.mxu0 0.0
    %1400 = vmatpush.msra.mxu0 0.0
    %1401 = vmatpush.msra.mxu0 0.0
    %1402 = vmatpush.msra.mxu0 0.0
    %1403 = vmatpush.msra.mxu0 0.0
    %1404 = vmatpush.msra.mxu0 0.0
    %1405 = vmatpush.msra.mxu0 0.0
    %1406 = vmatpush.msra.mxu0 0.0
    %1407 = vmatpush.msra.mxu0 0.0
    %1408 = vmatpush.msra.mxu0 0.0
    %1409 = vmatpush.msra.mxu0 0.0
    %1410 = vmatpush.msra.mxu0 %v96
    %1411 = vmatpush.msra.mxu0 %v95
    %1412 = vmatpush.msra.mxu0 %v94
    %1413 = vmatpush.msra.mxu0 %v93
    %1414 = vmatmul.f32.gmra.mxu0 %v1396
    %v1415 = vpop.f32.mrf.mxu0
    %v1416 = vadd.f32 %v1391, %v1415
    %1417 = vdwg.mxu0
    %v1418 = vadd.f32 %v1416, %v338
    %v1419 = vxor.u32 %v1418, 2147483648
    %v1420 = vmul.f32 %v1419, 1.442695
    %v1421 = vpow.pop %v1420
    %v1422 = vadd.f32 %v1421, 1.0
    %v1423 = vrcp.pop %v1422
    %v1424 = vmul.f32 %v1422, %v1423
    %v1425 = vsub.f32 1.0, %v1424
    %v1426 = vmul.f32 %v1423, %v1425
    %v1427 = vadd.f32 %v1423, %v1426
    %vm1428 = vweird.f32 %v1422
    %vm1429 = vweird.f32 %v1423
    %vm1430 = vmor %vm1428, %vm1429
    %v1431 = vsel %vm1430, %v1423, %v1427
    %v1432 = vand.u32 2147483647, %v1422
    %vm1433 = vcmp.eq.f32.partialorder %v1432, 8.507059e+37
    %v1434 = vand.u32 %v1422, 2147483648
    %v1435 = vor.u32 1.1754944e-38, %v1434
    %v1436 = vsel %vm1433, %v1435, %v1431
    %v1437 = vmul.f32 1.0, %v1436
    %v1438 = vtanh.pop %v1418
    %v1439 = vmul.f32 %v1437, %v1180
    %1441 = vrot.lane.b32.xlu0 %v1438, 64
    %v1442 = vpop.permute.xlu0 %1441
    %v1444 = vmul.f32 %v1437, %v1442
    %1446 = vrot.lane.b32.xlu0 %v1444, 32
    %v1447 = vpop.permute.xlu0 %1446
    %v1449 = vadd.f32 %v1439, %v1447
    %v1450 = vtanh.pop %v1449
    %1452 = vrot.lane.b32.xlu0 %v1450, 64
    %v1453 = vpop.permute.xlu0 %1452
    %v1455 = vmul.f32 %v1437, %v1453
    %v1456 = vadd.f32 %v1187, %v1455
    %1458 = vrot.lane.b32.xlu0 %v1455, 32
    %v1459 = vpop.permute.xlu0 %1458
    %v1461 = vrot.slane %v1455, 1
    %1462 = vrot.lane.b32.xlu0 %v1461, 64
    %v1463 = vpop.permute.xlu0 %1462
    %v1465 = vrot.slane %v1455, 2
    %1466 = vrot.lane.b32.xlu0 %v1465, 96
    %v1467 = vpop.permute.xlu0 %1466
    %v1469 = vrot.slane %v1455, 3
    %v1471 = vsel %vm117, %v1459, %v1463
    %v1472 = vsel %vm394, %v1471, %v1467
    %v1473 = vsel %vm396, %v1472, %v1469
    %s1474 = scalar_lea.vmem %s0, 20
    %v1475 = vld [vmem:[%s1474] sm:$0xf]
    %1476 = vmatpush.msra.mxu0 0.0
    %1477 = vmatpush.msra.mxu0 0.0
    %1478 = vmatpush.msra.mxu0 0.0
    %1479 = vmatpush.msra.mxu0 0.0
    %1480 = vmatpush.msra.mxu0 0.0
    %1481 = vmatpush.msra.mxu0 0.0
    %1482 = vmatpush.msra.mxu0 0.0
    %1483 = vmatpush.msra.mxu0 0.0
    %1484 = vmatpush.msra.mxu0 0.0
    %1485 = vmatpush.msra.mxu0 0.0
    %1486 = vmatpush.msra.mxu0 0.0
    %1487 = vmatpush.msra.mxu0 0.0
    %1488 = vmatpush.msra.mxu0 %v100
    %1489 = vmatpush.msra.mxu0 %v99
    %1490 = vmatpush.msra.mxu0 %v98
    %1491 = vmatpush.msra.mxu0 %v97
    %1492 = vmatmul.f32.gmra.mxu0 %v1311
    %v1493 = vpop.f32.mrf.mxu0
    %v1494 = vadd.f32 0.0, %v1493
    %1495 = vdwg.mxu0
    %v1497 = vsel %vm141, %v1475, 0
    %1499 = vmatpush.msra.mxu0 0.0
    %1500 = vmatpush.msra.mxu0 0.0
    %1501 = vmatpush.msra.mxu0 0.0
    %1502 = vmatpush.msra.mxu0 0.0
    %1503 = vmatpush.msra.mxu0 0.0
    %1504 = vmatpush.msra.mxu0 0.0
    %1505 = vmatpush.msra.mxu0 0.0
    %1506 = vmatpush.msra.mxu0 0.0
    %1507 = vmatpush.msra.mxu0 0.0
    %1508 = vmatpush.msra.mxu0 0.0
    %1509 = vmatpush.msra.mxu0 0.0
    %1510 = vmatpush.msra.mxu0 0.0
    %1511 = vmatpush.msra.mxu0 0.0
    %1512 = vmatpush.msra.mxu0 0.0
    %1513 = vmatpush.msra.mxu0 %v88
    %1514 = vmatpush.msra.mxu0 %v87
    %1515 = vmatmul.f32.gmra.mxu0 %v1497
    %v1516 = vpop.f32.mrf.mxu0
    %v1517 = vadd.f32 %v1494, %v1516
    %1518 = vdwg.mxu0
    %v1519 = vadd.f32 %v1517, %v166
    %v1520 = vxor.u32 %v1519, 2147483648
    %v1521 = vmul.f32 %v1520, 1.442695
    %v1522 = vpow.pop %v1521
    %v1523 = vadd.f32 %v1522, 1.0
    %v1524 = vrcp.pop %v1523
    %v1525 = vmul.f32 %v1523, %v1524
    %v1526 = vsub.f32 1.0, %v1525
    %v1527 = vmul.f32 %v1524, %v1526
    %v1528 = vadd.f32 %v1524, %v1527
    %vm1529 = vweird.f32 %v1523
    %vm1530 = vweird.f32 %v1524
    %vm1531 = vmor %vm1529, %vm1530
    %v1532 = vsel %vm1531, %v1524, %v1528
    %v1533 = vand.u32 2147483647, %v1523
    %vm1534 = vcmp.eq.f32.partialorder %v1533, 8.507059e+37
    %v1535 = vand.u32 %v1523, 2147483648
    %v1536 = vor.u32 1.1754944e-38, %v1535
    %v1537 = vsel %vm1534, %v1536, %v1532
    %v1538 = vmul.f32 1.0, %v1537
    %v1539 = vtanh.pop %v1519
    %v1540 = vmul.f32 %v1538, %v1281
    %1542 = vrot.lane.b32.xlu0 %v1539, 64
    %v1543 = vpop.permute.xlu0 %1542
    %v1545 = vmul.f32 %v1538, %v1543
    %1547 = vrot.lane.b32.xlu0 %v1545, 32
    %v1548 = vpop.permute.xlu0 %1547
    %v1550 = vadd.f32 %v1540, %v1548
    %v1551 = vtanh.pop %v1550
    %1553 = vrot.lane.b32.xlu0 %v1551, 64
    %v1554 = vpop.permute.xlu0 %1553
    %v1556 = vmul.f32 %v1538, %v1554
    %1557 = vmatpush.msra.mxu0 0.0
    %1558 = vmatpush.msra.mxu0 0.0
    %1559 = vmatpush.msra.mxu0 0.0
    %1560 = vmatpush.msra.mxu0 0.0
    %1561 = vmatpush.msra.mxu0 0.0
    %1562 = vmatpush.msra.mxu0 0.0
    %1563 = vmatpush.msra.mxu0 0.0
    %1564 = vmatpush.msra.mxu0 0.0
    %1565 = vmatpush.msra.mxu0 0.0
    %1566 = vmatpush.msra.mxu0 0.0
    %1567 = vmatpush.msra.mxu0 0.0
    %1568 = vmatpush.msra.mxu0 0.0
    %1569 = vmatpush.msra.mxu0 %v105
    %1570 = vmatpush.msra.mxu0 %v104
    %1571 = vmatpush.msra.mxu0 %v103
    %1572 = vmatpush.msra.mxu0 %v102
    %1573 = vmatmul.f32.gmra.mxu0 %v1396
    %v1574 = vpop.f32.mrf.mxu0
    %v1575 = vadd.f32 0.0, %v1574
    %1576 = vdwg.mxu0
    %1578 = vrot.lane.b32.xlu0 %v1556, 32
    %v1579 = vpop.permute.xlu0 %1578
    %v1580 = vsel %vm117, %v1579, 0
    %1582 = vmatpush.msra.mxu0 0.0
    %1583 = vmatpush.msra.mxu0 0.0
    %1584 = vmatpush.msra.mxu0 0.0
    %1585 = vmatpush.msra.mxu0 0.0
    %1586 = vmatpush.msra.mxu0 0.0
    %1587 = vmatpush.msra.mxu0 0.0
    %1588 = vmatpush.msra.mxu0 0.0
    %1589 = vmatpush.msra.mxu0 0.0
    %1590 = vmatpush.msra.mxu0 0.0
    %1591 = vmatpush.msra.mxu0 0.0
    %1592 = vmatpush.msra.mxu0 0.0
    %1593 = vmatpush.msra.mxu0 0.0
    %1594 = vmatpush.msra.mxu0 %v92
    %1595 = vmatpush.msra.mxu0 %v91
    %1596 = vmatpush.msra.mxu0 %v90
    %1597 = vmatpush.msra.mxu0 %v89
    %1598 = vmatmul.f32.gmra.mxu0 %v1580
    %v1599 = vpop.f32.mrf.mxu0
    %v1600 = vadd.f32 %v1575, %v1599
    %1601 = vdwg.mxu0
    %v1602 = vadd.f32 %v1600, %v252
    %v1603 = vxor.u32 %v1602, 2147483648
    %v1604 = vmul.f32 %v1603, 1.442695
    %v1605 = vpow.pop %v1604
    %v1606 = vadd.f32 %v1605, 1.0
    %v1607 = vrcp.pop %v1606
    %v1608 = vmul.f32 %v1606, %v1607
    %v1609 = vsub.f32 1.0, %v1608
    %v1610 = vmul.f32 %v1607, %v1609
    %v1611 = vadd.f32 %v1607, %v1610
    %vm1612 = vweird.f32 %v1606
    %vm1613 = vweird.f32 %v1607
    %vm1614 = vmor %vm1612, %vm1613
    %v1615 = vsel %vm1614, %v1607, %v1611
    %v1616 = vand.u32 2147483647, %v1606
    %vm1617 = vcmp.eq.f32.partialorder %v1616, 8.507059e+37
    %v1618 = vand.u32 %v1606, 2147483648
    %v1619 = vor.u32 1.1754944e-38, %v1618
    %v1620 = vsel %vm1617, %v1619, %v1615
    %v1621 = vmul.f32 1.0, %v1620
    %v1622 = vtanh.pop %v1602
    %v1623 = vmul.f32 %v1621, %v1364
    %1625 = vrot.lane.b32.xlu0 %v1622, 64
    %v1626 = vpop.permute.xlu0 %1625
    %v1628 = vmul.f32 %v1621, %v1626
    %1630 = vrot.lane.b32.xlu0 %v1628, 32
    %v1631 = vpop.permute.xlu0 %1630
    %v1633 = vadd.f32 %v1623, %v1631
    %v1634 = vtanh.pop %v1633
    %1636 = vrot.lane.b32.xlu0 %v1634, 64
    %v1637 = vpop.permute.xlu0 %1636
    %v1639 = vmul.f32 %v1621, %v1637
    %v1640 = vsel %vm117, %v1459, 0
    %1642 = vmatpush.msra.mxu0 0.0
    %1643 = vmatpush.msra.mxu0 0.0
    %1644 = vmatpush.msra.mxu0 0.0
    %1645 = vmatpush.msra.mxu0 0.0
    %1646 = vmatpush.msra.mxu0 0.0
    %1647 = vmatpush.msra.mxu0 0.0
    %1648 = vmatpush.msra.mxu0 0.0
    %1649 = vmatpush.msra.mxu0 0.0
    %1650 = vmatpush.msra.mxu0 0.0
    %1651 = vmatpush.msra.mxu0 0.0
    %1652 = vmatpush.msra.mxu0 0.0
    %1653 = vmatpush.msra.mxu0 0.0
    %1654 = vmatpush.msra.mxu0 %v110
    %1655 = vmatpush.msra.mxu0 %v109
    %1656 = vmatpush.msra.mxu0 %v108
    %1657 = vmatpush.msra.mxu0 %v107
    %1658 = vmatmul.f32.gmra.mxu0 %v1640
    %v1659 = vpop.f32.mrf.mxu0
    %v1660 = vadd.f32 0.0, %v1659
    %1661 = vdwg.mxu0
    %1663 = vrot.lane.b32.xlu0 %v1639, 32
    %v1664 = vpop.permute.xlu0 %1663
    %v1665 = vsel %vm117, %v1664, 0
    %1667 = vmatpush.msra.mxu0 0.0
    %1668 = vmatpush.msra.mxu0 0.0
    %1669 = vmatpush.msra.mxu0 0.0
    %1670 = vmatpush.msra.mxu0 0.0
    %1671 = vmatpush.msra.mxu0 0.0
    %1672 = vmatpush.msra.mxu0 0.0
    %1673 = vmatpush.msra.mxu0 0.0
    %1674 = vmatpush.msra.mxu0 0.0
    %1675 = vmatpush.msra.mxu0 0.0
    %1676 = vmatpush.msra.mxu0 0.0
    %1677 = vmatpush.msra.mxu0 0.0
    %1678 = vmatpush.msra.mxu0 0.0
    %1679 = vmatpush.msra.mxu0 %v96
    %1680 = vmatpush.msra.mxu0 %v95
    %1681 = vmatpush.msra.mxu0 %v94
    %1682 = vmatpush.msra.mxu0 %v93
    %1683 = vmatmul.f32.gmra.mxu0 %v1665
    %v1684 = vpop.f32.mrf.mxu0
    %v1685 = vadd.f32 %v1660, %v1684
    %1686 = vdwg.mxu0
    %v1687 = vadd.f32 %v1685, %v338
    %v1688 = vxor.u32 %v1687, 2147483648
    %v1689 = vmul.f32 %v1688, 1.442695
    %v1690 = vpow.pop %v1689
    %v1691 = vadd.f32 %v1690, 1.0
    %v1692 = vrcp.pop %v1691
    %v1693 = vmul.f32 %v1691, %v1692
    %v1694 = vsub.f32 1.0, %v1693
    %v1695 = vmul.f32 %v1692, %v1694
    %v1696 = vadd.f32 %v1692, %v1695
    %vm1697 = vweird.f32 %v1691
    %vm1698 = vweird.f32 %v1692
    %vm1699 = vmor %vm1697, %vm1698
    %v1700 = vsel %vm1699, %v1692, %v1696
    %v1701 = vand.u32 2147483647, %v1691
    %vm1702 = vcmp.eq.f32.partialorder %v1701, 8.507059e+37
    %v1703 = vand.u32 %v1691, 2147483648
    %v1704 = vor.u32 1.1754944e-38, %v1703
    %v1705 = vsel %vm1702, %v1704, %v1700
    %v1706 = vmul.f32 1.0, %v1705
    %v1707 = vtanh.pop %v1687
    %v1708 = vmul.f32 %v1706, %v1449
    %1710 = vrot.lane.b32.xlu0 %v1707, 64
    %v1711 = vpop.permute.xlu0 %1710
    %v1713 = vmul.f32 %v1706, %v1711
    %1715 = vrot.lane.b32.xlu0 %v1713, 32
    %v1716 = vpop.permute.xlu0 %1715
    %v1718 = vadd.f32 %v1708, %v1716
    %v1719 = vtanh.pop %v1718
    %1721 = vrot.lane.b32.xlu0 %v1719, 64
    %v1722 = vpop.permute.xlu0 %1721
    %v1724 = vmul.f32 %v1706, %v1722
    %v1725 = vadd.f32 %v1456, %v1724
    %1727 = vrot.lane.b32.xlu0 %v1724, 32
    %v1728 = vpop.permute.xlu0 %1727
    %v1730 = vrot.slane %v1724, 1
    %1731 = vrot.lane.b32.xlu0 %v1730, 64
    %v1732 = vpop.permute.xlu0 %1731
    %v1734 = vrot.slane %v1724, 2
    %1735 = vrot.lane.b32.xlu0 %v1734, 96
    %v1736 = vpop.permute.xlu0 %1735
    %v1738 = vrot.slane %v1724, 3
    %v1740 = vsel %vm117, %v1728, %v1732
    %v1741 = vsel %vm394, %v1740, %v1736
    %v1742 = vsel %vm396, %v1741, %v1738
    %s1743 = scalar_lea.vmem %s0, 24
    %v1744 = vld [vmem:[%s1743] sm:$0xf]
    %1745 = vmatpush.msra.mxu0 0.0
    %1746 = vmatpush.msra.mxu0 0.0
    %1747 = vmatpush.msra.mxu0 0.0
    %1748 = vmatpush.msra.mxu0 0.0
    %1749 = vmatpush.msra.mxu0 0.0
    %1750 = vmatpush.msra.mxu0 0.0
    %1751 = vmatpush.msra.mxu0 0.0
    %1752 = vmatpush.msra.mxu0 0.0
    %1753 = vmatpush.msra.mxu0 0.0
    %1754 = vmatpush.msra.mxu0 0.0
    %1755 = vmatpush.msra.mxu0 0.0
    %1756 = vmatpush.msra.mxu0 0.0
    %1757 = vmatpush.msra.mxu0 %v100
    %1758 = vmatpush.msra.mxu0 %v99
    %1759 = vmatpush.msra.mxu0 %v98
    %1760 = vmatpush.msra.mxu0 %v97
    %1761 = vmatmul.f32.gmra.mxu0 %v1580
    %v1762 = vpop.f32.mrf.mxu0
    %v1763 = vadd.f32 0.0, %v1762
    %1764 = vdwg.mxu0
    %v1766 = vsel %vm141, %v1744, 0
    %1768 = vmatpush.msra.mxu0 0.0
    %1769 = vmatpush.msra.mxu0 0.0
    %1770 = vmatpush.msra.mxu0 0.0
    %1771 = vmatpush.msra.mxu0 0.0
    %1772 = vmatpush.msra.mxu0 0.0
    %1773 = vmatpush.msra.mxu0 0.0
    %1774 = vmatpush.msra.mxu0 0.0
    %1775 = vmatpush.msra.mxu0 0.0
    %1776 = vmatpush.msra.mxu0 0.0
    %1777 = vmatpush.msra.mxu0 0.0
    %1778 = vmatpush.msra.mxu0 0.0
    %1779 = vmatpush.msra.mxu0 0.0
    %1780 = vmatpush.msra.mxu0 0.0
    %1781 = vmatpush.msra.mxu0 0.0
    %1782 = vmatpush.msra.mxu0 %v88
    %1783 = vmatpush.msra.mxu0 %v87
    %1784 = vmatmul.f32.gmra.mxu0 %v1766
    %v1785 = vpop.f32.mrf.mxu0
    %v1786 = vadd.f32 %v1763, %v1785
    %1787 = vdwg.mxu0
    %v1788 = vadd.f32 %v1786, %v166
    %v1789 = vxor.u32 %v1788, 2147483648
    %v1790 = vmul.f32 %v1789, 1.442695
    %v1791 = vpow.pop %v1790
    %v1792 = vadd.f32 %v1791, 1.0
    %v1793 = vrcp.pop %v1792
    %v1794 = vmul.f32 %v1792, %v1793
    %v1795 = vsub.f32 1.0, %v1794
    %v1796 = vmul.f32 %v1793, %v1795
    %v1797 = vadd.f32 %v1793, %v1796
    %vm1798 = vweird.f32 %v1792
    %vm1799 = vweird.f32 %v1793
    %vm1800 = vmor %vm1798, %vm1799
    %v1801 = vsel %vm1800, %v1793, %v1797
    %v1802 = vand.u32 2147483647, %v1792
    %vm1803 = vcmp.eq.f32.partialorder %v1802, 8.507059e+37
    %v1804 = vand.u32 %v1792, 2147483648
    %v1805 = vor.u32 1.1754944e-38, %v1804
    %v1806 = vsel %vm1803, %v1805, %v1801
    %v1807 = vmul.f32 1.0, %v1806
    %v1808 = vtanh.pop %v1788
    %v1809 = vmul.f32 %v1807, %v1550
    %1811 = vrot.lane.b32.xlu0 %v1808, 64
    %v1812 = vpop.permute.xlu0 %1811
    %v1814 = vmul.f32 %v1807, %v1812
    %1816 = vrot.lane.b32.xlu0 %v1814, 32
    %v1817 = vpop.permute.xlu0 %1816
    %v1819 = vadd.f32 %v1809, %v1817
    %v1820 = vtanh.pop %v1819
    %1822 = vrot.lane.b32.xlu0 %v1820, 64
    %v1823 = vpop.permute.xlu0 %1822
    %v1825 = vmul.f32 %v1807, %v1823
    %1826 = vmatpush.msra.mxu0 0.0
    %1827 = vmatpush.msra.mxu0 0.0
    %1828 = vmatpush.msra.mxu0 0.0
    %1829 = vmatpush.msra.mxu0 0.0
    %1830 = vmatpush.msra.mxu0 0.0
    %1831 = vmatpush.msra.mxu0 0.0
    %1832 = vmatpush.msra.mxu0 0.0
    %1833 = vmatpush.msra.mxu0 0.0
    %1834 = vmatpush.msra.mxu0 0.0
    %1835 = vmatpush.msra.mxu0 0.0
    %1836 = vmatpush.msra.mxu0 0.0
    %1837 = vmatpush.msra.mxu0 0.0
    %1838 = vmatpush.msra.mxu0 %v105
    %1839 = vmatpush.msra.mxu0 %v104
    %1840 = vmatpush.msra.mxu0 %v103
    %1841 = vmatpush.msra.mxu0 %v102
    %1842 = vmatmul.f32.gmra.mxu0 %v1665
    %v1843 = vpop.f32.mrf.mxu0
    %v1844 = vadd.f32 0.0, %v1843
    %1845 = vdwg.mxu0
    %1847 = vrot.lane.b32.xlu0 %v1825, 32
    %v1848 = vpop.permute.xlu0 %1847
    %v1849 = vsel %vm117, %v1848, 0
    %1851 = vmatpush.msra.mxu0 0.0
    %1852 = vmatpush.msra.mxu0 0.0
    %1853 = vmatpush.msra.mxu0 0.0
    %1854 = vmatpush.msra.mxu0 0.0
    %1855 = vmatpush.msra.mxu0 0.0
    %1856 = vmatpush.msra.mxu0 0.0
    %1857 = vmatpush.msra.mxu0 0.0
    %1858 = vmatpush.msra.mxu0 0.0
    %1859 = vmatpush.msra.mxu0 0.0
    %1860 = vmatpush.msra.mxu0 0.0
    %1861 = vmatpush.msra.mxu0 0.0
    %1862 = vmatpush.msra.mxu0 0.0
    %1863 = vmatpush.msra.mxu0 %v92
    %1864 = vmatpush.msra.mxu0 %v91
    %1865 = vmatpush.msra.mxu0 %v90
    %1866 = vmatpush.msra.mxu0 %v89
    %1867 = vmatmul.f32.gmra.mxu0 %v1849
    %v1868 = vpop.f32.mrf.mxu0
    %v1869 = vadd.f32 %v1844, %v1868
    %1870 = vdwg.mxu0
    %v1871 = vadd.f32 %v1869, %v252
    %v1872 = vxor.u32 %v1871, 2147483648
    %v1873 = vmul.f32 %v1872, 1.442695
    %v1874 = vpow.pop %v1873
    %v1875 = vadd.f32 %v1874, 1.0
    %v1876 = vrcp.pop %v1875
    %v1877 = vmul.f32 %v1875, %v1876
    %v1878 = vsub.f32 1.0, %v1877
    %v1879 = vmul.f32 %v1876, %v1878
    %v1880 = vadd.f32 %v1876, %v1879
    %vm1881 = vweird.f32 %v1875
    %vm1882 = vweird.f32 %v1876
    %vm1883 = vmor %vm1881, %vm1882
    %v1884 = vsel %vm1883, %v1876, %v1880
    %v1885 = vand.u32 2147483647, %v1875
    %vm1886 = vcmp.eq.f32.partialorder %v1885, 8.507059e+37
    %v1887 = vand.u32 %v1875, 2147483648
    %v1888 = vor.u32 1.1754944e-38, %v1887
    %v1889 = vsel %vm1886, %v1888, %v1884
    %v1890 = vmul.f32 1.0, %v1889
    %v1891 = vtanh.pop %v1871
    %v1892 = vmul.f32 %v1890, %v1633
    %1894 = vrot.lane.b32.xlu0 %v1891, 64
    %v1895 = vpop.permute.xlu0 %1894
    %v1897 = vmul.f32 %v1890, %v1895
    %1899 = vrot.lane.b32.xlu0 %v1897, 32
    %v1900 = vpop.permute.xlu0 %1899
    %v1902 = vadd.f32 %v1892, %v1900
    %v1903 = vtanh.pop %v1902
    %1905 = vrot.lane.b32.xlu0 %v1903, 64
    %v1906 = vpop.permute.xlu0 %1905
    %v1908 = vmul.f32 %v1890, %v1906
    %v1909 = vsel %vm117, %v1728, 0
    %1911 = vmatpush.msra.mxu0 0.0
    %1912 = vmatpush.msra.mxu0 0.0
    %1913 = vmatpush.msra.mxu0 0.0
    %1914 = vmatpush.msra.mxu0 0.0
    %1915 = vmatpush.msra.mxu0 0.0
    %1916 = vmatpush.msra.mxu0 0.0
    %1917 = vmatpush.msra.mxu0 0.0
    %1918 = vmatpush.msra.mxu0 0.0
    %1919 = vmatpush.msra.mxu0 0.0
    %1920 = vmatpush.msra.mxu0 0.0
    %1921 = vmatpush.msra.mxu0 0.0
    %1922 = vmatpush.msra.mxu0 0.0
    %1923 = vmatpush.msra.mxu0 %v110
    %1924 = vmatpush.msra.mxu0 %v109
    %1925 = vmatpush.msra.mxu0 %v108
    %1926 = vmatpush.msra.mxu0 %v107
    %1927 = vmatmul.f32.gmra.mxu0 %v1909
    %v1928 = vpop.f32.mrf.mxu0
    %v1929 = vadd.f32 0.0, %v1928
    %1930 = vdwg.mxu0
    %1932 = vrot.lane.b32.xlu0 %v1908, 32
    %v1933 = vpop.permute.xlu0 %1932
    %v1934 = vsel %vm117, %v1933, 0
    %1936 = vmatpush.msra.mxu0 0.0
    %1937 = vmatpush.msra.mxu0 0.0
    %1938 = vmatpush.msra.mxu0 0.0
    %1939 = vmatpush.msra.mxu0 0.0
    %1940 = vmatpush.msra.mxu0 0.0
    %1941 = vmatpush.msra.mxu0 0.0
    %1942 = vmatpush.msra.mxu0 0.0
    %1943 = vmatpush.msra.mxu0 0.0
    %1944 = vmatpush.msra.mxu0 0.0
    %1945 = vmatpush.msra.mxu0 0.0
    %1946 = vmatpush.msra.mxu0 0.0
    %1947 = vmatpush.msra.mxu0 0.0
    %1948 = vmatpush.msra.mxu0 %v96
    %1949 = vmatpush.msra.mxu0 %v95
    %1950 = vmatpush.msra.mxu0 %v94
    %1951 = vmatpush.msra.mxu0 %v93
    %1952 = vmatmul.f32.gmra.mxu0 %v1934
    %v1953 = vpop.f32.mrf.mxu0
    %v1954 = vadd.f32 %v1929, %v1953
    %1955 = vdwg.mxu0
    %v1956 = vadd.f32 %v1954, %v338
    %v1957 = vxor.u32 %v1956, 2147483648
    %v1958 = vmul.f32 %v1957, 1.442695
    %v1959 = vpow.pop %v1958
    %v1960 = vadd.f32 %v1959, 1.0
    %v1961 = vrcp.pop %v1960
    %v1962 = vmul.f32 %v1960, %v1961
    %v1963 = vsub.f32 1.0, %v1962
    %v1964 = vmul.f32 %v1961, %v1963
    %v1965 = vadd.f32 %v1961, %v1964
    %vm1966 = vweird.f32 %v1960
    %vm1967 = vweird.f32 %v1961
    %vm1968 = vmor %vm1966, %vm1967
    %v1969 = vsel %vm1968, %v1961, %v1965
    %v1970 = vand.u32 2147483647, %v1960
    %vm1971 = vcmp.eq.f32.partialorder %v1970, 8.507059e+37
    %v1972 = vand.u32 %v1960, 2147483648
    %v1973 = vor.u32 1.1754944e-38, %v1972
    %v1974 = vsel %vm1971, %v1973, %v1969
    %v1975 = vmul.f32 1.0, %v1974
    %v1976 = vtanh.pop %v1956
    %v1977 = vmul.f32 %v1975, %v1718
    %1979 = vrot.lane.b32.xlu0 %v1976, 64
    %v1980 = vpop.permute.xlu0 %1979
    %v1982 = vmul.f32 %v1975, %v1980
    %1984 = vrot.lane.b32.xlu0 %v1982, 32
    %v1985 = vpop.permute.xlu0 %1984
    %v1987 = vadd.f32 %v1977, %v1985
    %v1988 = vtanh.pop %v1987
    %1990 = vrot.lane.b32.xlu0 %v1988, 64
    %v1991 = vpop.permute.xlu0 %1990
    %v1993 = vmul.f32 %v1975, %v1991
    %v1994 = vadd.f32 %v1725, %v1993
    %1996 = vrot.lane.b32.xlu0 %v1993, 32
    %v1997 = vpop.permute.xlu0 %1996
    %v1999 = vrot.slane %v1993, 1
    %2000 = vrot.lane.b32.xlu0 %v1999, 64
    %v2001 = vpop.permute.xlu0 %2000
    %v2003 = vrot.slane %v1993, 2
    %2004 = vrot.lane.b32.xlu0 %v2003, 96
    %v2005 = vpop.permute.xlu0 %2004
    %v2007 = vrot.slane %v1993, 3
    %v2009 = vsel %vm117, %v1997, %v2001
    %v2010 = vsel %vm394, %v2009, %v2005
    %v2011 = vsel %vm396, %v2010, %v2007
    %s2012 = scalar_lea.vmem %s0, 28
    %v2013 = vld [vmem:[%s2012] sm:$0xf]
    %2014 = vmatpush.msra.mxu0 0.0
    %2015 = vmatpush.msra.mxu0 0.0
    %2016 = vmatpush.msra.mxu0 0.0
    %2017 = vmatpush.msra.mxu0 0.0
    %2018 = vmatpush.msra.mxu0 0.0
    %2019 = vmatpush.msra.mxu0 0.0
    %2020 = vmatpush.msra.mxu0 0.0
    %2021 = vmatpush.msra.mxu0 0.0
    %2022 = vmatpush.msra.mxu0 0.0
    %2023 = vmatpush.msra.mxu0 0.0
    %2024 = vmatpush.msra.mxu0 0.0
    %2025 = vmatpush.msra.mxu0 0.0
    %2026 = vmatpush.msra.mxu0 %v100
    %2027 = vmatpush.msra.mxu0 %v99
    %2028 = vmatpush.msra.mxu0 %v98
    %2029 = vmatpush.msra.mxu0 %v97
    %2030 = vmatmul.f32.gmra.mxu0 %v1849
    %v2031 = vpop.f32.mrf.mxu0
    %v2032 = vadd.f32 0.0, %v2031
    %2033 = vdwg.mxu0
    %v2035 = vsel %vm141, %v2013, 0
    %2037 = vmatpush.msra.mxu0 0.0
    %2038 = vmatpush.msra.mxu0 0.0
    %2039 = vmatpush.msra.mxu0 0.0
    %2040 = vmatpush.msra.mxu0 0.0
    %2041 = vmatpush.msra.mxu0 0.0
    %2042 = vmatpush.msra.mxu0 0.0
    %2043 = vmatpush.msra.mxu0 0.0
    %2044 = vmatpush.msra.mxu0 0.0
    %2045 = vmatpush.msra.mxu0 0.0
    %2046 = vmatpush.msra.mxu0 0.0
    %2047 = vmatpush.msra.mxu0 0.0
    %2048 = vmatpush.msra.mxu0 0.0
    %2049 = vmatpush.msra.mxu0 0.0
    %2050 = vmatpush.msra.mxu0 0.0
    %2051 = vmatpush.msra.mxu0 %v88
    %2052 = vmatpush.msra.mxu0 %v87
    %2053 = vmatmul.f32.gmra.mxu0 %v2035
    %v2054 = vpop.f32.mrf.mxu0
    %v2055 = vadd.f32 %v2032, %v2054
    %2056 = vdwg.mxu0
    %v2057 = vadd.f32 %v2055, %v166
    %v2058 = vxor.u32 %v2057, 2147483648
    %v2059 = vmul.f32 %v2058, 1.442695
    %v2060 = vpow.pop %v2059
    %v2061 = vadd.f32 %v2060, 1.0
    %v2062 = vrcp.pop %v2061
    %v2063 = vmul.f32 %v2061, %v2062
    %v2064 = vsub.f32 1.0, %v2063
    %v2065 = vmul.f32 %v2062, %v2064
    %v2066 = vadd.f32 %v2062, %v2065
    %vm2067 = vweird.f32 %v2061
    %vm2068 = vweird.f32 %v2062
    %vm2069 = vmor %vm2067, %vm2068
    %v2070 = vsel %vm2069, %v2062, %v2066
    %v2071 = vand.u32 2147483647, %v2061
    %vm2072 = vcmp.eq.f32.partialorder %v2071, 8.507059e+37
    %v2073 = vand.u32 %v2061, 2147483648
    %v2074 = vor.u32 1.1754944e-38, %v2073
    %v2075 = vsel %vm2072, %v2074, %v2070
    %v2076 = vmul.f32 1.0, %v2075
    %v2077 = vtanh.pop %v2057
    %v2078 = vmul.f32 %v2076, %v1819
    %2080 = vrot.lane.b32.xlu0 %v2077, 64
    %v2081 = vpop.permute.xlu0 %2080
    %v2083 = vmul.f32 %v2076, %v2081
    %2085 = vrot.lane.b32.xlu0 %v2083, 32
    %v2086 = vpop.permute.xlu0 %2085
    %v2088 = vadd.f32 %v2078, %v2086
    %v2089 = vtanh.pop %v2088
    %2091 = vrot.lane.b32.xlu0 %v2089, 64
    %v2092 = vpop.permute.xlu0 %2091
    %v2094 = vmul.f32 %v2076, %v2092
    %2095 = vmatpush.msra.mxu0 0.0
    %2096 = vmatpush.msra.mxu0 0.0
    %2097 = vmatpush.msra.mxu0 0.0
    %2098 = vmatpush.msra.mxu0 0.0
    %2099 = vmatpush.msra.mxu0 0.0
    %2100 = vmatpush.msra.mxu0 0.0
    %2101 = vmatpush.msra.mxu0 0.0
    %2102 = vmatpush.msra.mxu0 0.0
    %2103 = vmatpush.msra.mxu0 0.0
    %2104 = vmatpush.msra.mxu0 0.0
    %2105 = vmatpush.msra.mxu0 0.0
    %2106 = vmatpush.msra.mxu0 0.0
    %2107 = vmatpush.msra.mxu0 %v105
    %2108 = vmatpush.msra.mxu0 %v104
    %2109 = vmatpush.msra.mxu0 %v103
    %2110 = vmatpush.msra.mxu0 %v102
    %2111 = vmatmul.f32.gmra.mxu0 %v1934
    %v2112 = vpop.f32.mrf.mxu0
    %v2113 = vadd.f32 0.0, %v2112
    %2114 = vdwg.mxu0
    %2116 = vrot.lane.b32.xlu0 %v2094, 32
    %v2117 = vpop.permute.xlu0 %2116
    %v2118 = vsel %vm117, %v2117, 0
    %2120 = vmatpush.msra.mxu0 0.0
    %2121 = vmatpush.msra.mxu0 0.0
    %2122 = vmatpush.msra.mxu0 0.0
    %2123 = vmatpush.msra.mxu0 0.0
    %2124 = vmatpush.msra.mxu0 0.0
    %2125 = vmatpush.msra.mxu0 0.0
    %2126 = vmatpush.msra.mxu0 0.0
    %2127 = vmatpush.msra.mxu0 0.0
    %2128 = vmatpush.msra.mxu0 0.0
    %2129 = vmatpush.msra.mxu0 0.0
    %2130 = vmatpush.msra.mxu0 0.0
    %2131 = vmatpush.msra.mxu0 0.0
    %2132 = vmatpush.msra.mxu0 %v92
    %2133 = vmatpush.msra.mxu0 %v91
    %2134 = vmatpush.msra.mxu0 %v90
    %2135 = vmatpush.msra.mxu0 %v89
    %2136 = vmatmul.f32.gmra.mxu0 %v2118
    %v2137 = vpop.f32.mrf.mxu0
    %v2138 = vadd.f32 %v2113, %v2137
    %2139 = vdwg.mxu0
    %v2140 = vadd.f32 %v2138, %v252
    %v2141 = vxor.u32 %v2140, 2147483648
    %v2142 = vmul.f32 %v2141, 1.442695
    %v2143 = vpow.pop %v2142
    %v2144 = vadd.f32 %v2143, 1.0
    %v2145 = vrcp.pop %v2144
    %v2146 = vmul.f32 %v2144, %v2145
    %v2147 = vsub.f32 1.0, %v2146
    %v2148 = vmul.f32 %v2145, %v2147
    %v2149 = vadd.f32 %v2145, %v2148
    %vm2150 = vweird.f32 %v2144
    %vm2151 = vweird.f32 %v2145
    %vm2152 = vmor %vm2150, %vm2151
    %v2153 = vsel %vm2152, %v2145, %v2149
    %v2154 = vand.u32 2147483647, %v2144
    %vm2155 = vcmp.eq.f32.partialorder %v2154, 8.507059e+37
    %v2156 = vand.u32 %v2144, 2147483648
    %v2157 = vor.u32 1.1754944e-38, %v2156
    %v2158 = vsel %vm2155, %v2157, %v2153
    %v2159 = vmul.f32 1.0, %v2158
    %v2160 = vtanh.pop %v2140
    %v2161 = vmul.f32 %v2159, %v1902
    %2163 = vrot.lane.b32.xlu0 %v2160, 64
    %v2164 = vpop.permute.xlu0 %2163
    %v2166 = vmul.f32 %v2159, %v2164
    %2168 = vrot.lane.b32.xlu0 %v2166, 32
    %v2169 = vpop.permute.xlu0 %2168
    %v2171 = vadd.f32 %v2161, %v2169
    %v2172 = vtanh.pop %v2171
    %2174 = vrot.lane.b32.xlu0 %v2172, 64
    %v2175 = vpop.permute.xlu0 %2174
    %v2177 = vmul.f32 %v2159, %v2175
    %v2178 = vsel %vm117, %v1997, 0
    %2180 = vmatpush.msra.mxu0 0.0
    %2181 = vmatpush.msra.mxu0 0.0
    %2182 = vmatpush.msra.mxu0 0.0
    %2183 = vmatpush.msra.mxu0 0.0
    %2184 = vmatpush.msra.mxu0 0.0
    %2185 = vmatpush.msra.mxu0 0.0
    %2186 = vmatpush.msra.mxu0 0.0
    %2187 = vmatpush.msra.mxu0 0.0
    %2188 = vmatpush.msra.mxu0 0.0
    %2189 = vmatpush.msra.mxu0 0.0
    %2190 = vmatpush.msra.mxu0 0.0
    %2191 = vmatpush.msra.mxu0 0.0
    %2192 = vmatpush.msra.mxu0 %v110
    %2193 = vmatpush.msra.mxu0 %v109
    %2194 = vmatpush.msra.mxu0 %v108
    %2195 = vmatpush.msra.mxu0 %v107
    %2196 = vmatmul.f32.gmra.mxu0 %v2178
    %v2197 = vpop.f32.mrf.mxu0
    %v2198 = vadd.f32 0.0, %v2197
    %2199 = vdwg.mxu0
    %2201 = vrot.lane.b32.xlu0 %v2177, 32
    %v2202 = vpop.permute.xlu0 %2201
    %v2203 = vsel %vm117, %v2202, 0
    %2205 = vmatpush.msra.mxu0 0.0
    %2206 = vmatpush.msra.mxu0 0.0
    %2207 = vmatpush.msra.mxu0 0.0
    %2208 = vmatpush.msra.mxu0 0.0
    %2209 = vmatpush.msra.mxu0 0.0
    %2210 = vmatpush.msra.mxu0 0.0
    %2211 = vmatpush.msra.mxu0 0.0
    %2212 = vmatpush.msra.mxu0 0.0
    %2213 = vmatpush.msra.mxu0 0.0
    %2214 = vmatpush.msra.mxu0 0.0
    %2215 = vmatpush.msra.mxu0 0.0
    %2216 = vmatpush.msra.mxu0 0.0
    %2217 = vmatpush.msra.mxu0 %v96
    %2218 = vmatpush.msra.mxu0 %v95
    %2219 = vmatpush.msra.mxu0 %v94
    %2220 = vmatpush.msra.mxu0 %v93
    %2221 = vmatmul.f32.gmra.mxu0 %v2203
    %v2222 = vpop.f32.mrf.mxu0
    %v2223 = vadd.f32 %v2198, %v2222
    %2224 = vdwg.mxu0
    %v2225 = vadd.f32 %v2223, %v338
    %v2226 = vxor.u32 %v2225, 2147483648
    %v2227 = vmul.f32 %v2226, 1.442695
    %v2228 = vpow.pop %v2227
    %v2229 = vadd.f32 %v2228, 1.0
    %v2230 = vrcp.pop %v2229
    %v2231 = vmul.f32 %v2229, %v2230
    %v2232 = vsub.f32 1.0, %v2231
    %v2233 = vmul.f32 %v2230, %v2232
    %v2234 = vadd.f32 %v2230, %v2233
    %vm2235 = vweird.f32 %v2229
    %vm2236 = vweird.f32 %v2230
    %vm2237 = vmor %vm2235, %vm2236
    %v2238 = vsel %vm2237, %v2230, %v2234
    %v2239 = vand.u32 2147483647, %v2229
    %vm2240 = vcmp.eq.f32.partialorder %v2239, 8.507059e+37
    %v2241 = vand.u32 %v2229, 2147483648
    %v2242 = vor.u32 1.1754944e-38, %v2241
    %v2243 = vsel %vm2240, %v2242, %v2238
    %v2244 = vmul.f32 1.0, %v2243
    %v2245 = vtanh.pop %v2225
    %v2246 = vmul.f32 %v2244, %v1987
    %2248 = vrot.lane.b32.xlu0 %v2245, 64
    %v2249 = vpop.permute.xlu0 %2248
    %v2251 = vmul.f32 %v2244, %v2249
    %2253 = vrot.lane.b32.xlu0 %v2251, 32
    %v2254 = vpop.permute.xlu0 %2253
    %v2256 = vadd.f32 %v2246, %v2254
    %v2257 = vtanh.pop %v2256
    %2259 = vrot.lane.b32.xlu0 %v2257, 64
    %v2260 = vpop.permute.xlu0 %2259
    %v2262 = vmul.f32 %v2244, %v2260
    %v2263 = vadd.f32 %v1994, %v2262
    %2265 = vrot.lane.b32.xlu0 %v2262, 32
    %v2266 = vpop.permute.xlu0 %2265
    %v2268 = vrot.slane %v2262, 1
    %2269 = vrot.lane.b32.xlu0 %v2268, 64
    %v2270 = vpop.permute.xlu0 %2269
    %v2272 = vrot.slane %v2262, 2
    %2273 = vrot.lane.b32.xlu0 %v2272, 96
    %v2274 = vpop.permute.xlu0 %2273
    %v2276 = vrot.slane %v2262, 3
    %v2278 = vsel %vm117, %v2266, %v2270
    %v2279 = vsel %vm394, %v2278, %v2274
    %v2280 = vsel %vm396, %v2279, %v2276
    %v2282 = vrot.slane %v666, 7
    %v2285 = vrot.slane %v935, 6
    %v2288 = vrot.slane %v1204, 5
    %v2291 = vrot.slane %v1473, 4
    %v2294 = vrot.slane %v1742, 3
    %v2297 = vrot.slane %v2011, 2
    %v2300 = vrot.slane %v2280, 1
    %vm2302 = vcmask 1040384
    %v2303 = vsel %vm2302, %v397, %v2282
    %vm2304 = vcmask 1041408
    %v2305 = vsel %vm2304, %v2303, %v2285
    %vm2306 = vcmask 1042432
    %v2307 = vsel %vm2306, %v2305, %v2288
    %vm2308 = vcmask 1043456
    %v2309 = vsel %vm2308, %v2307, %v2291
    %vm2310 = vcmask 1044480
    %v2311 = vsel %vm2310, %v2309, %v2294
    %vm2312 = vcmask 1045504
    %v2313 = vsel %vm2312, %v2311, %v2297
    %vm2314 = vcmask 1046528
    %v2315 = vsel %vm2314, %v2313, %v2300
    %2316 = vst [vmem:[%s10] sm:$0xff] %v2315
    %v2317 = vld [vmem:[%s7] sm:$0x1f]
    %v2318 = vld [vmem:[%s9] sm:$0x7]
    %v2319 = vmul.f32 %v2263, 0.125
    %vm2320 = vcmask 1044224
    %v2321 = vsel %vm2320, %v2319, 0.0
    %v2322 = vrot.slane %v2321, 4
    %v2323 = vadd.f32 %v2321, %v2322
    %v2324 = vrot.slane %v2323, 2
    %v2325 = vadd.f32 %v2323, %v2324
    %v2326 = vrot.slane %v2325, 1
    %v2327 = vadd.f32 %v2325, %v2326
    %v2328 = vrcp.pop 4.0
    %v2329 = vmul.f32 4.0, %v2328
    %v2330 = vsub.f32 1.0, %v2329
    %v2331 = vmul.f32 %v2328, %v2330
    %v2332 = vadd.f32 %v2328, %v2331
    %vm2333 = vweird.f32 %v2328
    %v2334 = vsel %vm2333, %v2328, %v2332
    %v2335 = vmul.f32 %v2327, %v2334
    %v2336 = vsub.f32 %v2319, %v2335
    %v2337 = vmul.f32 %v2336, %v2336
    %v2338 = vsel %vm2320, %v2337, 0.0
    %v2339 = vrot.slane %v2338, 4
    %v2340 = vadd.f32 %v2338, %v2339
    %v2341 = vrot.slane %v2340, 2
    %v2342 = vadd.f32 %v2340, %v2341
    %v2343 = vrot.slane %v2342, 1
    %v2344 = vadd.f32 %v2342, %v2343
    %v2345 = vmul.f32 %v2344, %v2334
    %v2346 = vperm.slane %v2317, 0
    %2348 = vrot.lane.b32.xlu0 %v2336, 32
    %v2349 = vpop.permute.xlu0 %2348
    %v2351 = vmul.f32 %v2346, %v2349
    %v2352 = vadd.f32 %v2345, 1e-05
    %v2353 = vrsqrt.pop %v2352
    %v2354 = vmul.f32 %v2353, %v2352
    %v2355 = vmul.f32 %v2354, %v2353
    %v2356 = vmul.f32 0.5, %v2355
    %v2357 = vsub.f32 1.5, %v2356
    %v2358 = vmul.f32 %v2353, %v2357
    %vm2359 = vweird.f32 %v2352
    %vm2360 = vweird.f32 %v2353
    %vm2361 = vmor %vm2359, %vm2360
    %v2362 = vsel %vm2361, %v2353, %v2358
    %2364 = vrot.lane.b32.xlu0 %v2362, 32
    %v2365 = vpop.permute.xlu0 %2364
    %v2367 = vmul.f32 %v2351, %v2365
    %v2368 = vperm.slane %v2317, 1
    %v2369 = vadd.f32 %v2367, %v2368
    %v2370 = vld [vmem:[#allocation7] sm:$0xff]
    %v2371 = vld [vmem:[#allocation7 + $0x8] sm:$0xff]
    %v2372 = vld [vmem:[#allocation7 + $0x10] sm:$0xff]
    %v2373 = vld [vmem:[#allocation7 + $0x18] sm:$0xff]
    %v2374 = vperm.slane %v2317, 2
    %v2376 = vsel %vm117, %v2369, 0
    %2378 = vmatpush.msra.mxu0 0.0
    %2379 = vmatpush.msra.mxu0 0.0
    %2380 = vmatpush.msra.mxu0 0.0
    %2381 = vmatpush.msra.mxu0 0.0
    %2382 = vmatpush.msra.mxu0 0.0
    %2383 = vmatpush.msra.mxu0 0.0
    %2384 = vmatpush.msra.mxu0 0.0
    %2385 = vmatpush.msra.mxu0 0.0
    %2386 = vmatpush.msra.mxu0 0.0
    %2387 = vmatpush.msra.mxu0 0.0
    %2388 = vmatpush.msra.mxu0 0.0
    %2389 = vmatpush.msra.mxu0 0.0
    %2390 = vmatpush.msra.mxu0 %v2373
    %2391 = vmatpush.msra.mxu0 %v2372
    %2392 = vmatpush.msra.mxu0 %v2371
    %2393 = vmatpush.msra.mxu0 %v2370
    %2394 = vmatmul.f32.gmra.mxu0 %v2376
    %v2395 = vpop.f32.mrf.mxu0
    %v2396 = vadd.f32 %v2374, %v2395
    %2397 = vdwg.mxu0
    %vm2398 = vcmask 257024
    %v2399 = vsel %vm2398, %v2396, 0.0
    %v2400 = vrot.slane %v2399, 4
    %v2401 = vadd.f32 %v2399, %v2400
    %v2402 = vrot.slane %v2401, 2
    %v2403 = vadd.f32 %v2401, %v2402
    %v2404 = vrot.slane %v2403, 1
    %v2405 = vadd.f32 %v2403, %v2404
    %v2406 = vmul.f32 %v2405, %v2334
    %v2407 = vsub.f32 %v2396, %v2406
    %v2408 = vmul.f32 %v2407, %v2407
    %v2409 = vsel %vm2398, %v2408, 0.0
    %v2410 = vrot.slane %v2409, 4
    %v2411 = vadd.f32 %v2409, %v2410
    %v2412 = vrot.slane %v2411, 2
    %v2413 = vadd.f32 %v2411, %v2412
    %v2414 = vrot.slane %v2413, 1
    %v2415 = vadd.f32 %v2413, %v2414
    %v2416 = vmul.f32 %v2415, %v2334
    %v2417 = vperm.slane %v2317, 3
    %v2418 = vmul.f32 %v2417, %v2407
    %v2419 = vadd.f32 %v2416, 1e-05
    %v2420 = vrsqrt.pop %v2419
    %v2421 = vmul.f32 %v2420, %v2419
    %v2422 = vmul.f32 %v2421, %v2420
    %v2423 = vmul.f32 0.5, %v2422
    %v2424 = vsub.f32 1.5, %v2423
    %v2425 = vmul.f32 %v2420, %v2424
    %vm2426 = vweird.f32 %v2419
    %vm2427 = vweird.f32 %v2420
    %vm2428 = vmor %vm2426, %vm2427
    %v2429 = vsel %vm2428, %v2420, %v2425
    %v2430 = vmul.f32 %v2418, %v2429
    %v2431 = vperm.slane %v2317, 4
    %v2432 = vadd.f32 %v2430, %v2431
    %vm2433 = vcmp.gt.f32.partialorder %v2432, 0.0
    %v2434 = vmul.f32 %v2432, 0.2
    %v2435 = vsel %vm2433, %v2432, %v2434
    %v2436 = vld [vmem:[%s8] sm:$0xff]
    %v2437 = vld [vmem:[%s8 + $0x8] sm:$0xff]
    %v2438 = vld [vmem:[%s8 + $0x10] sm:$0xff]
    %v2439 = vld [vmem:[%s8 + $0x18] sm:$0xff]
    %v2440 = vperm.slane %v2318, 0
    %v2442 = vsel %vm117, %v2435, 0
    %2444 = vmatpush.msra.mxu0 0.0
    %2445 = vmatpush.msra.mxu0 0.0
    %2446 = vmatpush.msra.mxu0 0.0
    %2447 = vmatpush.msra.mxu0 0.0
    %2448 = vmatpush.msra.mxu0 0.0
    %2449 = vmatpush.msra.mxu0 0.0
    %2450 = vmatpush.msra.mxu0 0.0
    %2451 = vmatpush.msra.mxu0 0.0
    %2452 = vmatpush.msra.mxu0 0.0
    %2453 = vmatpush.msra.mxu0 0.0
    %2454 = vmatpush.msra.mxu0 0.0
    %2455 = vmatpush.msra.mxu0 0.0
    %2456 = vmatpush.msra.mxu0 %v2439
    %2457 = vmatpush.msra.mxu0 %v2438
    %2458 = vmatpush.msra.mxu0 %v2437
    %2459 = vmatpush.msra.mxu0 %v2436
    %2460 = vmatmul.f32.gmra.mxu0 %v2442
    %v2461 = vpop.f32.mrf.mxu0
    %v2462 = vadd.f32 %v2440, %v2461
    %2463 = vdwg.mxu0
    %v2464 = vsel %vm2308, %v2462, 0.0
    %v2465 = vrot.slane %v2464, 4
    %v2466 = vadd.f32 %v2464, %v2465
    %v2467 = vrot.slane %v2466, 2
    %v2468 = vadd.f32 %v2466, %v2467
    %v2469 = vrot.slane %v2468, 1
    %v2470 = vadd.f32 %v2468, %v2469
    %v2471 = vmul.f32 %v2470, %v2334
    %v2472 = vsub.f32 %v2462, %v2471
    %v2473 = vmul.f32 %v2472, %v2472
    %v2474 = vsel %vm2308, %v2473, 0.0
    %v2475 = vrot.slane %v2474, 4
    %v2476 = vadd.f32 %v2474, %v2475
    %v2477 = vrot.slane %v2476, 2
    %v2478 = vadd.f32 %v2476, %v2477
    %v2479 = vrot.slane %v2478, 1
    %v2480 = vadd.f32 %v2478, %v2479
    %v2481 = vmul.f32 %v2480, %v2334
    %v2482 = vperm.slane %v2318, 1
    %v2483 = vmul.f32 %v2482, %v2472
    %v2484 = vadd.f32 %v2481, 1e-05
    %v2485 = vrsqrt.pop %v2484
    %v2486 = vmul.f32 %v2485, %v2484
    %v2487 = vmul.f32 %v2486, %v2485
    %v2488 = vmul.f32 0.5, %v2487
    %v2489 = vsub.f32 1.5, %v2488
    %v2490 = vmul.f32 %v2485, %v2489
    %vm2491 = vweird.f32 %v2484
    %vm2492 = vweird.f32 %v2485
    %vm2493 = vmor %vm2491, %vm2492
    %v2494 = vsel %vm2493, %v2485, %v2490
    %v2495 = vmul.f32 %v2483, %v2494
    %v2496 = vperm.slane %v2318, 2
    %v2497 = vadd.f32 %v2495, %v2496
    %2498 = vst.msk [vmem:[#allocation8] sm:$0xf] %vm2398, %v2435
    %2499 = vst [vmem:[#allocation9] sm:$0xf] %v2497
    // Predicated region
    $region54: #{forward.1} parent=1 // pred_check
      _
    $region55: #{forward.1} parent=1 // pred_check_branch
      %2501 = sbr.rel (0) target = $region57
    $region56: #{forward.1} parent=1 // pred_region
      _
    $region57: #{forward.1} parent=1 // pred_fallthru
      _
    // Predicated region
    $region58: #{forward.1} parent=1 // pred_check
      _
    $region59: #{forward.1} parent=1 // pred_check_branch
      %2503 = sbr.rel (0) target = $region61
    $region60: #{forward.1} parent=1 // pred_region
      %2505 = vsyncadd [#allocation4], 0
      %s2507 = sshll.u32 [#allocation8], 4
      %s2508 = int_to_ptr.vmem [resolvable:$true] %s2507
      %s2509 = sshll.u32 %s11, 4
      %s2510 = int_to_ptr.hbm [resolvable:$true] %s2509
      %2512 = dma.vmem_to_hbm [thread:$0]  %s2508, 64, %s2510, [#allocation4]
    $region61: #{forward.1} parent=1 // pred_fallthru
      _
    // Predicated region
    $region62: #{forward.1} parent=1 // pred_check
      _
    $region63: #{forward.1} parent=1 // pred_check_branch
      %2514 = sbr.rel (0) target = $region65
    $region64: #{forward.1} parent=1 // pred_region
      %2516 = vsyncadd [#allocation10], 0
      %s2518 = sshll.u32 [#allocation9], 4
      %s2519 = int_to_ptr.vmem [resolvable:$true] %s2518
      %s2520 = sshll.u32 %s12, 4
      %s2521 = int_to_ptr.hbm [resolvable:$true] %s2520
      %2523 = dma.vmem_to_hbm [thread:$0]  %s2519, 64, %s2521, [#allocation10]
    $region65: #{forward.1} parent=1 // pred_fallthru
      _
    // Predicated region
    $region66: #{forward.1} parent=1 // pred_check
      _
    $region67: #{forward.1} parent=1 // pred_check_branch
      %2525 = sbr.rel (0) target = $region69
    $region68: #{forward.1} parent=1 // pred_region
      _
    $region69: #{forward.1} parent=1 // pred_fallthru
      _
    // Predicated region
    $region70: #{forward.1} parent=1 // pred_check
      _
    $region71: #{forward.1} parent=1 // pred_check_branch
      %2527 = sbr.rel (0) target = $region73
    $region72: #{forward.1} parent=1 // pred_region
      %2529 = dma.done [#allocation4], 64
    $region73: #{forward.1} parent=1 // pred_fallthru
      _
    // Predicated region
    $region74: #{forward.1} parent=1 // pred_check
      _
    $region75: #{forward.1} parent=1 // pred_check_branch
      %2531 = sbr.rel (0) target = $region77
    $region76: #{forward.1} parent=1 // pred_region
      %2533 = dma.done [#allocation10], 64
    $region77: #{forward.1} parent=1 // pred_fallthru
      _
    %2534 = vsyncpa [#allocation3], 1
    %2535 = vsyncpa [#allocation6], 1
    %2536 = vsyncpa [#allocation4], 1
    %2537 = vsyncpa [#allocation10], 1

</llo_original>
